<compile_context>
chip_gen: v6e
topology: v6e:2x2x1
jax: 0.10.0
libtpu: 0.0.40
codegen_flags: <defaults>
</compile_context>

<pallas_src>
import jax
import jax.numpy as jnp
from jax.experimental import pallas as pl
from jax.experimental.pallas import tpu as pltpu

NEG_SLOPE = 0.2

_COMPILER_PARAMS = pltpu.CompilerParams(
    dimension_semantics=("parallel",),
    vmem_limit_bytes=32 * 1024 * 1024,
)


# ----------------------------- Pallas kernels -----------------------------

def _conv_lrelu_kernel(w_ref, p_ref, b_ref, o_ref):
    # w_ref: (Cout, K) bf16, p_ref: (K, tm) bf16, b_ref: (Cout, 1) f32
    acc = jnp.dot(w_ref[...], p_ref[...], preferred_element_type=jnp.float32)
    acc = acc + b_ref[...]
    o_ref[...] = jnp.where(acc > 0, acc, NEG_SLOPE * acc).astype(o_ref.dtype)


def _pick_tile(m):
    # Largest lane-dense tile that still leaves >=2 grid steps (v7x: 2 TCs).
    for tm in (2048, 1024, 512, 256, 128):
        if m % tm == 0 and m // tm >= 2:
            return tm
    for tm in (2048, 1024, 512, 256, 128):
        if m % tm == 0:
            return tm
    return m


def conv_matmul_lrelu_t(w_t, patches_t, bias):
    # w_t: (Cout, K) bf16, patches_t: (K, M) bf16, bias: (Cout, 1) f32
    # returns out^T: (Cout, M) f32
    cout, k = w_t.shape
    m = patches_t.shape[1]
    tm = _pick_tile(m)
    return pl.pallas_call(
        _conv_lrelu_kernel,
        out_shape=jax.ShapeDtypeStruct((cout, m), jnp.float32),
        grid_spec=pltpu.PrefetchScalarGridSpec(
            num_scalar_prefetch=0,
            grid=(m // tm,),
            in_specs=[
                pl.BlockSpec((cout, k), lambda i: (0, 0)),
                pl.BlockSpec((k, tm), lambda i: (0, i)),
                pl.BlockSpec((cout, 1), lambda i: (0, 0)),
            ],
            out_specs=pl.BlockSpec((cout, tm), lambda i: (0, i)),
        ),
        compiler_params=_COMPILER_PARAMS,
    )(w_t, patches_t, bias)


def _conv_linear_kernel(w4_ref, p4_ref, b4_ref, wl_ref, s_ref, bl_ref, o_ref):
    # conv4 (transposed matmul + bias + LeakyReLU) fused with the final Linear.
    acc = jnp.dot(w4_ref[...], p4_ref[...], preferred_element_type=jnp.float32)
    act = acc + b4_ref[...]
    act = jnp.where(act > 0, act, NEG_SLOPE * act)          # (C4, M4) f32
    z = act * wl_ref[...]                                    # per-element * W_lin
    zsum = jnp.sum(z, axis=0, keepdims=True)                 # (1, M4) reduce over C
    out = jnp.dot(zsum, s_ref[...],                          # segment-sum per batch
                  preferred_element_type=jnp.float32) + bl_ref[...]
    o_ref[...] = out.astype(o_ref.dtype)                     # (1, N)


def conv4_linear_fused(w4_t, patches4_t, b4, wl_tiled, sel, bl):
    c4, k4 = w4_t.shape
    m4 = patches4_t.shape[1]
    n = sel.shape[1]
    return pl.pallas_call(
        _conv_linear_kernel,
        out_shape=jax.ShapeDtypeStruct((1, n), jnp.float32),
        grid_spec=pltpu.PrefetchScalarGridSpec(
            num_scalar_prefetch=0,
            grid=(1,),
            in_specs=[
                pl.BlockSpec((c4, k4), lambda i: (0, 0)),
                pl.BlockSpec((k4, m4), lambda i: (0, 0)),
                pl.BlockSpec((c4, 1), lambda i: (0, 0)),
                pl.BlockSpec((c4, m4), lambda i: (0, 0)),
                pl.BlockSpec((m4, n), lambda i: (0, 0)),
                pl.BlockSpec((1, 1), lambda i: (0, 0)),
            ],
            out_specs=pl.BlockSpec((1, n), lambda i: (0, 0)),
        ),
        compiler_params=pltpu.CompilerParams(
            dimension_semantics=("arbitrary",),
            vmem_limit_bytes=32 * 1024 * 1024),
    )(w4_t, patches4_t, b4, wl_tiled, sel, bl)


# ------------------------------- glue (JAX) --------------------------------

def im2col_t_s2k5p2(x_cnhw):
    # x: (C, N, H, W) -> patches^T (25*C, N*Ho*Wo); row index = c*25 + kh*5 + kw
    # which matches torch OIHW weight.reshape(Cout, Cin*25) column order.
    c, n, h, w = x_cnhw.shape
    ho, wo = (h + 1) // 2, (w + 1) // 2
    xp = jnp.pad(x_cnhw, ((0, 0), (0, 0), (2, 2), (2, 2)))
    taps = [xp[:, :, kh:kh + 2 * ho:2, kw:kw + 2 * wo:2]
            for kh in range(5) for kw in range(5)]
    pt = jnp.stack(taps, axis=1)                       # (C, 25, N, Ho, Wo)
    return pt.reshape(c * 25, n * ho * wo), ho, wo


def dis_conv_t(x_cnhw, w_oihw, b):
    # 5x5 stride-2 pad-2 conv + LeakyReLU(0.2); compute in the Pallas kernel.
    cout = w_oihw.shape[0]
    _, n, _, _ = x_cnhw.shape
    pt, ho, wo = im2col_t_s2k5p2(x_cnhw.astype(jnp.bfloat16))
    w_t = w_oihw.reshape(cout, -1).astype(jnp.bfloat16)     # torch OIHW flatten
    b2 = b.reshape(cout, 1).astype(jnp.float32)
    out = conv_matmul_lrelu_t(w_t, pt, b2)                   # (Cout, N*Ho*Wo)
    return out.reshape(cout, n, ho, wo)


def init_params(key, input_dim, cnum):
    # Conv weights kept in torch OIHW layout; Linear in torch (out, in) layout.
    dims = [(input_dim, cnum), (cnum, cnum * 2),
            (cnum * 2, cnum * 4), (cnum * 4, cnum * 4)]
    params = {}
    for i, (ci, co) in enumerate(dims):
        key, k1, k2 = jax.random.split(key, 3)
        params[f"conv{i+1}_w"] = 0.05 * jax.random.normal(
            k1, (co, ci, 5, 5), jnp.float32)
        params[f"conv{i+1}_b"] = 0.05 * jax.random.normal(
            k2, (co,), jnp.float32)
    key, k1, k2 = jax.random.split(key, 3)
    kin = cnum * 4 * 8 * 8                                   # nn.Linear(cnum*4*8*8, 1)
    params["lin_w"] = 0.05 * jax.random.normal(k1, (1, kin), jnp.float32)
    params["lin_b"] = 0.05 * jax.random.normal(k2, (1,), jnp.float32)
    return params


def local_dis_forward(params, x_nchw):
    # Accept NCHW like the torch module; compute internally channels-major.
    x = jnp.transpose(x_nchw, (1, 0, 2, 3)).astype(jnp.float32)   # (C, N, H, W)
    for i in range(1, 4):
        x = dis_conv_t(x, params[f"conv{i}_w"], params[f"conv{i}_b"])

    # conv4 + flatten + Linear fused into one Pallas kernel.
    c3, n, h3, w3 = x.shape
    p4, ho, wo = im2col_t_s2k5p2(x.astype(jnp.bfloat16))
    w4 = params["conv4_w"]
    c4 = w4.shape[0]
    w4_t = w4.reshape(c4, -1).astype(jnp.bfloat16)
    b4 = params["conv4_b"].reshape(c4, 1).astype(jnp.float32)
    # torch flattens NCHW: feature index = c*(Ho*Wo) + ho*Wo + wo.
    hw = ho * wo
    wl = params["lin_w"].reshape(c4, hw)
    wl_tiled = jnp.tile(wl, (1, n)).astype(jnp.float32)            # (C4, N*Ho*Wo)
    sel = (jnp.arange(n * hw)[:, None] // hw
           == jnp.arange(n)[None, :]).astype(jnp.float32)          # (N*Ho*Wo, N)
    bl = params["lin_b"].reshape(1, 1).astype(jnp.float32)
    out = conv4_linear_fused(w4_t, p4, b4, wl_tiled, sel, bl)      # (1, N)
    return out.T                                                   # (B, 1)


if __name__ == "__main__":
    # LocalDis' Linear(cnum*4*8*8, 1) implies an 8x8 map after four stride-2
    # convs, i.e. a 128x128 input crop.
    input_dim, cnum, batch, spatial = 4, 4, 2, 128

    key = jax.random.PRNGKey(0)
    pkey, xkey = jax.random.split(key)
    params = init_params(pkey, input_dim, cnum)
    x = jax.random.normal(xkey, (batch, input_dim, spatial, spatial),
                          jnp.float32)

    out = jax.jit(local_dis_forward)(params, x)
    out = jax.block_until_ready(out)
    assert out.shape == (batch, 1), out.shape
    print("KERNEL_OK")
</pallas_src>

<mosaic_0001>
module attributes {stable_mosaic.version = 11 : i64} {
  func.func @_conv_lrelu_kernel(%arg0: i32, %arg1: memref<4x100xbf16, #tpu.memory_space<vmem>>, %arg2: memref<100x2048xbf16, #tpu.memory_space<vmem>>, %arg3: memref<4x1xf32, #tpu.memory_space<vmem>>, %arg4: memref<4x2048xf32, #tpu.memory_space<vmem>>) attributes {dimension_semantics = [#tpu.dimension_semantics<parallel>], iteration_bounds = array<i64: 4>, scalar_prefetch = 0 : i64, scratch_operands = 0 : i64, tpu.core_type = #tpu.core_type<tc>, window_params = [{pipeline_mode = #tpu.pipeline_mode<synchronous>, transform_indices = @transform_0, window_bounds = array<i64: 4, 100>}, {transform_indices = @transform_1, window_bounds = array<i64: 100, 2048>}, {pipeline_mode = #tpu.pipeline_mode<synchronous>, transform_indices = @transform_2, window_bounds = array<i64: 4, 1>}, {transform_indices = @transform_3, window_bounds = array<i64: 4, 2048>}]} {
    %c0 = arith.constant 0 : index
    %c0_0 = arith.constant 0 : index
    %0 = vector.load %arg1[%c0, %c0_0] : memref<4x100xbf16, #tpu.memory_space<vmem>>, vector<4x100xbf16>
    %c0_1 = arith.constant 0 : index
    %c0_2 = arith.constant 0 : index
    %1 = vector.load %arg2[%c0_1, %c0_2] : memref<100x2048xbf16, #tpu.memory_space<vmem>>, vector<100x2048xbf16>
    %cst = arith.constant dense<0.000000e+00> : vector<4x2048xf32>
    %2 = tpu.matmul %0, %1, %cst {dimension_numbers = #tpu.dot_dimension_numbers<[1], [0], [0], [1], [0, 0, 1, 1], [], []>} : vector<4x100xbf16>, vector<100x2048xbf16>, vector<4x2048xf32> -> vector<4x2048xf32>
    %c0_3 = arith.constant 0 : index
    %c0_4 = arith.constant 0 : index
    %3 = vector.load %arg3[%c0_3, %c0_4] : memref<4x1xf32, #tpu.memory_space<vmem>>, vector<4x1xf32>
    %4 = vector.broadcast %3 : vector<4x1xf32> to vector<4x2048xf32>
    %5 = arith.addf %2, %4 : vector<4x2048xf32>
    %cst_5 = arith.constant 0.000000e+00 : f32
    %6 = vector.broadcast %cst_5 : f32 to vector<4x2048xf32>
    %7 = arith.cmpf ogt, %5, %6 : vector<4x2048xf32>
    %cst_6 = arith.constant 2.000000e-01 : f32
    %8 = vector.broadcast %cst_6 : f32 to vector<4x2048xf32>
    %9 = arith.mulf %8, %5 : vector<4x2048xf32>
    %10 = arith.select %7, %5, %9 : vector<4x2048xi1>, vector<4x2048xf32>
    %c0_7 = arith.constant 0 : index
    %c0_8 = arith.constant 0 : index
    %11 = vector.load %arg4[%c0_7, %c0_8] : memref<4x2048xf32, #tpu.memory_space<vmem>>, vector<4x2048xf32>
    tpu.vector_store %arg4[%c0_7, %c0_8], %10 {strides = array<i32>} : memref<4x2048xf32, #tpu.memory_space<vmem>>, vector<4x2048xf32>,
    return
  }
  func.func @transform_0(%arg0: i32) -> (i32, i32) {
    %c0_i32 = arith.constant 0 : i32
    %c0_i32_0 = arith.constant 0 : i32
    %c0_i32_1 = arith.constant 0 : i32
    return %c0_i32, %c0_i32_0 : i32, i32
  }
  func.func @transform_1(%arg0: i32) -> (i32, i32) {
    %c0_i32 = arith.constant 0 : i32
    %c0_i32_0 = arith.constant 0 : i32
    return %c0_i32, %arg0 : i32, i32
  }
  func.func @transform_2(%arg0: i32) -> (i32, i32) {
    %c0_i32 = arith.constant 0 : i32
    %c0_i32_0 = arith.constant 0 : i32
    %c0_i32_1 = arith.constant 0 : i32
    return %c0_i32, %c0_i32_0 : i32, i32
  }
  func.func @transform_3(%arg0: i32) -> (i32, i32) {
    %c0_i32 = arith.constant 0 : i32
    %c0_i32_0 = arith.constant 0 : i32
    return %c0_i32, %arg0 : i32, i32
  }
}

module attributes {stable_mosaic.version = 11 : i64} {
  func.func @_conv_lrelu_kernel(%arg0: i32, %arg1: memref<8x100xbf16, #tpu.memory_space<vmem>>, %arg2: memref<100x1024xbf16, #tpu.memory_space<vmem>>, %arg3: memref<8x1xf32, #tpu.memory_space<vmem>>, %arg4: memref<8x1024xf32, #tpu.memory_space<vmem>>) attributes {dimension_semantics = [#tpu.dimension_semantics<parallel>], iteration_bounds = array<i64: 2>, scalar_prefetch = 0 : i64, scratch_operands = 0 : i64, tpu.core_type = #tpu.core_type<tc>, window_params = [{pipeline_mode = #tpu.pipeline_mode<synchronous>, transform_indices = @transform_0, window_bounds = array<i64: 8, 100>}, {transform_indices = @transform_1, window_bounds = array<i64: 100, 1024>}, {pipeline_mode = #tpu.pipeline_mode<synchronous>, transform_indices = @transform_2, window_bounds = array<i64: 8, 1>}, {transform_indices = @transform_3, window_bounds = array<i64: 8, 1024>}]} {
    %c0 = arith.constant 0 : index
    %c0_0 = arith.constant 0 : index
    %0 = vector.load %arg1[%c0, %c0_0] : memref<8x100xbf16, #tpu.memory_space<vmem>>, vector<8x100xbf16>
    %c0_1 = arith.constant 0 : index
    %c0_2 = arith.constant 0 : index
    %1 = vector.load %arg2[%c0_1, %c0_2] : memref<100x1024xbf16, #tpu.memory_space<vmem>>, vector<100x1024xbf16>
    %cst = arith.constant dense<0.000000e+00> : vector<8x1024xf32>
    %2 = tpu.matmul %0, %1, %cst {dimension_numbers = #tpu.dot_dimension_numbers<[1], [0], [0], [1], [0, 0, 1, 1], [], []>} : vector<8x100xbf16>, vector<100x1024xbf16>, vector<8x1024xf32> -> vector<8x1024xf32>
    %c0_3 = arith.constant 0 : index
    %c0_4 = arith.constant 0 : index
    %3 = vector.load %arg3[%c0_3, %c0_4] : memref<8x1xf32, #tpu.memory_space<vmem>>, vector<8x1xf32>
    %4 = vector.broadcast %3 : vector<8x1xf32> to vector<8x1024xf32>
    %5 = arith.addf %2, %4 : vector<8x1024xf32>
    %cst_5 = arith.constant 0.000000e+00 : f32
    %6 = vector.broadcast %cst_5 : f32 to vector<8x1024xf32>
    %7 = arith.cmpf ogt, %5, %6 : vector<8x1024xf32>
    %cst_6 = arith.constant 2.000000e-01 : f32
    %8 = vector.broadcast %cst_6 : f32 to vector<8x1024xf32>
    %9 = arith.mulf %8, %5 : vector<8x1024xf32>
    %10 = arith.select %7, %5, %9 : vector<8x1024xi1>, vector<8x1024xf32>
    %c0_7 = arith.constant 0 : index
    %c0_8 = arith.constant 0 : index
    %11 = vector.load %arg4[%c0_7, %c0_8] : memref<8x1024xf32, #tpu.memory_space<vmem>>, vector<8x1024xf32>
    tpu.vector_store %arg4[%c0_7, %c0_8], %10 {strides = array<i32>} : memref<8x1024xf32, #tpu.memory_space<vmem>>, vector<8x1024xf32>,
    return
  }
  func.func @transform_0(%arg0: i32) -> (i32, i32) {
    %c0_i32 = arith.constant 0 : i32
    %c0_i32_0 = arith.constant 0 : i32
    %c0_i32_1 = arith.constant 0 : i32
    return %c0_i32, %c0_i32_0 : i32, i32
  }
  func.func @transform_1(%arg0: i32) -> (i32, i32) {
    %c0_i32 = arith.constant 0 : i32
    %c0_i32_0 = arith.constant 0 : i32
    return %c0_i32, %arg0 : i32, i32
  }
  func.func @transform_2(%arg0: i32) -> (i32, i32) {
    %c0_i32 = arith.constant 0 : i32
    %c0_i32_0 = arith.constant 0 : i32
    %c0_i32_1 = arith.constant 0 : i32
    return %c0_i32, %c0_i32_0 : i32, i32
  }
  func.func @transform_3(%arg0: i32) -> (i32, i32) {
    %c0_i32 = arith.constant 0 : i32
    %c0_i32_0 = arith.constant 0 : i32
    return %c0_i32, %arg0 : i32, i32
  }
}

module attributes {stable_mosaic.version = 11 : i64} {
  func.func @_conv_lrelu_kernel(%arg0: i32, %arg1: memref<16x200xbf16, #tpu.memory_space<vmem>>, %arg2: memref<200x256xbf16, #tpu.memory_space<vmem>>, %arg3: memref<16x1xf32, #tpu.memory_space<vmem>>, %arg4: memref<16x256xf32, #tpu.memory_space<vmem>>) attributes {dimension_semantics = [#tpu.dimension_semantics<parallel>], iteration_bounds = array<i64: 2>, scalar_prefetch = 0 : i64, scratch_operands = 0 : i64, tpu.core_type = #tpu.core_type<tc>, window_params = [{pipeline_mode = #tpu.pipeline_mode<synchronous>, transform_indices = @transform_0, window_bounds = array<i64: 16, 200>}, {transform_indices = @transform_1, window_bounds = array<i64: 200, 256>}, {pipeline_mode = #tpu.pipeline_mode<synchronous>, transform_indices = @transform_2, window_bounds = array<i64: 16, 1>}, {transform_indices = @transform_3, window_bounds = array<i64: 16, 256>}]} {
    %c0 = arith.constant 0 : index
    %c0_0 = arith.constant 0 : index
    %0 = vector.load %arg1[%c0, %c0_0] : memref<16x200xbf16, #tpu.memory_space<vmem>>, vector<16x200xbf16>
    %c0_1 = arith.constant 0 : index
    %c0_2 = arith.constant 0 : index
    %1 = vector.load %arg2[%c0_1, %c0_2] : memref<200x256xbf16, #tpu.memory_space<vmem>>, vector<200x256xbf16>
    %cst = arith.constant dense<0.000000e+00> : vector<16x256xf32>
    %2 = tpu.matmul %0, %1, %cst {dimension_numbers = #tpu.dot_dimension_numbers<[1], [0], [0], [1], [0, 0, 1, 1], [], []>} : vector<16x200xbf16>, vector<200x256xbf16>, vector<16x256xf32> -> vector<16x256xf32>
    %c0_3 = arith.constant 0 : index
    %c0_4 = arith.constant 0 : index
    %3 = vector.load %arg3[%c0_3, %c0_4] : memref<16x1xf32, #tpu.memory_space<vmem>>, vector<16x1xf32>
    %4 = vector.broadcast %3 : vector<16x1xf32> to vector<16x256xf32>
    %5 = arith.addf %2, %4 : vector<16x256xf32>
    %cst_5 = arith.constant 0.000000e+00 : f32
    %6 = vector.broadcast %cst_5 : f32 to vector<16x256xf32>
    %7 = arith.cmpf ogt, %5, %6 : vector<16x256xf32>
    %cst_6 = arith.constant 2.000000e-01 : f32
    %8 = vector.broadcast %cst_6 : f32 to vector<16x256xf32>
    %9 = arith.mulf %8, %5 : vector<16x256xf32>
    %10 = arith.select %7, %5, %9 : vector<16x256xi1>, vector<16x256xf32>
    %c0_7 = arith.constant 0 : index
    %c0_8 = arith.constant 0 : index
    %11 = vector.load %arg4[%c0_7, %c0_8] : memref<16x256xf32, #tpu.memory_space<vmem>>, vector<16x256xf32>
    tpu.vector_store %arg4[%c0_7, %c0_8], %10 {strides = array<i32>} : memref<16x256xf32, #tpu.memory_space<vmem>>, vector<16x256xf32>,
    return
  }
  func.func @transform_0(%arg0: i32) -> (i32, i32) {
    %c0_i32 = arith.constant 0 : i32
    %c0_i32_0 = arith.constant 0 : i32
    %c0_i32_1 = arith.constant 0 : i32
    return %c0_i32, %c0_i32_0 : i32, i32
  }
  func.func @transform_1(%arg0: i32) -> (i32, i32) {
    %c0_i32 = arith.constant 0 : i32
    %c0_i32_0 = arith.constant 0 : i32
    return %c0_i32, %arg0 : i32, i32
  }
  func.func @transform_2(%arg0: i32) -> (i32, i32) {
    %c0_i32 = arith.constant 0 : i32
    %c0_i32_0 = arith.constant 0 : i32
    %c0_i32_1 = arith.constant 0 : i32
    return %c0_i32, %c0_i32_0 : i32, i32
  }
  func.func @transform_3(%arg0: i32) -> (i32, i32) {
    %c0_i32 = arith.constant 0 : i32
    %c0_i32_0 = arith.constant 0 : i32
    return %c0_i32, %arg0 : i32, i32
  }
}

module attributes {stable_mosaic.version = 11 : i64} {
  func.func @_conv_linear_kernel(%arg0: i32, %arg1: memref<16x400xbf16, #tpu.memory_space<vmem>>, %arg2: memref<400x128xbf16, #tpu.memory_space<vmem>>, %arg3: memref<16x1xf32, #tpu.memory_space<vmem>>, %arg4: memref<16x128xf32, #tpu.memory_space<vmem>>, %arg5: memref<128x2xf32, #tpu.memory_space<vmem>>, %arg6: memref<1x1xf32, #tpu.memory_space<vmem>>, %arg7: memref<1x2xf32, #tpu.memory_space<vmem>>) attributes {dimension_semantics = [#tpu.dimension_semantics<arbitrary>], iteration_bounds = array<i64: 1>, scalar_prefetch = 0 : i64, scratch_operands = 0 : i64, tpu.core_type = #tpu.core_type<tc>, window_params = [{pipeline_mode = #tpu.pipeline_mode<synchronous>, transform_indices = @transform_0, window_bounds = array<i64: 16, 400>}, {pipeline_mode = #tpu.pipeline_mode<synchronous>, transform_indices = @transform_1, window_bounds = array<i64: 400, 128>}, {pipeline_mode = #tpu.pipeline_mode<synchronous>, transform_indices = @transform_2, window_bounds = array<i64: 16, 1>}, {pipeline_mode = #tpu.pipeline_mode<synchronous>, transform_indices = @transform_3, window_bounds = array<i64: 16, 128>}, {pipeline_mode = #tpu.pipeline_mode<synchronous>, transform_indices = @transform_4, window_bounds = array<i64: 128, 2>}, {pipeline_mode = #tpu.pipeline_mode<synchronous>, transform_indices = @transform_5, window_bounds = array<i64: 1, 1>}, {pipeline_mode = #tpu.pipeline_mode<synchronous>, transform_indices = @transform_6, window_bounds = array<i64: 1, 2>}]} {
    %c0 = arith.constant 0 : index
    %c0_0 = arith.constant 0 : index
    %0 = vector.load %arg1[%c0, %c0_0] : memref<16x400xbf16, #tpu.memory_space<vmem>>, vector<16x400xbf16>
    %c0_1 = arith.constant 0 : index
    %c0_2 = arith.constant 0 : index
    %1 = vector.load %arg2[%c0_1, %c0_2] : memref<400x128xbf16, #tpu.memory_space<vmem>>, vector<400x128xbf16>
    %cst = arith.constant dense<0.000000e+00> : vector<16x128xf32>
    %2 = tpu.matmul %0, %1, %cst {dimension_numbers = #tpu.dot_dimension_numbers<[1], [0], [0], [1], [0, 0, 1, 1], [], []>} : vector<16x400xbf16>, vector<400x128xbf16>, vector<16x128xf32> -> vector<16x128xf32>
    %c0_3 = arith.constant 0 : index
    %c0_4 = arith.constant 0 : index
    %3 = vector.load %arg3[%c0_3, %c0_4] : memref<16x1xf32, #tpu.memory_space<vmem>>, vector<16x1xf32>
    %4 = vector.broadcast %3 : vector<16x1xf32> to vector<16x128xf32>
    %5 = arith.addf %2, %4 : vector<16x128xf32>
    %cst_5 = arith.constant 0.000000e+00 : f32
    %6 = vector.broadcast %cst_5 : f32 to vector<16x128xf32>
    %7 = arith.cmpf ogt, %5, %6 : vector<16x128xf32>
    %cst_6 = arith.constant 2.000000e-01 : f32
    %8 = vector.broadcast %cst_6 : f32 to vector<16x128xf32>
    %9 = arith.mulf %8, %5 : vector<16x128xf32>
    %10 = arith.select %7, %5, %9 : vector<16x128xi1>, vector<16x128xf32>
    %c0_7 = arith.constant 0 : index
    %c0_8 = arith.constant 0 : index
    %11 = vector.load %arg4[%c0_7, %c0_8] : memref<16x128xf32, #tpu.memory_space<vmem>>, vector<16x128xf32>
    %12 = arith.mulf %10, %11 : vector<16x128xf32>
    %cst_9 = arith.constant dense<0.000000e+00> : vector<128xf32>
    %13 = vector.multi_reduction <add>, %12, %cst_9 [0] : vector<16x128xf32> to vector<128xf32>
    %14 = vector.shape_cast %13 : vector<128xf32> to vector<1x128xf32>
    %c0_10 = arith.constant 0 : index
    %c0_11 = arith.constant 0 : index
    %15 = vector.load %arg5[%c0_10, %c0_11] : memref<128x2xf32, #tpu.memory_space<vmem>>, vector<128x2xf32>
    %cst_12 = arith.constant dense<0.000000e+00> : vector<1x2xf32>
    %16 = tpu.matmul %14, %15, %cst_12 {dimension_numbers = #tpu.dot_dimension_numbers<[1], [0], [0], [1], [0, 0, 1, 1], [], []>} : vector<1x128xf32>, vector<128x2xf32>, vector<1x2xf32> -> vector<1x2xf32>
    %c0_13 = arith.constant 0 : index
    %c0_14 = arith.constant 0 : index
    %17 = vector.load %arg6[%c0_13, %c0_14] : memref<1x1xf32, #tpu.memory_space<vmem>>, vector<1x1xf32>
    %18 = vector.broadcast %17 : vector<1x1xf32> to vector<1x2xf32>
    %19 = arith.addf %16, %18 : vector<1x2xf32>
    %c0_15 = arith.constant 0 : index
    %c0_16 = arith.constant 0 : index
    %20 = vector.load %arg7[%c0_15, %c0_16] : memref<1x2xf32, #tpu.memory_space<vmem>>, vector<1x2xf32>
    tpu.vector_store %arg7[%c0_15, %c0_16], %19 {strides = array<i32>} : memref<1x2xf32, #tpu.memory_space<vmem>>, vector<1x2xf32>,
    return
  }
  func.func @transform_0(%arg0: i32) -> (i32, i32) {
    %c0_i32 = arith.constant 0 : i32
    %c0_i32_0 = arith.constant 0 : i32
    %c0_i32_1 = arith.constant 0 : i32
    return %c0_i32, %c0_i32_0 : i32, i32
  }
  func.func @transform_1(%arg0: i32) -> (i32, i32) {
    %c0_i32 = arith.constant 0 : i32
    %c0_i32_0 = arith.constant 0 : i32
    %c0_i32_1 = arith.constant 0 : i32
    return %c0_i32, %c0_i32_0 : i32, i32
  }
  func.func @transform_2(%arg0: i32) -> (i32, i32) {
    %c0_i32 = arith.constant 0 : i32
    %c0_i32_0 = arith.constant 0 : i32
    %c0_i32_1 = arith.constant 0 : i32
    return %c0_i32, %c0_i32_0 : i32, i32
  }
  func.func @transform_3(%arg0: i32) -> (i32, i32) {
    %c0_i32 = arith.constant 0 : i32
    %c0_i32_0 = arith.constant 0 : i32
    %c0_i32_1 = arith.constant 0 : i32
    return %c0_i32, %c0_i32_0 : i32, i32
  }
  func.func @transform_4(%arg0: i32) -> (i32, i32) {
    %c0_i32 = arith.constant 0 : i32
    %c0_i32_0 = arith.constant 0 : i32
    %c0_i32_1 = arith.constant 0 : i32
    return %c0_i32, %c0_i32_0 : i32, i32
  }
  func.func @transform_5(%arg0: i32) -> (i32, i32) {
    %c0_i32 = arith.constant 0 : i32
    %c0_i32_0 = arith.constant 0 : i32
    %c0_i32_1 = arith.constant 0 : i32
    return %c0_i32, %c0_i32_0 : i32, i32
  }
  func.func @transform_6(%arg0: i32) -> (i32, i32) {
    %c0_i32 = arith.constant 0 : i32
    %c0_i32_0 = arith.constant 0 : i32
    %c0_i32_1 = arith.constant 0 : i32
    return %c0_i32, %c0_i32_0 : i32, i32
  }
}

</mosaic_0001>

<llo_original>
// kernel: local_dis_forward.4
$region0: #{local_dis_forward.4}
  #allocation0 [shape = 'u32[]', space=smem, size = 0x4, offset = 0x4, fixed_abs, tag = 'smem constant byte address 0x4 - core index']
  #allocation1 [shape = 'u32[144,128]{1,0:T(1,128)}', space=vmem, size = 0x12000, scoped, tag = 'internal scratch']
  %s0 = inlined_call_operand.vmem [shape: bf16[4,100], index: 0, kind: input, shape index: {}]
  %s1 = inlined_call_operand.vmem [shape: bf16[100,8192], index: 1, kind: input, shape index: {}]
  %s2 = inlined_call_operand.vmem [shape: f32[4,1], index: 2, kind: input, shape index: {}]
  %s3 = inlined_call_operand.vmem [shape: f32[4,8192], index: 3, kind: output, shape index: {}]
  %s4 = sld [smem:[#allocation0]]
  $region68: #{local_dis_forward.4} parent=0
    _
  %s6 = ssub.s32 1, %s4
  %s7 = scalar_select 0, %s6, %s4
  $region1: #{local_dis_forward.4} parent=0
    #allocation2 [shape = 'u8[851968]{0}', space=vmem, size = 0xd0000, scoped, tag = 'input window, operand 1']
    loop: start=0, step=1, limit=6
    $region2: #{local_dis_forward.4} parent=1 // loop_pre_header
      _
    $region3: #{local_dis_forward.4} parent=1 // loop_header
      %s9 = sphi 0, %s13
      %p10 = scmp.ge.s32.totalorder %s9, 6
      %s17 = sphi 0, %s17
      %s19 = sphi 0, %s17
      %s20 = sphi 0, %s19
      %s34 = sphi 0, %s20
      %s40 = sphi 0, %s42
      %s43 = sphi 0, %s40
      %s44 = sphi 0, %s43
      %s60 = sphi 0, %s44
      %s64 = sphi 0, %s64
      %s66 = sphi 0, %s64
      %s67 = sphi 0, %s66
      %s81 = sphi 0, %s67
      %s87 = sphi 0, %s89
      %s90 = sphi 0, %s87
      %s91 = sphi 0, %s90
      %s107 = sphi 0, %s91
    $region4: #{local_dis_forward.4} parent=1 // loop_header_branch
      %12 = sbr.rel (%p10) target = $region8
    $region5: #{local_dis_forward.4} parent=1 // loop_body
      %s14 = ssub.s32 %s9, 1
      %s15 = ssub.s32 %s9, 2
      %s16 = sadd.s32 %s9, 1
      %s18 = sadd.s32 %s17, 1
      %p21 = scmp.eq.s32.totalorder %s9, 3
      %p22 = scmp.ne.s32.totalorder %s17, %s19
      %p23 = scmp.eq.s32.totalorder %s9, 0
      %p24 = por %p22, %p23
      %p25 = scmp.ne.s32.totalorder %s17, %s19
      %p26 = scmp.eq.s32.totalorder %s14, 3
      %p27 = por %p25, %p26
      %p28 = scmp.ne.s32.totalorder %s19, %s20
      %p29 = scmp.eq.s32.totalorder %s14, 0
      %p30 = por %p28, %p29
      %p31 = scmp.ne.s32.totalorder %s19, %s20
      %p32 = scmp.eq.s32.totalorder %s15, 3
      %p33 = por %p31, %p32
      %p35 = scmp.ne.s32.totalorder %s20, %s34
      %p36 = scmp.eq.s32.totalorder %s15, 0
      %p37 = por %p35, %p36
      %s38 = ssub.s32 %s9, %s16
      %p39 = scmp.eq.s32.totalorder %s38, 0
      %s41 = sadd.s32 %s40, 1
      %s42 = scalar_select %p39, %s40, %s41
      %p45 = pneg %p39
      %p46 = scmp.eq.s32.totalorder %s9, 3
      %p47 = por %p45, %p46
      %p48 = scmp.ne.s32.totalorder %s40, %s43
      %p49 = scmp.eq.s32.totalorder %s9, 0
      %p50 = por %p48, %p49
      %p51 = scmp.ne.s32.totalorder %s40, %s43
      %p52 = scmp.eq.s32.totalorder %s14, 3
      %p53 = por %p51, %p52
      %p54 = scmp.ne.s32.totalorder %s43, %s44
      %p55 = scmp.eq.s32.totalorder %s14, 0
      %p56 = por %p54, %p55
      %p57 = scmp.ne.s32.totalorder %s43, %s44
      %p58 = scmp.eq.s32.totalorder %s15, 3
      %p59 = por %p57, %p58
      %p61 = scmp.ne.s32.totalorder %s44, %s60
      %p62 = scmp.eq.s32.totalorder %s15, 0
      %p63 = por %p61, %p62
      %s65 = sadd.s32 %s64, 1
      %p68 = scmp.eq.s32.totalorder %s9, 3
      %p69 = scmp.ne.s32.totalorder %s64, %s66
      %p70 = scmp.eq.s32.totalorder %s9, 0
      %p71 = por %p69, %p70
      %p72 = scmp.ne.s32.totalorder %s64, %s66
      %p73 = scmp.eq.s32.totalorder %s14, 3
      %p74 = por %p72, %p73
      %p75 = scmp.ne.s32.totalorder %s66, %s67
      %p76 = scmp.eq.s32.totalorder %s14, 0
      %p77 = por %p75, %p76
      %p78 = scmp.ne.s32.totalorder %s66, %s67
      %p79 = scmp.eq.s32.totalorder %s15, 3
      %p80 = por %p78, %p79
      %p82 = scmp.ne.s32.totalorder %s67, %s81
      %p83 = scmp.eq.s32.totalorder %s15, 0
      %p84 = por %p82, %p83
      %s85 = ssub.s32 %s9, %s16
      %p86 = scmp.eq.s32.totalorder %s85, 0
      %s88 = sadd.s32 %s87, 1
      %s89 = scalar_select %p86, %s87, %s88
      %p92 = pneg %p86
      %p93 = scmp.eq.s32.totalorder %s9, 3
      %p94 = por %p92, %p93
      %p95 = scmp.ne.s32.totalorder %s87, %s90
      %p96 = scmp.eq.s32.totalorder %s9, 0
      %p97 = por %p95, %p96
      %p98 = scmp.ne.s32.totalorder %s87, %s90
      %p99 = scmp.eq.s32.totalorder %s14, 3
      %p100 = por %p98, %p99
      %p101 = scmp.ne.s32.totalorder %s90, %s91
      %p102 = scmp.eq.s32.totalorder %s14, 0
      %p103 = por %p101, %p102
      %p104 = scmp.ne.s32.totalorder %s90, %s91
      %p105 = scmp.eq.s32.totalorder %s15, 3
      %p106 = por %p104, %p105
      %p108 = scmp.ne.s32.totalorder %s91, %s107
      %p109 = scmp.eq.s32.totalorder %s15, 0
      %p110 = por %p108, %p109
      %p111 = scmp.le.s32.totalorder 1, %s9
      %p112 = scmp.lt.s32.totalorder %s9, 5
      %p113 = pnand %p111, %p112
      %p114 = pneg %p113
      // Predicated region
      $region9: #{local_dis_forward.4} parent=5 // pred_check
        _
      $region10: #{local_dis_forward.4} parent=5 // pred_check_branch
        %116 = sbr.rel (%p113) target = $region12
      $region11: #{local_dis_forward.4} parent=5 // pred_region
        %s117 = ssub.s32 %s9, 1
        // Predicated region
        $region13: #{local_dis_forward.4} parent=11 // pred_check
          %p118 = pneg %p30
        $region14: #{local_dis_forward.4} parent=11 // pred_check_branch
          %120 = sbr.rel (%p118) target = $region16
        $region15: #{local_dis_forward.4} parent=11 // pred_region
          _
        $region16: #{local_dis_forward.4} parent=11 // pred_fallthru
          _
        // Predicated region
        $region17: #{local_dis_forward.4} parent=11 // pred_check
          %p121 = pneg %p77
        $region18: #{local_dis_forward.4} parent=11 // pred_check_branch
          %123 = sbr.rel (%p121) target = $region20
        $region19: #{local_dis_forward.4} parent=11 // pred_region
          _
        $region20: #{local_dis_forward.4} parent=11 // pred_fallthru
          _
      $region12: #{local_dis_forward.4} parent=5 // pred_fallthru
        _
      %p124 = scmp.lt.s32.totalorder %s9, 4
      // Predicated region
      $region21: #{local_dis_forward.4} parent=5 // pred_check
        %p125 = pneg %p124
      $region22: #{local_dis_forward.4} parent=5 // pred_check_branch
        %127 = sbr.rel (%p125) target = $region24
      $region23: #{local_dis_forward.4} parent=5 // pred_region
        // Predicated region
        $region25: #{local_dis_forward.4} parent=23 // pred_check
          %p128 = pneg %p50
        $region26: #{local_dis_forward.4} parent=23 // pred_check_branch
          %130 = sbr.rel (%p128) target = $region28
        $region27: #{local_dis_forward.4} parent=23 // pred_region
          %s131 = sand.u32 %s40, 1
          %s132 = sand.u32 %s40, 1
          %s133 = smul.addr %s132, 832
          %s134 = scalar_lea.vmem [#allocation2], %s133
          %s135 = smul.u32 16, %s9
          %s136 = smul.addr %s135, 4
          %s137 = scalar_lea.vmem %s1, %s136
          // Predicated region
          $region29: #{local_dis_forward.4} parent=27 // pred_check
            _
          $region30: #{local_dis_forward.4} parent=27 // pred_check_branch
            %139 = sbr.rel (0) target = $region32
          $region31: #{local_dis_forward.4} parent=27 // pred_region
            // Predicated region
            $region33: #{local_dis_forward.4} parent=31 // pred_check
              _
            $region34: #{local_dis_forward.4} parent=31 // pred_check_branch
              %141 = sbr.rel (0) target = $region36
            $region35: #{local_dis_forward.4} parent=31 // pred_region
              loop: start=0, step=1, limit=1
              $region37: #{local_dis_forward.4} parent=35 // loop_pre_header
                _
              $region38: #{local_dis_forward.4} parent=35 // loop_header
                %s143 = sphi 0, %s147
                %p144 = scmp.ge.s32.totalorder %s143, 1
                %s148 = sphi %s137, %s137
                %s149 = sphi %s134, %s134
              $region39: #{local_dis_forward.4} parent=35 // loop_header_branch
                %146 = sbr.rel (%p144) target = $region43
              $region40: #{local_dis_forward.4} parent=35 // loop_body
                %v150 = vld [vmem:[%s148] sm:$0xff]
                %151 = vst [vmem:[%s149] sm:$0xff] %v150
                %v152 = vld [vmem:[%s148 + $0x8] sm:$0xff]
                %153 = vst [vmem:[%s149 + $0x8] sm:$0xff] %v152
                %v154 = vld [vmem:[%s148 + $0x10] sm:$0xff]
                %155 = vst [vmem:[%s149 + $0x10] sm:$0xff] %v154
                %v156 = vld [vmem:[%s148 + $0x18] sm:$0xff]
                %157 = vst [vmem:[%s149 + $0x18] sm:$0xff] %v156
                %v158 = vld [vmem:[%s148 + $0x20] sm:$0xff]
                %159 = vst [vmem:[%s149 + $0x20] sm:$0xff] %v158
                %v160 = vld [vmem:[%s148 + $0x28] sm:$0xff]
                %161 = vst [vmem:[%s149 + $0x28] sm:$0xff] %v160
                %v162 = vld [vmem:[%s148 + $0x30] sm:$0xff]
                %163 = vst [vmem:[%s149 + $0x30] sm:$0xff] %v162
                %v164 = vld [vmem:[%s148 + $0x38] sm:$0xff]
                %165 = vst [vmem:[%s149 + $0x38] sm:$0xff] %v164
                %v166 = vld [vmem:[%s148 + $0x100] sm:$0xff]
                %167 = vst [vmem:[%s149 + $0x40] sm:$0xff] %v166
                %v168 = vld [vmem:[%s148 + $0x108] sm:$0xff]
                %169 = vst [vmem:[%s149 + $0x48] sm:$0xff] %v168
                %v170 = vld [vmem:[%s148 + $0x110] sm:$0xff]
                %171 = vst [vmem:[%s149 + $0x50] sm:$0xff] %v170
                %v172 = vld [vmem:[%s148 + $0x118] sm:$0xff]
                %173 = vst [vmem:[%s149 + $0x58] sm:$0xff] %v172
                %v174 = vld [vmem:[%s148 + $0x120] sm:$0xff]
                %175 = vst [vmem:[%s149 + $0x60] sm:$0xff] %v174
                %v176 = vld [vmem:[%s148 + $0x128] sm:$0xff]
                %177 = vst [vmem:[%s149 + $0x68] sm:$0xff] %v176
                %v178 = vld [vmem:[%s148 + $0x130] sm:$0xff]
                %179 = vst [vmem:[%s149 + $0x70] sm:$0xff] %v178
                %v180 = vld [vmem:[%s148 + $0x138] sm:$0xff]
                %181 = vst [vmem:[%s149 + $0x78] sm:$0xff] %v180
                %v182 = vld [vmem:[%s148 + $0x200] sm:$0xff]
                %183 = vst [vmem:[%s149 + $0x80] sm:$0xff] %v182
                %v184 = vld [vmem:[%s148 + $0x208] sm:$0xff]
                %185 = vst [vmem:[%s149 + $0x88] sm:$0xff] %v184
                %v186 = vld [vmem:[%s148 + $0x210] sm:$0xff]
                %187 = vst [vmem:[%s149 + $0x90] sm:$0xff] %v186
                %v188 = vld [vmem:[%s148 + $0x218] sm:$0xff]
                %189 = vst [vmem:[%s149 + $0x98] sm:$0xff] %v188
                %v190 = vld [vmem:[%s148 + $0x220] sm:$0xff]
                %191 = vst [vmem:[%s149 + $0xa0] sm:$0xff] %v190
                %v192 = vld [vmem:[%s148 + $0x228] sm:$0xff]
                %193 = vst [vmem:[%s149 + $0xa8] sm:$0xff] %v192
                %v194 = vld [vmem:[%s148 + $0x230] sm:$0xff]
                %195 = vst [vmem:[%s149 + $0xb0] sm:$0xff] %v194
                %v196 = vld [vmem:[%s148 + $0x238] sm:$0xff]
                %197 = vst [vmem:[%s149 + $0xb8] sm:$0xff] %v196
                %v198 = vld [vmem:[%s148 + $0x300] sm:$0xff]
                %199 = vst [vmem:[%s149 + $0xc0] sm:$0xff] %v198
                %v200 = vld [vmem:[%s148 + $0x308] sm:$0xff]
                %201 = vst [vmem:[%s149 + $0xc8] sm:$0xff] %v200
                %v202 = vld [vmem:[%s148 + $0x310] sm:$0xff]
                %203 = vst [vmem:[%s149 + $0xd0] sm:$0xff] %v202
                %v204 = vld [vmem:[%s148 + $0x318] sm:$0xff]
                %205 = vst [vmem:[%s149 + $0xd8] sm:$0xff] %v204
                %v206 = vld [vmem:[%s148 + $0x320] sm:$0xff]
                %207 = vst [vmem:[%s149 + $0xe0] sm:$0xff] %v206
                %v208 = vld [vmem:[%s148 + $0x328] sm:$0xff]
                %209 = vst [vmem:[%s149 + $0xe8] sm:$0xff] %v208
                %v210 = vld [vmem:[%s148 + $0x330] sm:$0xff]
                %211 = vst [vmem:[%s149 + $0xf0] sm:$0xff] %v210
                %v212 = vld [vmem:[%s148 + $0x338] sm:$0xff]
                %213 = vst [vmem:[%s149 + $0xf8] sm:$0xff] %v212
                %v214 = vld [vmem:[%s148 + $0x400] sm:$0xff]
                %215 = vst [vmem:[%s149 + $0x100] sm:$0xff] %v214
                %v216 = vld [vmem:[%s148 + $0x408] sm:$0xff]
                %217 = vst [vmem:[%s149 + $0x108] sm:$0xff] %v216
                %v218 = vld [vmem:[%s148 + $0x410] sm:$0xff]
                %219 = vst [vmem:[%s149 + $0x110] sm:$0xff] %v218
                %v220 = vld [vmem:[%s148 + $0x418] sm:$0xff]
                %221 = vst [vmem:[%s149 + $0x118] sm:$0xff] %v220
                %v222 = vld [vmem:[%s148 + $0x420] sm:$0xff]
                %223 = vst [vmem:[%s149 + $0x120] sm:$0xff] %v222
                %v224 = vld [vmem:[%s148 + $0x428] sm:$0xff]
                %225 = vst [vmem:[%s149 + $0x128] sm:$0xff] %v224
                %v226 = vld [vmem:[%s148 + $0x430] sm:$0xff]
                %227 = vst [vmem:[%s149 + $0x130] sm:$0xff] %v226
                %v228 = vld [vmem:[%s148 + $0x438] sm:$0xff]
                %229 = vst [vmem:[%s149 + $0x138] sm:$0xff] %v228
                %v230 = vld [vmem:[%s148 + $0x500] sm:$0xff]
                %231 = vst [vmem:[%s149 + $0x140] sm:$0xff] %v230
                %v232 = vld [vmem:[%s148 + $0x508] sm:$0xff]
                %233 = vst [vmem:[%s149 + $0x148] sm:$0xff] %v232
                %v234 = vld [vmem:[%s148 + $0x510] sm:$0xff]
                %235 = vst [vmem:[%s149 + $0x150] sm:$0xff] %v234
                %v236 = vld [vmem:[%s148 + $0x518] sm:$0xff]
                %237 = vst [vmem:[%s149 + $0x158] sm:$0xff] %v236
                %v238 = vld [vmem:[%s148 + $0x520] sm:$0xff]
                %239 = vst [vmem:[%s149 + $0x160] sm:$0xff] %v238
                %v240 = vld [vmem:[%s148 + $0x528] sm:$0xff]
                %241 = vst [vmem:[%s149 + $0x168] sm:$0xff] %v240
                %v242 = vld [vmem:[%s148 + $0x530] sm:$0xff]
                %243 = vst [vmem:[%s149 + $0x170] sm:$0xff] %v242
                %v244 = vld [vmem:[%s148 + $0x538] sm:$0xff]
                %245 = vst [vmem:[%s149 + $0x178] sm:$0xff] %v244
                %v246 = vld [vmem:[%s148 + $0x600] sm:$0xff]
                %247 = vst [vmem:[%s149 + $0x180] sm:$0xff] %v246
                %v248 = vld [vmem:[%s148 + $0x608] sm:$0xff]
                %249 = vst [vmem:[%s149 + $0x188] sm:$0xff] %v248
                %v250 = vld [vmem:[%s148 + $0x610] sm:$0xff]
                %251 = vst [vmem:[%s149 + $0x190] sm:$0xff] %v250
                %v252 = vld [vmem:[%s148 + $0x618] sm:$0xff]
                %253 = vst [vmem:[%s149 + $0x198] sm:$0xff] %v252
                %v254 = vld [vmem:[%s148 + $0x620] sm:$0xff]
                %255 = vst [vmem:[%s149 + $0x1a0] sm:$0xff] %v254
                %v256 = vld [vmem:[%s148 + $0x628] sm:$0xff]
                %257 = vst [vmem:[%s149 + $0x1a8] sm:$0xff] %v256
                %v258 = vld [vmem:[%s148 + $0x630] sm:$0xff]
                %259 = vst [vmem:[%s149 + $0x1b0] sm:$0xff] %v258
                %v260 = vld [vmem:[%s148 + $0x638] sm:$0xff]
                %261 = vst [vmem:[%s149 + $0x1b8] sm:$0xff] %v260
                %v262 = vld [vmem:[%s148 + $0x700] sm:$0xff]
                %263 = vst [vmem:[%s149 + $0x1c0] sm:$0xff] %v262
                %v264 = vld [vmem:[%s148 + $0x708] sm:$0xff]
                %265 = vst [vmem:[%s149 + $0x1c8] sm:$0xff] %v264
                %v266 = vld [vmem:[%s148 + $0x710] sm:$0xff]
                %267 = vst [vmem:[%s149 + $0x1d0] sm:$0xff] %v266
                %v268 = vld [vmem:[%s148 + $0x718] sm:$0xff]
                %269 = vst [vmem:[%s149 + $0x1d8] sm:$0xff] %v268
                %v270 = vld [vmem:[%s148 + $0x720] sm:$0xff]
                %271 = vst [vmem:[%s149 + $0x1e0] sm:$0xff] %v270
                %v272 = vld [vmem:[%s148 + $0x728] sm:$0xff]
                %273 = vst [vmem:[%s149 + $0x1e8] sm:$0xff] %v272
                %v274 = vld [vmem:[%s148 + $0x730] sm:$0xff]
                %275 = vst [vmem:[%s149 + $0x1f0] sm:$0xff] %v274
                %v276 = vld [vmem:[%s148 + $0x738] sm:$0xff]
                %277 = vst [vmem:[%s149 + $0x1f8] sm:$0xff] %v276
                %v278 = vld [vmem:[%s148 + $0x800] sm:$0xff]
                %279 = vst [vmem:[%s149 + $0x200] sm:$0xff] %v278
                %v280 = vld [vmem:[%s148 + $0x808] sm:$0xff]
                %281 = vst [vmem:[%s149 + $0x208] sm:$0xff] %v280
                %v282 = vld [vmem:[%s148 + $0x810] sm:$0xff]
                %283 = vst [vmem:[%s149 + $0x210] sm:$0xff] %v282
                %v284 = vld [vmem:[%s148 + $0x818] sm:$0xff]
                %285 = vst [vmem:[%s149 + $0x218] sm:$0xff] %v284
                %v286 = vld [vmem:[%s148 + $0x820] sm:$0xff]
                %287 = vst [vmem:[%s149 + $0x220] sm:$0xff] %v286
                %v288 = vld [vmem:[%s148 + $0x828] sm:$0xff]
                %289 = vst [vmem:[%s149 + $0x228] sm:$0xff] %v288
                %v290 = vld [vmem:[%s148 + $0x830] sm:$0xff]
                %291 = vst [vmem:[%s149 + $0x230] sm:$0xff] %v290
                %v292 = vld [vmem:[%s148 + $0x838] sm:$0xff]
                %293 = vst [vmem:[%s149 + $0x238] sm:$0xff] %v292
                %v294 = vld [vmem:[%s148 + $0x900] sm:$0xff]
                %295 = vst [vmem:[%s149 + $0x240] sm:$0xff] %v294
                %v296 = vld [vmem:[%s148 + $0x908] sm:$0xff]
                %297 = vst [vmem:[%s149 + $0x248] sm:$0xff] %v296
                %v298 = vld [vmem:[%s148 + $0x910] sm:$0xff]
                %299 = vst [vmem:[%s149 + $0x250] sm:$0xff] %v298
                %v300 = vld [vmem:[%s148 + $0x918] sm:$0xff]
                %301 = vst [vmem:[%s149 + $0x258] sm:$0xff] %v300
                %v302 = vld [vmem:[%s148 + $0x920] sm:$0xff]
                %303 = vst [vmem:[%s149 + $0x260] sm:$0xff] %v302
                %v304 = vld [vmem:[%s148 + $0x928] sm:$0xff]
                %305 = vst [vmem:[%s149 + $0x268] sm:$0xff] %v304
                %v306 = vld [vmem:[%s148 + $0x930] sm:$0xff]
                %307 = vst [vmem:[%s149 + $0x270] sm:$0xff] %v306
                %v308 = vld [vmem:[%s148 + $0x938] sm:$0xff]
                %309 = vst [vmem:[%s149 + $0x278] sm:$0xff] %v308
                %v310 = vld [vmem:[%s148 + $0xa00] sm:$0xff]
                %311 = vst [vmem:[%s149 + $0x280] sm:$0xff] %v310
                %v312 = vld [vmem:[%s148 + $0xa08] sm:$0xff]
                %313 = vst [vmem:[%s149 + $0x288] sm:$0xff] %v312
                %v314 = vld [vmem:[%s148 + $0xa10] sm:$0xff]
                %315 = vst [vmem:[%s149 + $0x290] sm:$0xff] %v314
                %v316 = vld [vmem:[%s148 + $0xa18] sm:$0xff]
                %317 = vst [vmem:[%s149 + $0x298] sm:$0xff] %v316
                %v318 = vld [vmem:[%s148 + $0xa20] sm:$0xff]
                %319 = vst [vmem:[%s149 + $0x2a0] sm:$0xff] %v318
                %v320 = vld [vmem:[%s148 + $0xa28] sm:$0xff]
                %321 = vst [vmem:[%s149 + $0x2a8] sm:$0xff] %v320
                %v322 = vld [vmem:[%s148 + $0xa30] sm:$0xff]
                %323 = vst [vmem:[%s149 + $0x2b0] sm:$0xff] %v322
                %v324 = vld [vmem:[%s148 + $0xa38] sm:$0xff]
                %325 = vst [vmem:[%s149 + $0x2b8] sm:$0xff] %v324
                %v326 = vld [vmem:[%s148 + $0xb00] sm:$0xff]
                %327 = vst [vmem:[%s149 + $0x2c0] sm:$0xff] %v326
                %v328 = vld [vmem:[%s148 + $0xb08] sm:$0xff]
                %329 = vst [vmem:[%s149 + $0x2c8] sm:$0xff] %v328
                %v330 = vld [vmem:[%s148 + $0xb10] sm:$0xff]
                %331 = vst [vmem:[%s149 + $0x2d0] sm:$0xff] %v330
                %v332 = vld [vmem:[%s148 + $0xb18] sm:$0xff]
                %333 = vst [vmem:[%s149 + $0x2d8] sm:$0xff] %v332
                %v334 = vld [vmem:[%s148 + $0xb20] sm:$0xff]
                %335 = vst [vmem:[%s149 + $0x2e0] sm:$0xff] %v334
                %v336 = vld [vmem:[%s148 + $0xb28] sm:$0xff]
                %337 = vst [vmem:[%s149 + $0x2e8] sm:$0xff] %v336
                %v338 = vld [vmem:[%s148 + $0xb30] sm:$0xff]
                %339 = vst [vmem:[%s149 + $0x2f0] sm:$0xff] %v338
                %v340 = vld [vmem:[%s148 + $0xb38] sm:$0xff]
                %341 = vst [vmem:[%s149 + $0x2f8] sm:$0xff] %v340
                %v342 = vld [vmem:[%s148 + $0xc00] sm:$0xff]
                %343 = vst [vmem:[%s149 + $0x300] sm:$0xff] %v342
                %v344 = vld [vmem:[%s148 + $0xc08] sm:$0xff]
                %345 = vst [vmem:[%s149 + $0x308] sm:$0xff] %v344
                %v346 = vld [vmem:[%s148 + $0xc10] sm:$0xff]
                %347 = vst [vmem:[%s149 + $0x310] sm:$0xff] %v346
                %v348 = vld [vmem:[%s148 + $0xc18] sm:$0xff]
                %349 = vst [vmem:[%s149 + $0x318] sm:$0xff] %v348
                %v350 = vld [vmem:[%s148 + $0xc20] sm:$0xff]
                %351 = vst [vmem:[%s149 + $0x320] sm:$0xff] %v350
                %v352 = vld [vmem:[%s148 + $0xc28] sm:$0xff]
                %353 = vst [vmem:[%s149 + $0x328] sm:$0xff] %v352
                %v354 = vld [vmem:[%s148 + $0xc30] sm:$0xff]
                %355 = vst [vmem:[%s149 + $0x330] sm:$0xff] %v354
                %v356 = vld [vmem:[%s148 + $0xc38] sm:$0xff]
                %357 = vst [vmem:[%s149 + $0x338] sm:$0xff] %v356
              $region41: #{local_dis_forward.4} parent=35 // loop_footer
                %s147 = sadd.s32 1, %s143
              $region42: #{local_dis_forward.4} parent=35 // loop_footer_branch
                %142 = sbr.rel target = $region38
              $region43: #{local_dis_forward.4} parent=35 // loop_exit
                _
            $region36: #{local_dis_forward.4} parent=31 // pred_fallthru
              _
            // Predicated region
            $region44: #{local_dis_forward.4} parent=31 // pred_check
              _
            $region45: #{local_dis_forward.4} parent=31 // pred_check_branch
              %359 = sbr.rel target = $region47
            $region46: #{local_dis_forward.4} parent=31 // pred_region
              _
            $region47: #{local_dis_forward.4} parent=31 // pred_fallthru
              _
          $region32: #{local_dis_forward.4} parent=27 // pred_fallthru
            _
          %360 = vnop
        $region28: #{local_dis_forward.4} parent=23 // pred_fallthru
          _
      $region24: #{local_dis_forward.4} parent=5 // pred_fallthru
        _
      %p361 = scmp.le.s32.totalorder 1, %s9
      %p362 = scmp.lt.s32.totalorder %s9, 5
      %p363 = pnand %p361, %p362
      %p364 = pneg %p363
      // Predicated region
      $region48: #{local_dis_forward.4} parent=5 // pred_check
        _
      $region49: #{local_dis_forward.4} parent=5 // pred_check_branch
        %366 = sbr.rel (%p363) target = $region51
      $region50: #{local_dis_forward.4} parent=5 // pred_region
        %s367 = ssub.s32 %s9, 1
        %s368 = sand.u32 %s43, 1
        %s369 = sand.u32 %s43, 1
        %s370 = smul.addr %s369, 832
        %s371 = scalar_lea.vmem [#allocation2], %s370
        // Predicated region
        $region52: #{local_dis_forward.4} parent=50 // pred_check
          %p372 = pneg %p56
        $region53: #{local_dis_forward.4} parent=50 // pred_check_branch
          %374 = sbr.rel (%p372) target = $region55
        $region54: #{local_dis_forward.4} parent=50 // pred_region
          _
        $region55: #{local_dis_forward.4} parent=50 // pred_fallthru
          _
        %p375 = pneg %p30
        %p376 = pneg %p27
        %s377 = sand.u32 %s43, 1
        %s378 = sand.u32 %s43, 1
        %s379 = smul.addr %s378, 832
        %s380 = scalar_lea.vmem [#allocation2], %s379
        %p381 = pneg %p56
        %p382 = pneg %p53
        %p383 = pneg %p77
        %p384 = pneg %p74
        %p385 = pneg %p103
        %p386 = pneg %p100
        %s387 = smul.u32 16, %s14
        %p388 = scmp.lt.s32.totalorder %s387, 63
        %s389 = scalar_select %p388, %s387, 63
        %s390 = smul.addr %s389, 4
        %s391 = scalar_lea.vmem %s3, %s390
        %s392 = smul.u32 16, %s14
        %s393 = smul.u32 16, %s14
        %p394 = scmp.lt.s32.totalorder %s393, 63
        %s395 = scalar_select %p394, %s393, 63
        %s396 = smul.addr %s395, 4
        %s397 = scalar_lea.vmem %s3, %s396
        %s398 = smul.u32 16, %s14
        %v400 = vld [vmem:[%s0] sm:$0x3]
        %v401 = vld [vmem:[%s371] sm:$0xff]
        %v402 = vld [vmem:[%s371 + $0x8] sm:$0xff]
        %v403 = vld [vmem:[%s371 + $0x10] sm:$0xff]
        %v404 = vld [vmem:[%s371 + $0x18] sm:$0xff]
        %v405 = vld [vmem:[%s371 + $0x20] sm:$0xff]
        %v406 = vld [vmem:[%s371 + $0x28] sm:$0xff]
        %v407 = vld [vmem:[%s371 + $0x30] sm:$0xff]
        %v408 = vld [vmem:[%s371 + $0x38] sm:$0xff]
        %v409 = vld [vmem:[%s371 + $0x40] sm:$0xff]
        %v410 = vld [vmem:[%s371 + $0x48] sm:$0xff]
        %v411 = vld [vmem:[%s371 + $0x50] sm:$0xff]
        %v412 = vld [vmem:[%s371 + $0x58] sm:$0xff]
        %v413 = vld [vmem:[%s371 + $0x60] sm:$0xff]
        %v414 = vld [vmem:[%s371 + $0x68] sm:$0xff]
        %v415 = vld [vmem:[%s371 + $0x70] sm:$0xff]
        %v416 = vld [vmem:[%s371 + $0x78] sm:$0xff]
        %v417 = vld [vmem:[%s371 + $0x80] sm:$0xff]
        %v418 = vld [vmem:[%s371 + $0x88] sm:$0xff]
        %v419 = vld [vmem:[%s371 + $0x90] sm:$0xff]
        %v420 = vld [vmem:[%s371 + $0x98] sm:$0xff]
        %v421 = vld [vmem:[%s371 + $0xa0] sm:$0xff]
        %v422 = vld [vmem:[%s371 + $0xa8] sm:$0xff]
        %v423 = vld [vmem:[%s371 + $0xb0] sm:$0xff]
        %v424 = vld [vmem:[%s371 + $0xb8] sm:$0xff]
        %v425 = vld [vmem:[%s371 + $0xc0] sm:$0xff]
        %v426 = vld [vmem:[%s371 + $0xc8] sm:$0xff]
        %v427 = vld [vmem:[%s371 + $0xd0] sm:$0xff]
        %v428 = vld [vmem:[%s371 + $0xd8] sm:$0xff]
        %v429 = vld [vmem:[%s371 + $0xe0] sm:$0xff]
        %v430 = vld [vmem:[%s371 + $0xe8] sm:$0xff]
        %v431 = vld [vmem:[%s371 + $0xf0] sm:$0xff]
        %v432 = vld [vmem:[%s371 + $0xf8] sm:$0xff]
        %v433 = vld [vmem:[%s371 + $0x100] sm:$0xff]
        %v434 = vld [vmem:[%s371 + $0x108] sm:$0xff]
        %v435 = vld [vmem:[%s371 + $0x110] sm:$0xff]
        %v436 = vld [vmem:[%s371 + $0x118] sm:$0xff]
        %v437 = vld [vmem:[%s371 + $0x120] sm:$0xff]
        %v438 = vld [vmem:[%s371 + $0x128] sm:$0xff]
        %v439 = vld [vmem:[%s371 + $0x130] sm:$0xff]
        %v440 = vld [vmem:[%s371 + $0x138] sm:$0xff]
        %v441 = vld [vmem:[%s371 + $0x140] sm:$0xff]
        %v442 = vld [vmem:[%s371 + $0x148] sm:$0xff]
        %v443 = vld [vmem:[%s371 + $0x150] sm:$0xff]
        %v444 = vld [vmem:[%s371 + $0x158] sm:$0xff]
        %v445 = vld [vmem:[%s371 + $0x160] sm:$0xff]
        %v446 = vld [vmem:[%s371 + $0x168] sm:$0xff]
        %v447 = vld [vmem:[%s371 + $0x170] sm:$0xff]
        %v448 = vld [vmem:[%s371 + $0x178] sm:$0xff]
        %v449 = vld [vmem:[%s371 + $0x180] sm:$0xff]
        %v450 = vld [vmem:[%s371 + $0x188] sm:$0xff]
        %v451 = vld [vmem:[%s371 + $0x190] sm:$0xff]
        %v452 = vld [vmem:[%s371 + $0x198] sm:$0xff]
        %v453 = vld [vmem:[%s371 + $0x1a0] sm:$0xff]
        %v454 = vld [vmem:[%s371 + $0x1a8] sm:$0xff]
        %v455 = vld [vmem:[%s371 + $0x1b0] sm:$0xff]
        %v456 = vld [vmem:[%s371 + $0x1b8] sm:$0xff]
        %v457 = vld [vmem:[%s371 + $0x1c0] sm:$0xff]
        %v458 = vld [vmem:[%s371 + $0x1c8] sm:$0xff]
        %v459 = vld [vmem:[%s371 + $0x1d0] sm:$0xff]
        %v460 = vld [vmem:[%s371 + $0x1d8] sm:$0xff]
        %v461 = vld [vmem:[%s371 + $0x1e0] sm:$0xff]
        %v462 = vld [vmem:[%s371 + $0x1e8] sm:$0xff]
        %v463 = vld [vmem:[%s371 + $0x1f0] sm:$0xff]
        %v464 = vld [vmem:[%s371 + $0x1f8] sm:$0xff]
        %v465 = vld [vmem:[%s371 + $0x200] sm:$0xff]
        %v466 = vld [vmem:[%s371 + $0x208] sm:$0xff]
        %v467 = vld [vmem:[%s371 + $0x210] sm:$0xff]
        %v468 = vld [vmem:[%s371 + $0x218] sm:$0xff]
        %v469 = vld [vmem:[%s371 + $0x220] sm:$0xff]
        %v470 = vld [vmem:[%s371 + $0x228] sm:$0xff]
        %v471 = vld [vmem:[%s371 + $0x230] sm:$0xff]
        %v472 = vld [vmem:[%s371 + $0x238] sm:$0xff]
        %v473 = vld [vmem:[%s371 + $0x240] sm:$0xff]
        %v474 = vld [vmem:[%s371 + $0x248] sm:$0xff]
        %v475 = vld [vmem:[%s371 + $0x250] sm:$0xff]
        %v476 = vld [vmem:[%s371 + $0x258] sm:$0xff]
        %v477 = vld [vmem:[%s371 + $0x260] sm:$0xff]
        %v478 = vld [vmem:[%s371 + $0x268] sm:$0xff]
        %v479 = vld [vmem:[%s371 + $0x270] sm:$0xff]
        %v480 = vld [vmem:[%s371 + $0x278] sm:$0xff]
        %v481 = vld [vmem:[%s371 + $0x280] sm:$0xff]
        %v482 = vld [vmem:[%s371 + $0x288] sm:$0xff]
        %v483 = vld [vmem:[%s371 + $0x290] sm:$0xff]
        %v484 = vld [vmem:[%s371 + $0x298] sm:$0xff]
        %v485 = vld [vmem:[%s371 + $0x2a0] sm:$0xff]
        %v486 = vld [vmem:[%s371 + $0x2a8] sm:$0xff]
        %v487 = vld [vmem:[%s371 + $0x2b0] sm:$0xff]
        %v488 = vld [vmem:[%s371 + $0x2b8] sm:$0xff]
        %v489 = vld [vmem:[%s371 + $0x2c0] sm:$0xff]
        %v490 = vld [vmem:[%s371 + $0x2c8] sm:$0xff]
        %v491 = vld [vmem:[%s371 + $0x2d0] sm:$0xff]
        %v492 = vld [vmem:[%s371 + $0x2d8] sm:$0xff]
        %v493 = vld [vmem:[%s371 + $0x2e0] sm:$0xff]
        %v494 = vld [vmem:[%s371 + $0x2e8] sm:$0xff]
        %v495 = vld [vmem:[%s371 + $0x2f0] sm:$0xff]
        %v496 = vld [vmem:[%s371 + $0x2f8] sm:$0xff]
        %v497 = vld [vmem:[%s371 + $0x300] sm:$0x33]
        %v498 = vld [vmem:[%s371 + $0x308] sm:$0x33]
        %v499 = vld [vmem:[%s371 + $0x310] sm:$0x33]
        %v500 = vld [vmem:[%s371 + $0x318] sm:$0x33]
        %v501 = vld [vmem:[%s371 + $0x320] sm:$0x33]
        %v502 = vld [vmem:[%s371 + $0x328] sm:$0x33]
        %v503 = vld [vmem:[%s371 + $0x330] sm:$0x33]
        %v504 = vld [vmem:[%s371 + $0x338] sm:$0x33]
        %v505 = vld [vmem:[%s2] sm:$0xf]
        %507 = vset.pattern.permute.xlu0 0
        %508 = vperm.xlu0 %507, %v505
        %v509 = vpop.permute.xlu0 %508
        %v615 = vunpack.c.l.b16 %v401
        %v616 = vunpack.c.h.b16 %v401
        %v617 = vunpack.c.l.b16 %v402
        %v618 = vunpack.c.h.b16 %v402
        %v619 = vunpack.c.l.b16 %v403
        %v620 = vunpack.c.h.b16 %v403
        %v621 = vunpack.c.l.b16 %v404
        %v622 = vunpack.c.h.b16 %v404
        %v623 = vunpack.c.l.b16 %v405
        %v624 = vunpack.c.h.b16 %v405
        %v625 = vunpack.c.l.b16 %v406
        %v626 = vunpack.c.h.b16 %v406
        %v627 = vunpack.c.l.b16 %v407
        %v628 = vunpack.c.h.b16 %v407
        %v629 = vunpack.c.l.b16 %v408
        %v630 = vunpack.c.h.b16 %v408
        %v631 = vunpack.c.l.b16 %v409
        %v632 = vunpack.c.h.b16 %v409
        %v633 = vunpack.c.l.b16 %v410
        %v634 = vunpack.c.h.b16 %v410
        %v635 = vunpack.c.l.b16 %v411
        %v636 = vunpack.c.h.b16 %v411
        %v637 = vunpack.c.l.b16 %v412
        %v638 = vunpack.c.h.b16 %v412
        %v639 = vunpack.c.l.b16 %v413
        %v640 = vunpack.c.h.b16 %v413
        %v641 = vunpack.c.l.b16 %v414
        %v642 = vunpack.c.h.b16 %v414
        %v643 = vunpack.c.l.b16 %v415
        %v644 = vunpack.c.h.b16 %v415
        %v645 = vunpack.c.l.b16 %v416
        %v646 = vunpack.c.h.b16 %v416
        %v647 = vunpack.c.l.b16 %v417
        %v648 = vunpack.c.h.b16 %v417
        %v649 = vunpack.c.l.b16 %v418
        %v650 = vunpack.c.h.b16 %v418
        %v651 = vunpack.c.l.b16 %v419
        %v652 = vunpack.c.h.b16 %v419
        %v653 = vunpack.c.l.b16 %v420
        %v654 = vunpack.c.h.b16 %v420
        %v655 = vunpack.c.l.b16 %v421
        %v656 = vunpack.c.h.b16 %v421
        %v657 = vunpack.c.l.b16 %v422
        %v658 = vunpack.c.h.b16 %v422
        %v659 = vunpack.c.l.b16 %v423
        %v660 = vunpack.c.h.b16 %v423
        %v661 = vunpack.c.l.b16 %v424
        %v662 = vunpack.c.h.b16 %v424
        %v663 = vunpack.c.l.b16 %v425
        %v664 = vunpack.c.h.b16 %v425
        %v665 = vunpack.c.l.b16 %v426
        %v666 = vunpack.c.h.b16 %v426
        %v667 = vunpack.c.l.b16 %v427
        %v668 = vunpack.c.h.b16 %v427
        %v669 = vunpack.c.l.b16 %v428
        %v670 = vunpack.c.h.b16 %v428
        %v671 = vunpack.c.l.b16 %v429
        %v672 = vunpack.c.h.b16 %v429
        %v673 = vunpack.c.l.b16 %v430
        %v674 = vunpack.c.h.b16 %v430
        %v675 = vunpack.c.l.b16 %v431
        %v676 = vunpack.c.h.b16 %v431
        %v677 = vunpack.c.l.b16 %v432
        %v678 = vunpack.c.h.b16 %v432
        %v679 = vunpack.c.l.b16 %v433
        %v680 = vunpack.c.h.b16 %v433
        %v681 = vunpack.c.l.b16 %v434
        %v682 = vunpack.c.h.b16 %v434
        %v683 = vunpack.c.l.b16 %v435
        %v684 = vunpack.c.h.b16 %v435
        %v685 = vunpack.c.l.b16 %v436
        %v686 = vunpack.c.h.b16 %v436
        %v687 = vunpack.c.l.b16 %v437
        %v688 = vunpack.c.h.b16 %v437
        %v689 = vunpack.c.l.b16 %v438
        %v690 = vunpack.c.h.b16 %v438
        %v691 = vunpack.c.l.b16 %v439
        %v692 = vunpack.c.h.b16 %v439
        %v693 = vunpack.c.l.b16 %v440
        %v694 = vunpack.c.h.b16 %v440
        %v695 = vunpack.c.l.b16 %v441
        %v696 = vunpack.c.h.b16 %v441
        %v697 = vunpack.c.l.b16 %v442
        %v698 = vunpack.c.h.b16 %v442
        %v699 = vunpack.c.l.b16 %v443
        %v700 = vunpack.c.h.b16 %v443
        %v701 = vunpack.c.l.b16 %v444
        %v702 = vunpack.c.h.b16 %v444
        %v703 = vunpack.c.l.b16 %v445
        %v704 = vunpack.c.h.b16 %v445
        %v705 = vunpack.c.l.b16 %v446
        %v706 = vunpack.c.h.b16 %v446
        %v707 = vunpack.c.l.b16 %v447
        %v708 = vunpack.c.h.b16 %v447
        %v709 = vunpack.c.l.b16 %v448
        %v710 = vunpack.c.h.b16 %v448
        %v711 = vunpack.c.l.b16 %v449
        %v712 = vunpack.c.h.b16 %v449
        %v713 = vunpack.c.l.b16 %v450
        %v714 = vunpack.c.h.b16 %v450
        %v715 = vunpack.c.l.b16 %v451
        %v716 = vunpack.c.h.b16 %v451
        %v717 = vunpack.c.l.b16 %v452
        %v718 = vunpack.c.h.b16 %v452
        %v719 = vunpack.c.l.b16 %v453
        %v720 = vunpack.c.h.b16 %v453
        %v721 = vunpack.c.l.b16 %v454
        %v722 = vunpack.c.h.b16 %v454
        %v723 = vunpack.c.l.b16 %v455
        %v724 = vunpack.c.h.b16 %v455
        %v725 = vunpack.c.l.b16 %v456
        %v726 = vunpack.c.h.b16 %v456
        %v727 = vunpack.c.l.b16 %v457
        %v728 = vunpack.c.h.b16 %v457
        %v729 = vunpack.c.l.b16 %v458
        %v730 = vunpack.c.h.b16 %v458
        %v731 = vunpack.c.l.b16 %v459
        %v732 = vunpack.c.h.b16 %v459
        %v733 = vunpack.c.l.b16 %v460
        %v734 = vunpack.c.h.b16 %v460
        %v735 = vunpack.c.l.b16 %v461
        %v736 = vunpack.c.h.b16 %v461
        %v737 = vunpack.c.l.b16 %v462
        %v738 = vunpack.c.h.b16 %v462
        %v739 = vunpack.c.l.b16 %v463
        %v740 = vunpack.c.h.b16 %v463
        %v741 = vunpack.c.l.b16 %v464
        %v742 = vunpack.c.h.b16 %v464
        %v743 = vunpack.c.l.b16 %v465
        %v744 = vunpack.c.h.b16 %v465
        %v745 = vunpack.c.l.b16 %v466
        %v746 = vunpack.c.h.b16 %v466
        %v747 = vunpack.c.l.b16 %v467
        %v748 = vunpack.c.h.b16 %v467
        %v749 = vunpack.c.l.b16 %v468
        %v750 = vunpack.c.h.b16 %v468
        %v751 = vunpack.c.l.b16 %v469
        %v752 = vunpack.c.h.b16 %v469
        %v753 = vunpack.c.l.b16 %v470
        %v754 = vunpack.c.h.b16 %v470
        %v755 = vunpack.c.l.b16 %v471
        %v756 = vunpack.c.h.b16 %v471
        %v757 = vunpack.c.l.b16 %v472
        %v758 = vunpack.c.h.b16 %v472
        %v759 = vunpack.c.l.b16 %v473
        %v760 = vunpack.c.h.b16 %v473
        %v761 = vunpack.c.l.b16 %v474
        %v762 = vunpack.c.h.b16 %v474
        %v763 = vunpack.c.l.b16 %v475
        %v764 = vunpack.c.h.b16 %v475
        %v765 = vunpack.c.l.b16 %v476
        %v766 = vunpack.c.h.b16 %v476
        %v767 = vunpack.c.l.b16 %v477
        %v768 = vunpack.c.h.b16 %v477
        %v769 = vunpack.c.l.b16 %v478
        %v770 = vunpack.c.h.b16 %v478
        %v771 = vunpack.c.l.b16 %v479
        %v772 = vunpack.c.h.b16 %v479
        %v773 = vunpack.c.l.b16 %v480
        %v774 = vunpack.c.h.b16 %v480
        %v775 = vunpack.c.l.b16 %v481
        %v776 = vunpack.c.h.b16 %v481
        %v777 = vunpack.c.l.b16 %v482
        %v778 = vunpack.c.h.b16 %v482
        %v779 = vunpack.c.l.b16 %v483
        %v780 = vunpack.c.h.b16 %v483
        %v781 = vunpack.c.l.b16 %v484
        %v782 = vunpack.c.h.b16 %v484
        %v783 = vunpack.c.l.b16 %v485
        %v784 = vunpack.c.h.b16 %v485
        %v785 = vunpack.c.l.b16 %v486
        %v786 = vunpack.c.h.b16 %v486
        %v787 = vunpack.c.l.b16 %v487
        %v788 = vunpack.c.h.b16 %v487
        %v789 = vunpack.c.l.b16 %v488
        %v790 = vunpack.c.h.b16 %v488
        %v791 = vunpack.c.l.b16 %v489
        %v792 = vunpack.c.h.b16 %v489
        %v793 = vunpack.c.l.b16 %v490
        %v794 = vunpack.c.h.b16 %v490
        %v795 = vunpack.c.l.b16 %v491
        %v796 = vunpack.c.h.b16 %v491
        %v797 = vunpack.c.l.b16 %v492
        %v798 = vunpack.c.h.b16 %v492
        %v799 = vunpack.c.l.b16 %v493
        %v800 = vunpack.c.h.b16 %v493
        %v801 = vunpack.c.l.b16 %v494
        %v802 = vunpack.c.h.b16 %v494
        %v803 = vunpack.c.l.b16 %v495
        %v804 = vunpack.c.h.b16 %v495
        %v805 = vunpack.c.l.b16 %v496
        %v806 = vunpack.c.h.b16 %v496
        %v807 = vunpack.c.l.b16 %v497
        %v808 = vunpack.c.h.b16 %v497
        %v809 = vunpack.c.l.b16 %v498
        %v810 = vunpack.c.h.b16 %v498
        %v811 = vunpack.c.l.b16 %v499
        %v812 = vunpack.c.h.b16 %v499
        %v813 = vunpack.c.l.b16 %v500
        %v814 = vunpack.c.h.b16 %v500
        %v815 = vunpack.c.l.b16 %v501
        %v816 = vunpack.c.h.b16 %v501
        %v817 = vunpack.c.l.b16 %v502
        %v818 = vunpack.c.h.b16 %v502
        %v819 = vunpack.c.l.b16 %v503
        %v820 = vunpack.c.h.b16 %v503
        %v821 = vunpack.c.l.b16 %v504
        %v822 = vunpack.c.h.b16 %v504
        %v823 = vpack.c.b16 %v631, %v615
        %v824 = vpack.c.b16 %v632, %v616
        %v825 = vpack.c.b16 %v633, %v617
        %v826 = vpack.c.b16 %v634, %v618
        %v827 = vpack.c.b16 %v635, %v619
        %v828 = vpack.c.b16 %v636, %v620
        %v829 = vpack.c.b16 %v637, %v621
        %v830 = vpack.c.b16 %v638, %v622
        %v831 = vpack.c.b16 %v639, %v623
        %v832 = vpack.c.b16 %v640, %v624
        %v833 = vpack.c.b16 %v641, %v625
        %v834 = vpack.c.b16 %v642, %v626
        %v835 = vpack.c.b16 %v643, %v627
        %v836 = vpack.c.b16 %v644, %v628
        %v837 = vpack.c.b16 %v645, %v629
        %v838 = vpack.c.b16 %v646, %v630
        %v839 = vpack.c.b16 %v663, %v647
        %v840 = vpack.c.b16 %v664, %v648
        %v841 = vpack.c.b16 %v665, %v649
        %v842 = vpack.c.b16 %v666, %v650
        %v843 = vpack.c.b16 %v667, %v651
        %v844 = vpack.c.b16 %v668, %v652
        %v845 = vpack.c.b16 %v669, %v653
        %v846 = vpack.c.b16 %v670, %v654
        %v847 = vpack.c.b16 %v671, %v655
        %v848 = vpack.c.b16 %v672, %v656
        %v849 = vpack.c.b16 %v673, %v657
        %v850 = vpack.c.b16 %v674, %v658
        %v851 = vpack.c.b16 %v675, %v659
        %v852 = vpack.c.b16 %v676, %v660
        %v853 = vpack.c.b16 %v677, %v661
        %v854 = vpack.c.b16 %v678, %v662
        %v855 = vpack.c.b16 %v695, %v679
        %v856 = vpack.c.b16 %v696, %v680
        %v857 = vpack.c.b16 %v697, %v681
        %v858 = vpack.c.b16 %v698, %v682
        %v859 = vpack.c.b16 %v699, %v683
        %v860 = vpack.c.b16 %v700, %v684
        %v861 = vpack.c.b16 %v701, %v685
        %v862 = vpack.c.b16 %v702, %v686
        %v863 = vpack.c.b16 %v703, %v687
        %v864 = vpack.c.b16 %v704, %v688
        %v865 = vpack.c.b16 %v705, %v689
        %v866 = vpack.c.b16 %v706, %v690
        %v867 = vpack.c.b16 %v707, %v691
        %v868 = vpack.c.b16 %v708, %v692
        %v869 = vpack.c.b16 %v709, %v693
        %v870 = vpack.c.b16 %v710, %v694
        %v871 = vpack.c.b16 %v727, %v711
        %v872 = vpack.c.b16 %v728, %v712
        %v873 = vpack.c.b16 %v729, %v713
        %v874 = vpack.c.b16 %v730, %v714
        %v875 = vpack.c.b16 %v731, %v715
        %v876 = vpack.c.b16 %v732, %v716
        %v877 = vpack.c.b16 %v733, %v717
        %v878 = vpack.c.b16 %v734, %v718
        %v879 = vpack.c.b16 %v735, %v719
        %v880 = vpack.c.b16 %v736, %v720
        %v881 = vpack.c.b16 %v737, %v721
        %v882 = vpack.c.b16 %v738, %v722
        %v883 = vpack.c.b16 %v739, %v723
        %v884 = vpack.c.b16 %v740, %v724
        %v885 = vpack.c.b16 %v741, %v725
        %v886 = vpack.c.b16 %v742, %v726
        %v887 = vpack.c.b16 %v759, %v743
        %v888 = vpack.c.b16 %v760, %v744
        %v889 = vpack.c.b16 %v761, %v745
        %v890 = vpack.c.b16 %v762, %v746
        %v891 = vpack.c.b16 %v763, %v747
        %v892 = vpack.c.b16 %v764, %v748
        %v893 = vpack.c.b16 %v765, %v749
        %v894 = vpack.c.b16 %v766, %v750
        %v895 = vpack.c.b16 %v767, %v751
        %v896 = vpack.c.b16 %v768, %v752
        %v897 = vpack.c.b16 %v769, %v753
        %v898 = vpack.c.b16 %v770, %v754
        %v899 = vpack.c.b16 %v771, %v755
        %v900 = vpack.c.b16 %v772, %v756
        %v901 = vpack.c.b16 %v773, %v757
        %v902 = vpack.c.b16 %v774, %v758
        %v903 = vpack.c.b16 %v791, %v775
        %v904 = vpack.c.b16 %v792, %v776
        %v905 = vpack.c.b16 %v793, %v777
        %v906 = vpack.c.b16 %v794, %v778
        %v907 = vpack.c.b16 %v795, %v779
        %v908 = vpack.c.b16 %v796, %v780
        %v909 = vpack.c.b16 %v797, %v781
        %v910 = vpack.c.b16 %v798, %v782
        %v911 = vpack.c.b16 %v799, %v783
        %v912 = vpack.c.b16 %v800, %v784
        %v913 = vpack.c.b16 %v801, %v785
        %v914 = vpack.c.b16 %v802, %v786
        %v915 = vpack.c.b16 %v803, %v787
        %v916 = vpack.c.b16 %v804, %v788
        %v917 = vpack.c.b16 %v805, %v789
        %v918 = vpack.c.b16 %v806, %v790
        %v919 = vpack.c.b16 %v807, %v807
        %v920 = vpack.c.b16 %v808, %v808
        %v921 = vpack.c.b16 %v809, %v809
        %v922 = vpack.c.b16 %v810, %v810
        %v923 = vpack.c.b16 %v811, %v811
        %v924 = vpack.c.b16 %v812, %v812
        %v925 = vpack.c.b16 %v813, %v813
        %v926 = vpack.c.b16 %v814, %v814
        %v927 = vpack.c.b16 %v815, %v815
        %v928 = vpack.c.b16 %v816, %v816
        %v929 = vpack.c.b16 %v817, %v817
        %v930 = vpack.c.b16 %v818, %v818
        %v931 = vpack.c.b16 %v819, %v819
        %v932 = vpack.c.b16 %v820, %v820
        %v933 = vpack.c.b16 %v821, %v821
        %v934 = vpack.c.b16 %v822, %v822
        %vm1031 = vcmask 818176
        %v1033 = vsel %vm1031, %v400, 0
        %vm1035 = vcmask 1041408
        %v1037 = vsel %vm1035, %v919, 0
        %v1040 = vsel %vm1035, %v920, 0
        %v1043 = vsel %vm1035, %v921, 0
        %v1046 = vsel %vm1035, %v922, 0
        %v1049 = vsel %vm1035, %v923, 0
        %v1052 = vsel %vm1035, %v924, 0
        %v1055 = vsel %vm1035, %v925, 0
        %v1058 = vsel %vm1035, %v926, 0
        %v1061 = vsel %vm1035, %v927, 0
        %v1064 = vsel %vm1035, %v928, 0
        %v1067 = vsel %vm1035, %v929, 0
        %v1070 = vsel %vm1035, %v930, 0
        %v1073 = vsel %vm1035, %v931, 0
        %v1076 = vsel %vm1035, %v932, 0
        %v1079 = vsel %vm1035, %v933, 0
        %v1082 = vsel %vm1035, %v934, 0
        %1084 = vmatprep.subr.bf16.mxu0 0
        %1085 = vmatpush1.bf16.msra.mxu0 0
        %1086 = vmatprep.subr.bf16.mxu0 %v1040
        %1087 = vmatpush1.bf16.msra.mxu0 %v1037
        %1088 = vmatprep.subr.bf16.mxu0 %v904
        %1089 = vmatpush1.bf16.msra.mxu0 %v903
        %1090 = vmatprep.subr.bf16.mxu0 %v888
        %1091 = vmatpush1.bf16.msra.mxu0 %v887
        %1092 = vmatprep.subr.bf16.mxu0 %v872
        %1093 = vmatpush1.bf16.msra.mxu0 %v871
        %1094 = vmatprep.subr.bf16.mxu0 %v856
        %1095 = vmatpush1.bf16.msra.mxu0 %v855
        %1096 = vmatprep.subr.bf16.mxu0 %v840
        %1097 = vmatpush1.bf16.msra.mxu0 %v839
        %1098 = vmatprep.subr.bf16.mxu0 %v824
        %1099 = vmatpush1.bf16.msra.mxu0 %v823
        %1100 = vmatprep.subr.bf16.mxu0 0
        %1101 = vmatpush2.bf16.msra.mxu0 0
        %1102 = vmatprep.subr.bf16.mxu0 0
        %1103 = vmatpush2.bf16.msra.mxu0 0
        %1104 = vmatprep.subr.bf16.mxu0 0
        %1105 = vmatpush2.bf16.msra.mxu0 0
        %1106 = vmatprep.subr.bf16.mxu0 0
        %1107 = vmatpush2.bf16.msra.mxu0 0
        %1108 = vmatprep.subr.bf16.mxu0 0
        %1109 = vmatpush2.bf16.msra.mxu0 0
        %1110 = vmatprep.subr.bf16.mxu0 0
        %1111 = vmatpush2.bf16.msra.mxu0 0
        %1112 = vmatprep.subr.bf16.mxu0 0
        %1113 = vmatpush2.bf16.msra.mxu0 0
        %1114 = vmatprep.subr.bf16.mxu0 0
        %1115 = vmatpush2.bf16.msra.mxu0 0
        %1116 = vmatprep.mubr.bf16.mxu0 0
        %1117 = vmatmul.mubr.bf16.gmra.mxu0 %v1033
        %v1118 = vpop.f32.mrf.mxu0
        %v1119 = vadd.f32 %v509, %v1118
        %v1120 = vpop.f32.mrf.mxu0
        %v1121 = vadd.f32 %v509, %v1120
        %v1122 = vpop.f32.mrf.mxu0
        %v1123 = vpop.f32.mrf.mxu0
        %1124 = vdwg.mxu0
        %1125 = vmatprep.subr.bf16.mxu0 0
        %1126 = vmatpush1.bf16.msra.mxu0 0
        %1127 = vmatprep.subr.bf16.mxu0 %v1046
        %1128 = vmatpush1.bf16.msra.mxu0 %v1043
        %1129 = vmatprep.subr.bf16.mxu0 %v906
        %1130 = vmatpush1.bf16.msra.mxu0 %v905
        %1131 = vmatprep.subr.bf16.mxu0 %v890
        %1132 = vmatpush1.bf16.msra.mxu0 %v889
        %1133 = vmatprep.subr.bf16.mxu0 %v874
        %1134 = vmatpush1.bf16.msra.mxu0 %v873
        %1135 = vmatprep.subr.bf16.mxu0 %v858
        %1136 = vmatpush1.bf16.msra.mxu0 %v857
        %1137 = vmatprep.subr.bf16.mxu0 %v842
        %1138 = vmatpush1.bf16.msra.mxu0 %v841
        %1139 = vmatprep.subr.bf16.mxu0 %v826
        %1140 = vmatpush1.bf16.msra.mxu0 %v825
        %1141 = vmatprep.subr.bf16.mxu0 0
        %1142 = vmatpush2.bf16.msra.mxu0 0
        %1143 = vmatprep.subr.bf16.mxu0 0
        %1144 = vmatpush2.bf16.msra.mxu0 0
        %1145 = vmatprep.subr.bf16.mxu0 0
        %1146 = vmatpush2.bf16.msra.mxu0 0
        %1147 = vmatprep.subr.bf16.mxu0 0
        %1148 = vmatpush2.bf16.msra.mxu0 0
        %1149 = vmatprep.subr.bf16.mxu0 0
        %1150 = vmatpush2.bf16.msra.mxu0 0
        %1151 = vmatprep.subr.bf16.mxu0 0
        %1152 = vmatpush2.bf16.msra.mxu0 0
        %1153 = vmatprep.subr.bf16.mxu0 0
        %1154 = vmatpush2.bf16.msra.mxu0 0
        %1155 = vmatprep.subr.bf16.mxu0 0
        %1156 = vmatpush2.bf16.msra.mxu0 0
        %1157 = vmatprep.mubr.bf16.mxu0 0
        %1158 = vmatmul.mubr.bf16.gmra.mxu0 %v1033
        %v1159 = vpop.f32.mrf.mxu0
        %v1160 = vadd.f32 %v509, %v1159
        %v1161 = vpop.f32.mrf.mxu0
        %v1162 = vadd.f32 %v509, %v1161
        %v1163 = vpop.f32.mrf.mxu0
        %v1164 = vpop.f32.mrf.mxu0
        %1165 = vdwg.mxu0
        %1166 = vmatprep.subr.bf16.mxu0 0
        %1167 = vmatpush1.bf16.msra.mxu0 0
        %1168 = vmatprep.subr.bf16.mxu0 %v1052
        %1169 = vmatpush1.bf16.msra.mxu0 %v1049
        %1170 = vmatprep.subr.bf16.mxu0 %v908
        %1171 = vmatpush1.bf16.msra.mxu0 %v907
        %1172 = vmatprep.subr.bf16.mxu0 %v892
        %1173 = vmatpush1.bf16.msra.mxu0 %v891
        %1174 = vmatprep.subr.bf16.mxu0 %v876
        %1175 = vmatpush1.bf16.msra.mxu0 %v875
        %1176 = vmatprep.subr.bf16.mxu0 %v860
        %1177 = vmatpush1.bf16.msra.mxu0 %v859
        %1178 = vmatprep.subr.bf16.mxu0 %v844
        %1179 = vmatpush1.bf16.msra.mxu0 %v843
        %1180 = vmatprep.subr.bf16.mxu0 %v828
        %1181 = vmatpush1.bf16.msra.mxu0 %v827
        %1182 = vmatprep.subr.bf16.mxu0 0
        %1183 = vmatpush2.bf16.msra.mxu0 0
        %1184 = vmatprep.subr.bf16.mxu0 0
        %1185 = vmatpush2.bf16.msra.mxu0 0
        %1186 = vmatprep.subr.bf16.mxu0 0
        %1187 = vmatpush2.bf16.msra.mxu0 0
        %1188 = vmatprep.subr.bf16.mxu0 0
        %1189 = vmatpush2.bf16.msra.mxu0 0
        %1190 = vmatprep.subr.bf16.mxu0 0
        %1191 = vmatpush2.bf16.msra.mxu0 0
        %1192 = vmatprep.subr.bf16.mxu0 0
        %1193 = vmatpush2.bf16.msra.mxu0 0
        %1194 = vmatprep.subr.bf16.mxu0 0
        %1195 = vmatpush2.bf16.msra.mxu0 0
        %1196 = vmatprep.subr.bf16.mxu0 0
        %1197 = vmatpush2.bf16.msra.mxu0 0
        %1198 = vmatprep.mubr.bf16.mxu0 0
        %1199 = vmatmul.mubr.bf16.gmra.mxu0 %v1033
        %v1200 = vpop.f32.mrf.mxu0
        %v1201 = vadd.f32 %v509, %v1200
        %v1202 = vpop.f32.mrf.mxu0
        %v1203 = vadd.f32 %v509, %v1202
        %v1204 = vpop.f32.mrf.mxu0
        %v1205 = vpop.f32.mrf.mxu0
        %1206 = vdwg.mxu0
        %1207 = vmatprep.subr.bf16.mxu0 0
        %1208 = vmatpush1.bf16.msra.mxu0 0
        %1209 = vmatprep.subr.bf16.mxu0 %v1058
        %1210 = vmatpush1.bf16.msra.mxu0 %v1055
        %1211 = vmatprep.subr.bf16.mxu0 %v910
        %1212 = vmatpush1.bf16.msra.mxu0 %v909
        %1213 = vmatprep.subr.bf16.mxu0 %v894
        %1214 = vmatpush1.bf16.msra.mxu0 %v893
        %1215 = vmatprep.subr.bf16.mxu0 %v878
        %1216 = vmatpush1.bf16.msra.mxu0 %v877
        %1217 = vmatprep.subr.bf16.mxu0 %v862
        %1218 = vmatpush1.bf16.msra.mxu0 %v861
        %1219 = vmatprep.subr.bf16.mxu0 %v846
        %1220 = vmatpush1.bf16.msra.mxu0 %v845
        %1221 = vmatprep.subr.bf16.mxu0 %v830
        %1222 = vmatpush1.bf16.msra.mxu0 %v829
        %1223 = vmatprep.subr.bf16.mxu0 0
        %1224 = vmatpush2.bf16.msra.mxu0 0
        %1225 = vmatprep.subr.bf16.mxu0 0
        %1226 = vmatpush2.bf16.msra.mxu0 0
        %1227 = vmatprep.subr.bf16.mxu0 0
        %1228 = vmatpush2.bf16.msra.mxu0 0
        %1229 = vmatprep.subr.bf16.mxu0 0
        %1230 = vmatpush2.bf16.msra.mxu0 0
        %1231 = vmatprep.subr.bf16.mxu0 0
        %1232 = vmatpush2.bf16.msra.mxu0 0
        %1233 = vmatprep.subr.bf16.mxu0 0
        %1234 = vmatpush2.bf16.msra.mxu0 0
        %1235 = vmatprep.subr.bf16.mxu0 0
        %1236 = vmatpush2.bf16.msra.mxu0 0
        %1237 = vmatprep.subr.bf16.mxu0 0
        %1238 = vmatpush2.bf16.msra.mxu0 0
        %1239 = vmatprep.mubr.bf16.mxu0 0
        %1240 = vmatmul.mubr.bf16.gmra.mxu0 %v1033
        %v1241 = vpop.f32.mrf.mxu0
        %v1242 = vadd.f32 %v509, %v1241
        %v1243 = vpop.f32.mrf.mxu0
        %v1244 = vadd.f32 %v509, %v1243
        %v1245 = vpop.f32.mrf.mxu0
        %v1246 = vpop.f32.mrf.mxu0
        %1247 = vdwg.mxu0
        %1248 = vmatprep.subr.bf16.mxu0 0
        %1249 = vmatpush1.bf16.msra.mxu0 0
        %1250 = vmatprep.subr.bf16.mxu0 %v1064
        %1251 = vmatpush1.bf16.msra.mxu0 %v1061
        %1252 = vmatprep.subr.bf16.mxu0 %v912
        %1253 = vmatpush1.bf16.msra.mxu0 %v911
        %1254 = vmatprep.subr.bf16.mxu0 %v896
        %1255 = vmatpush1.bf16.msra.mxu0 %v895
        %1256 = vmatprep.subr.bf16.mxu0 %v880
        %1257 = vmatpush1.bf16.msra.mxu0 %v879
        %1258 = vmatprep.subr.bf16.mxu0 %v864
        %1259 = vmatpush1.bf16.msra.mxu0 %v863
        %1260 = vmatprep.subr.bf16.mxu0 %v848
        %1261 = vmatpush1.bf16.msra.mxu0 %v847
        %1262 = vmatprep.subr.bf16.mxu0 %v832
        %1263 = vmatpush1.bf16.msra.mxu0 %v831
        %1264 = vmatprep.subr.bf16.mxu0 0
        %1265 = vmatpush2.bf16.msra.mxu0 0
        %1266 = vmatprep.subr.bf16.mxu0 0
        %1267 = vmatpush2.bf16.msra.mxu0 0
        %1268 = vmatprep.subr.bf16.mxu0 0
        %1269 = vmatpush2.bf16.msra.mxu0 0
        %1270 = vmatprep.subr.bf16.mxu0 0
        %1271 = vmatpush2.bf16.msra.mxu0 0
        %1272 = vmatprep.subr.bf16.mxu0 0
        %1273 = vmatpush2.bf16.msra.mxu0 0
        %1274 = vmatprep.subr.bf16.mxu0 0
        %1275 = vmatpush2.bf16.msra.mxu0 0
        %1276 = vmatprep.subr.bf16.mxu0 0
        %1277 = vmatpush2.bf16.msra.mxu0 0
        %1278 = vmatprep.subr.bf16.mxu0 0
        %1279 = vmatpush2.bf16.msra.mxu0 0
        %1280 = vmatprep.mubr.bf16.mxu0 0
        %1281 = vmatmul.mubr.bf16.gmra.mxu0 %v1033
        %v1282 = vpop.f32.mrf.mxu0
        %v1283 = vadd.f32 %v509, %v1282
        %v1284 = vpop.f32.mrf.mxu0
        %v1285 = vadd.f32 %v509, %v1284
        %v1286 = vpop.f32.mrf.mxu0
        %v1287 = vpop.f32.mrf.mxu0
        %1288 = vdwg.mxu0
        %1289 = vmatprep.subr.bf16.mxu0 0
        %1290 = vmatpush1.bf16.msra.mxu0 0
        %1291 = vmatprep.subr.bf16.mxu0 %v1070
        %1292 = vmatpush1.bf16.msra.mxu0 %v1067
        %1293 = vmatprep.subr.bf16.mxu0 %v914
        %1294 = vmatpush1.bf16.msra.mxu0 %v913
        %1295 = vmatprep.subr.bf16.mxu0 %v898
        %1296 = vmatpush1.bf16.msra.mxu0 %v897
        %1297 = vmatprep.subr.bf16.mxu0 %v882
        %1298 = vmatpush1.bf16.msra.mxu0 %v881
        %1299 = vmatprep.subr.bf16.mxu0 %v866
        %1300 = vmatpush1.bf16.msra.mxu0 %v865
        %1301 = vmatprep.subr.bf16.mxu0 %v850
        %1302 = vmatpush1.bf16.msra.mxu0 %v849
        %1303 = vmatprep.subr.bf16.mxu0 %v834
        %1304 = vmatpush1.bf16.msra.mxu0 %v833
        %1305 = vmatprep.subr.bf16.mxu0 0
        %1306 = vmatpush2.bf16.msra.mxu0 0
        %1307 = vmatprep.subr.bf16.mxu0 0
        %1308 = vmatpush2.bf16.msra.mxu0 0
        %1309 = vmatprep.subr.bf16.mxu0 0
        %1310 = vmatpush2.bf16.msra.mxu0 0
        %1311 = vmatprep.subr.bf16.mxu0 0
        %1312 = vmatpush2.bf16.msra.mxu0 0
        %1313 = vmatprep.subr.bf16.mxu0 0
        %1314 = vmatpush2.bf16.msra.mxu0 0
        %1315 = vmatprep.subr.bf16.mxu0 0
        %1316 = vmatpush2.bf16.msra.mxu0 0
        %1317 = vmatprep.subr.bf16.mxu0 0
        %1318 = vmatpush2.bf16.msra.mxu0 0
        %1319 = vmatprep.subr.bf16.mxu0 0
        %1320 = vmatpush2.bf16.msra.mxu0 0
        %1321 = vmatprep.mubr.bf16.mxu0 0
        %1322 = vmatmul.mubr.bf16.gmra.mxu0 %v1033
        %v1323 = vpop.f32.mrf.mxu0
        %v1324 = vadd.f32 %v509, %v1323
        %v1325 = vpop.f32.mrf.mxu0
        %v1326 = vadd.f32 %v509, %v1325
        %v1327 = vpop.f32.mrf.mxu0
        %v1328 = vpop.f32.mrf.mxu0
        %1329 = vdwg.mxu0
        %1330 = vmatprep.subr.bf16.mxu0 0
        %1331 = vmatpush1.bf16.msra.mxu0 0
        %1332 = vmatprep.subr.bf16.mxu0 %v1076
        %1333 = vmatpush1.bf16.msra.mxu0 %v1073
        %1334 = vmatprep.subr.bf16.mxu0 %v916
        %1335 = vmatpush1.bf16.msra.mxu0 %v915
        %1336 = vmatprep.subr.bf16.mxu0 %v900
        %1337 = vmatpush1.bf16.msra.mxu0 %v899
        %1338 = vmatprep.subr.bf16.mxu0 %v884
        %1339 = vmatpush1.bf16.msra.mxu0 %v883
        %1340 = vmatprep.subr.bf16.mxu0 %v868
        %1341 = vmatpush1.bf16.msra.mxu0 %v867
        %1342 = vmatprep.subr.bf16.mxu0 %v852
        %1343 = vmatpush1.bf16.msra.mxu0 %v851
        %1344 = vmatprep.subr.bf16.mxu0 %v836
        %1345 = vmatpush1.bf16.msra.mxu0 %v835
        %1346 = vmatprep.subr.bf16.mxu0 0
        %1347 = vmatpush2.bf16.msra.mxu0 0
        %1348 = vmatprep.subr.bf16.mxu0 0
        %1349 = vmatpush2.bf16.msra.mxu0 0
        %1350 = vmatprep.subr.bf16.mxu0 0
        %1351 = vmatpush2.bf16.msra.mxu0 0
        %1352 = vmatprep.subr.bf16.mxu0 0
        %1353 = vmatpush2.bf16.msra.mxu0 0
        %1354 = vmatprep.subr.bf16.mxu0 0
        %1355 = vmatpush2.bf16.msra.mxu0 0
        %1356 = vmatprep.subr.bf16.mxu0 0
        %1357 = vmatpush2.bf16.msra.mxu0 0
        %1358 = vmatprep.subr.bf16.mxu0 0
        %1359 = vmatpush2.bf16.msra.mxu0 0
        %1360 = vmatprep.subr.bf16.mxu0 0
        %1361 = vmatpush2.bf16.msra.mxu0 0
        %1362 = vmatprep.mubr.bf16.mxu0 0
        %1363 = vmatmul.mubr.bf16.gmra.mxu0 %v1033
        %v1364 = vpop.f32.mrf.mxu0
        %v1365 = vadd.f32 %v509, %v1364
        %v1366 = vpop.f32.mrf.mxu0
        %v1367 = vadd.f32 %v509, %v1366
        %v1368 = vpop.f32.mrf.mxu0
        %v1369 = vpop.f32.mrf.mxu0
        %1370 = vdwg.mxu0
        %1371 = vmatprep.subr.bf16.mxu0 0
        %1372 = vmatpush1.bf16.msra.mxu0 0
        %1373 = vmatprep.subr.bf16.mxu0 %v1082
        %1374 = vmatpush1.bf16.msra.mxu0 %v1079
        %1375 = vmatprep.subr.bf16.mxu0 %v918
        %1376 = vmatpush1.bf16.msra.mxu0 %v917
        %1377 = vmatprep.subr.bf16.mxu0 %v902
        %1378 = vmatpush1.bf16.msra.mxu0 %v901
        %1379 = vmatprep.subr.bf16.mxu0 %v886
        %1380 = vmatpush1.bf16.msra.mxu0 %v885
        %1381 = vmatprep.subr.bf16.mxu0 %v870
        %1382 = vmatpush1.bf16.msra.mxu0 %v869
        %1383 = vmatprep.subr.bf16.mxu0 %v854
        %1384 = vmatpush1.bf16.msra.mxu0 %v853
        %1385 = vmatprep.subr.bf16.mxu0 %v838
        %1386 = vmatpush1.bf16.msra.mxu0 %v837
        %1387 = vmatprep.subr.bf16.mxu0 0
        %1388 = vmatpush2.bf16.msra.mxu0 0
        %1389 = vmatprep.subr.bf16.mxu0 0
        %1390 = vmatpush2.bf16.msra.mxu0 0
        %1391 = vmatprep.subr.bf16.mxu0 0
        %1392 = vmatpush2.bf16.msra.mxu0 0
        %1393 = vmatprep.subr.bf16.mxu0 0
        %1394 = vmatpush2.bf16.msra.mxu0 0
        %1395 = vmatprep.subr.bf16.mxu0 0
        %1396 = vmatpush2.bf16.msra.mxu0 0
        %1397 = vmatprep.subr.bf16.mxu0 0
        %1398 = vmatpush2.bf16.msra.mxu0 0
        %1399 = vmatprep.subr.bf16.mxu0 0
        %1400 = vmatpush2.bf16.msra.mxu0 0
        %1401 = vmatprep.subr.bf16.mxu0 0
        %1402 = vmatpush2.bf16.msra.mxu0 0
        %1403 = vmatprep.mubr.bf16.mxu0 0
        %1404 = vmatmul.mubr.bf16.gmra.mxu0 %v1033
        %v1405 = vpop.f32.mrf.mxu0
        %v1406 = vadd.f32 %v509, %v1405
        %v1407 = vpop.f32.mrf.mxu0
        %v1408 = vadd.f32 %v509, %v1407
        %v1409 = vpop.f32.mrf.mxu0
        %v1410 = vpop.f32.mrf.mxu0
        %1411 = vdwg.mxu0
        %vm1412 = vcmp.gt.f32.partialorder %v1119, 0.0
        %vm1413 = vcmp.gt.f32.partialorder %v1121, 0.0
        %vm1414 = vcmp.gt.f32.partialorder %v1160, 0.0
        %vm1415 = vcmp.gt.f32.partialorder %v1162, 0.0
        %vm1416 = vcmp.gt.f32.partialorder %v1201, 0.0
        %vm1417 = vcmp.gt.f32.partialorder %v1203, 0.0
        %vm1418 = vcmp.gt.f32.partialorder %v1242, 0.0
        %vm1419 = vcmp.gt.f32.partialorder %v1244, 0.0
        %vm1420 = vcmp.gt.f32.partialorder %v1283, 0.0
        %vm1421 = vcmp.gt.f32.partialorder %v1285, 0.0
        %vm1422 = vcmp.gt.f32.partialorder %v1324, 0.0
        %vm1423 = vcmp.gt.f32.partialorder %v1326, 0.0
        %vm1424 = vcmp.gt.f32.partialorder %v1365, 0.0
        %vm1425 = vcmp.gt.f32.partialorder %v1367, 0.0
        %vm1426 = vcmp.gt.f32.partialorder %v1406, 0.0
        %vm1427 = vcmp.gt.f32.partialorder %v1408, 0.0
        %v1428 = vmul.f32 %v1119, 0.2
        %v1429 = vmul.f32 %v1121, 0.2
        %v1430 = vmul.f32 %v1160, 0.2
        %v1431 = vmul.f32 %v1162, 0.2
        %v1432 = vmul.f32 %v1201, 0.2
        %v1433 = vmul.f32 %v1203, 0.2
        %v1434 = vmul.f32 %v1242, 0.2
        %v1435 = vmul.f32 %v1244, 0.2
        %v1436 = vmul.f32 %v1283, 0.2
        %v1437 = vmul.f32 %v1285, 0.2
        %v1438 = vmul.f32 %v1324, 0.2
        %v1439 = vmul.f32 %v1326, 0.2
        %v1440 = vmul.f32 %v1365, 0.2
        %v1441 = vmul.f32 %v1367, 0.2
        %v1442 = vmul.f32 %v1406, 0.2
        %v1443 = vmul.f32 %v1408, 0.2
        %v1444 = vsel %vm1412, %v1119, %v1428
        %v1445 = vsel %vm1413, %v1121, %v1429
        %v1446 = vsel %vm1414, %v1160, %v1430
        %v1447 = vsel %vm1415, %v1162, %v1431
        %v1448 = vsel %vm1416, %v1201, %v1432
        %v1449 = vsel %vm1417, %v1203, %v1433
        %v1450 = vsel %vm1418, %v1242, %v1434
        %v1451 = vsel %vm1419, %v1244, %v1435
        %v1452 = vsel %vm1420, %v1283, %v1436
        %v1453 = vsel %vm1421, %v1285, %v1437
        %v1454 = vsel %vm1422, %v1324, %v1438
        %v1455 = vsel %vm1423, %v1326, %v1439
        %v1456 = vsel %vm1424, %v1365, %v1440
        %v1457 = vsel %vm1425, %v1367, %v1441
        %v1458 = vsel %vm1426, %v1406, %v1442
        %v1459 = vsel %vm1427, %v1408, %v1443
        %v1476 = vcombine.low %v1444, %v1445
        %v1477 = vcombine.low %v1446, %v1447
        %v1478 = vcombine.low %v1448, %v1449
        %v1479 = vcombine.low %v1450, %v1451
        %v1480 = vcombine.low %v1452, %v1453
        %v1481 = vcombine.low %v1454, %v1455
        %v1482 = vcombine.low %v1456, %v1457
        %v1483 = vcombine.low %v1458, %v1459
        %1492 = vst [vmem:[%s397] sm:$0xff] %v1476
        %1493 = vst [vmem:[%s397 + $0x8] sm:$0xff] %v1477
        %1494 = vst [vmem:[%s397 + $0x10] sm:$0xff] %v1478
        %1495 = vst [vmem:[%s397 + $0x18] sm:$0xff] %v1479
        %1496 = vst [vmem:[%s397 + $0x20] sm:$0xff] %v1480
        %1497 = vst [vmem:[%s397 + $0x28] sm:$0xff] %v1481
        %1498 = vst [vmem:[%s397 + $0x30] sm:$0xff] %v1482
        %1499 = vst [vmem:[%s397 + $0x38] sm:$0xff] %v1483
        %s1500 = smul.u32 16, %s14
        %p1501 = scmp.lt.s32.totalorder %s1500, 63
        %s1502 = scalar_select %p1501, %s1500, 63
        %s1503 = smul.addr %s1502, 4
        %s1504 = scalar_lea.vmem %s3, %s1503
        // Predicated region
        $region56: #{local_dis_forward.4} parent=50 // pred_check
          %p1505 = pneg %p100
        $region57: #{local_dis_forward.4} parent=50 // pred_check_branch
          %1507 = sbr.rel (%p1505) target = $region59
        $region58: #{local_dis_forward.4} parent=50 // pred_region
          %s1508 = smul.u32 16, %s14
        $region59: #{local_dis_forward.4} parent=50 // pred_fallthru
          _
      $region51: #{local_dis_forward.4} parent=5 // pred_fallthru
        _
      %p1509 = scmp.le.s32.totalorder 2, %s9
      // Predicated region
      $region60: #{local_dis_forward.4} parent=5 // pred_check
        %p1510 = pneg %p1509
      $region61: #{local_dis_forward.4} parent=5 // pred_check_branch
        %1512 = sbr.rel (%p1510) target = $region63
      $region62: #{local_dis_forward.4} parent=5 // pred_region
        %s1513 = ssub.s32 %s9, 2
        // Predicated region
        $region64: #{local_dis_forward.4} parent=62 // pred_check
          %p1514 = pneg %p106
        $region65: #{local_dis_forward.4} parent=62 // pred_check_branch
          %1516 = sbr.rel (%p1514) target = $region67
        $region66: #{local_dis_forward.4} parent=62 // pred_region
          %s1517 = smul.u32 16, %s15
          %p1518 = scmp.lt.s32.totalorder %s1517, 63
          %s1519 = scalar_select %p1518, %s1517, 63
          %s1520 = smul.addr %s1519, 4
          %s1521 = scalar_lea.vmem %s3, %s1520
        $region67: #{local_dis_forward.4} parent=62 // pred_fallthru
          _
      $region63: #{local_dis_forward.4} parent=5 // pred_fallthru
        _
    $region6: #{local_dis_forward.4} parent=1 // loop_footer
      %s13 = sadd.s32 1, %s9
    $region7: #{local_dis_forward.4} parent=1 // loop_footer_branch
      %8 = sbr.rel target = $region3
    $region8: #{local_dis_forward.4} parent=1 // loop_exit
      _

// kernel: local_dis_forward.5
$region0: #{local_dis_forward.5}
  #allocation0 [shape = 'u32[]', space=smem, size = 0x4, offset = 0x4, fixed_abs, tag = 'smem constant byte address 0x4 - core index']
  #allocation1 [shape = 'u32[144,128]{1,0:T(1,128)}', space=vmem, size = 0x12000, scoped, tag = 'internal scratch']
  %s0 = inlined_call_operand.vmem [shape: bf16[8,100], index: 0, kind: input, shape index: {}]
  %s1 = inlined_call_operand.vmem [shape: bf16[100,2048], index: 1, kind: input, shape index: {}]
  %s2 = inlined_call_operand.vmem [shape: f32[8,1], index: 2, kind: input, shape index: {}]
  %s3 = inlined_call_operand.vmem [shape: f32[8,2048], index: 3, kind: output, shape index: {}]
  %s4 = sld [smem:[#allocation0]]
  $region68: #{local_dis_forward.5} parent=0
    _
  %s6 = ssub.s32 1, %s4
  %s7 = scalar_select 0, %s6, %s4
  $region1: #{local_dis_forward.5} parent=0
    #allocation2 [shape = 'u8[425984]{0}', space=vmem, size = 0x68000, scoped, tag = 'input window, operand 1']
    loop: start=0, step=1, limit=4
    $region2: #{local_dis_forward.5} parent=1 // loop_pre_header
      _
    $region3: #{local_dis_forward.5} parent=1 // loop_header
      %s9 = sphi 0, %s13
      %p10 = scmp.ge.s32.totalorder %s9, 4
      %s17 = sphi 0, %s17
      %s19 = sphi 0, %s17
      %s20 = sphi 0, %s19
      %s34 = sphi 0, %s20
      %s40 = sphi 0, %s42
      %s43 = sphi 0, %s40
      %s44 = sphi 0, %s43
      %s60 = sphi 0, %s44
      %s64 = sphi 0, %s64
      %s66 = sphi 0, %s64
      %s67 = sphi 0, %s66
      %s81 = sphi 0, %s67
      %s87 = sphi 0, %s89
      %s90 = sphi 0, %s87
      %s91 = sphi 0, %s90
      %s107 = sphi 0, %s91
    $region4: #{local_dis_forward.5} parent=1 // loop_header_branch
      %12 = sbr.rel (%p10) target = $region8
    $region5: #{local_dis_forward.5} parent=1 // loop_body
      %s14 = ssub.s32 %s9, 1
      %s15 = ssub.s32 %s9, 2
      %s16 = sadd.s32 %s9, 1
      %s18 = sadd.s32 %s17, 1
      %p21 = scmp.eq.s32.totalorder %s9, 1
      %p22 = scmp.ne.s32.totalorder %s17, %s19
      %p23 = scmp.eq.s32.totalorder %s9, 0
      %p24 = por %p22, %p23
      %p25 = scmp.ne.s32.totalorder %s17, %s19
      %p26 = scmp.eq.s32.totalorder %s14, 1
      %p27 = por %p25, %p26
      %p28 = scmp.ne.s32.totalorder %s19, %s20
      %p29 = scmp.eq.s32.totalorder %s14, 0
      %p30 = por %p28, %p29
      %p31 = scmp.ne.s32.totalorder %s19, %s20
      %p32 = scmp.eq.s32.totalorder %s15, 1
      %p33 = por %p31, %p32
      %p35 = scmp.ne.s32.totalorder %s20, %s34
      %p36 = scmp.eq.s32.totalorder %s15, 0
      %p37 = por %p35, %p36
      %s38 = ssub.s32 %s9, %s16
      %p39 = scmp.eq.s32.totalorder %s38, 0
      %s41 = sadd.s32 %s40, 1
      %s42 = scalar_select %p39, %s40, %s41
      %p45 = pneg %p39
      %p46 = scmp.eq.s32.totalorder %s9, 1
      %p47 = por %p45, %p46
      %p48 = scmp.ne.s32.totalorder %s40, %s43
      %p49 = scmp.eq.s32.totalorder %s9, 0
      %p50 = por %p48, %p49
      %p51 = scmp.ne.s32.totalorder %s40, %s43
      %p52 = scmp.eq.s32.totalorder %s14, 1
      %p53 = por %p51, %p52
      %p54 = scmp.ne.s32.totalorder %s43, %s44
      %p55 = scmp.eq.s32.totalorder %s14, 0
      %p56 = por %p54, %p55
      %p57 = scmp.ne.s32.totalorder %s43, %s44
      %p58 = scmp.eq.s32.totalorder %s15, 1
      %p59 = por %p57, %p58
      %p61 = scmp.ne.s32.totalorder %s44, %s60
      %p62 = scmp.eq.s32.totalorder %s15, 0
      %p63 = por %p61, %p62
      %s65 = sadd.s32 %s64, 1
      %p68 = scmp.eq.s32.totalorder %s9, 1
      %p69 = scmp.ne.s32.totalorder %s64, %s66
      %p70 = scmp.eq.s32.totalorder %s9, 0
      %p71 = por %p69, %p70
      %p72 = scmp.ne.s32.totalorder %s64, %s66
      %p73 = scmp.eq.s32.totalorder %s14, 1
      %p74 = por %p72, %p73
      %p75 = scmp.ne.s32.totalorder %s66, %s67
      %p76 = scmp.eq.s32.totalorder %s14, 0
      %p77 = por %p75, %p76
      %p78 = scmp.ne.s32.totalorder %s66, %s67
      %p79 = scmp.eq.s32.totalorder %s15, 1
      %p80 = por %p78, %p79
      %p82 = scmp.ne.s32.totalorder %s67, %s81
      %p83 = scmp.eq.s32.totalorder %s15, 0
      %p84 = por %p82, %p83
      %s85 = ssub.s32 %s9, %s16
      %p86 = scmp.eq.s32.totalorder %s85, 0
      %s88 = sadd.s32 %s87, 1
      %s89 = scalar_select %p86, %s87, %s88
      %p92 = pneg %p86
      %p93 = scmp.eq.s32.totalorder %s9, 1
      %p94 = por %p92, %p93
      %p95 = scmp.ne.s32.totalorder %s87, %s90
      %p96 = scmp.eq.s32.totalorder %s9, 0
      %p97 = por %p95, %p96
      %p98 = scmp.ne.s32.totalorder %s87, %s90
      %p99 = scmp.eq.s32.totalorder %s14, 1
      %p100 = por %p98, %p99
      %p101 = scmp.ne.s32.totalorder %s90, %s91
      %p102 = scmp.eq.s32.totalorder %s14, 0
      %p103 = por %p101, %p102
      %p104 = scmp.ne.s32.totalorder %s90, %s91
      %p105 = scmp.eq.s32.totalorder %s15, 1
      %p106 = por %p104, %p105
      %p108 = scmp.ne.s32.totalorder %s91, %s107
      %p109 = scmp.eq.s32.totalorder %s15, 0
      %p110 = por %p108, %p109
      %p111 = scmp.le.s32.totalorder 1, %s9
      %p112 = scmp.lt.s32.totalorder %s9, 3
      %p113 = pnand %p111, %p112
      %p114 = pneg %p113
      // Predicated region
      $region9: #{local_dis_forward.5} parent=5 // pred_check
        _
      $region10: #{local_dis_forward.5} parent=5 // pred_check_branch
        %116 = sbr.rel (%p113) target = $region12
      $region11: #{local_dis_forward.5} parent=5 // pred_region
        %s117 = ssub.s32 %s9, 1
        // Predicated region
        $region13: #{local_dis_forward.5} parent=11 // pred_check
          %p118 = pneg %p30
        $region14: #{local_dis_forward.5} parent=11 // pred_check_branch
          %120 = sbr.rel (%p118) target = $region16
        $region15: #{local_dis_forward.5} parent=11 // pred_region
          _
        $region16: #{local_dis_forward.5} parent=11 // pred_fallthru
          _
        // Predicated region
        $region17: #{local_dis_forward.5} parent=11 // pred_check
          %p121 = pneg %p77
        $region18: #{local_dis_forward.5} parent=11 // pred_check_branch
          %123 = sbr.rel (%p121) target = $region20
        $region19: #{local_dis_forward.5} parent=11 // pred_region
          _
        $region20: #{local_dis_forward.5} parent=11 // pred_fallthru
          _
      $region12: #{local_dis_forward.5} parent=5 // pred_fallthru
        _
      %p124 = scmp.lt.s32.totalorder %s9, 2
      // Predicated region
      $region21: #{local_dis_forward.5} parent=5 // pred_check
        %p125 = pneg %p124
      $region22: #{local_dis_forward.5} parent=5 // pred_check_branch
        %127 = sbr.rel (%p125) target = $region24
      $region23: #{local_dis_forward.5} parent=5 // pred_region
        // Predicated region
        $region25: #{local_dis_forward.5} parent=23 // pred_check
          %p128 = pneg %p50
        $region26: #{local_dis_forward.5} parent=23 // pred_check_branch
          %130 = sbr.rel (%p128) target = $region28
        $region27: #{local_dis_forward.5} parent=23 // pred_region
          %s131 = sand.u32 %s40, 1
          %s132 = sand.u32 %s40, 1
          %s133 = smul.addr %s132, 416
          %s134 = scalar_lea.vmem [#allocation2], %s133
          %s135 = smul.u32 8, %s9
          %s136 = smul.addr %s135, 4
          %s137 = scalar_lea.vmem %s1, %s136
          // Predicated region
          $region29: #{local_dis_forward.5} parent=27 // pred_check
            _
          $region30: #{local_dis_forward.5} parent=27 // pred_check_branch
            %139 = sbr.rel (0) target = $region32
          $region31: #{local_dis_forward.5} parent=27 // pred_region
            // Predicated region
            $region33: #{local_dis_forward.5} parent=31 // pred_check
              _
            $region34: #{local_dis_forward.5} parent=31 // pred_check_branch
              %141 = sbr.rel (0) target = $region36
            $region35: #{local_dis_forward.5} parent=31 // pred_region
              loop: start=0, step=1, limit=1
              $region37: #{local_dis_forward.5} parent=35 // loop_pre_header
                _
              $region38: #{local_dis_forward.5} parent=35 // loop_header
                %s143 = sphi 0, %s147
                %p144 = scmp.ge.s32.totalorder %s143, 1
                %s148 = sphi %s137, %s137
                %s149 = sphi %s134, %s134
              $region39: #{local_dis_forward.5} parent=35 // loop_header_branch
                %146 = sbr.rel (%p144) target = $region43
              $region40: #{local_dis_forward.5} parent=35 // loop_body
                %v150 = vld [vmem:[%s148] sm:$0xff]
                %151 = vst [vmem:[%s149] sm:$0xff] %v150
                %v152 = vld [vmem:[%s148 + $0x8] sm:$0xff]
                %153 = vst [vmem:[%s149 + $0x8] sm:$0xff] %v152
                %v154 = vld [vmem:[%s148 + $0x10] sm:$0xff]
                %155 = vst [vmem:[%s149 + $0x10] sm:$0xff] %v154
                %v156 = vld [vmem:[%s148 + $0x18] sm:$0xff]
                %157 = vst [vmem:[%s149 + $0x18] sm:$0xff] %v156
                %v158 = vld [vmem:[%s148 + $0x40] sm:$0xff]
                %159 = vst [vmem:[%s149 + $0x20] sm:$0xff] %v158
                %v160 = vld [vmem:[%s148 + $0x48] sm:$0xff]
                %161 = vst [vmem:[%s149 + $0x28] sm:$0xff] %v160
                %v162 = vld [vmem:[%s148 + $0x50] sm:$0xff]
                %163 = vst [vmem:[%s149 + $0x30] sm:$0xff] %v162
                %v164 = vld [vmem:[%s148 + $0x58] sm:$0xff]
                %165 = vst [vmem:[%s149 + $0x38] sm:$0xff] %v164
                %v166 = vld [vmem:[%s148 + $0x80] sm:$0xff]
                %167 = vst [vmem:[%s149 + $0x40] sm:$0xff] %v166
                %v168 = vld [vmem:[%s148 + $0x88] sm:$0xff]
                %169 = vst [vmem:[%s149 + $0x48] sm:$0xff] %v168
                %v170 = vld [vmem:[%s148 + $0x90] sm:$0xff]
                %171 = vst [vmem:[%s149 + $0x50] sm:$0xff] %v170
                %v172 = vld [vmem:[%s148 + $0x98] sm:$0xff]
                %173 = vst [vmem:[%s149 + $0x58] sm:$0xff] %v172
                %v174 = vld [vmem:[%s148 + $0xc0] sm:$0xff]
                %175 = vst [vmem:[%s149 + $0x60] sm:$0xff] %v174
                %v176 = vld [vmem:[%s148 + $0xc8] sm:$0xff]
                %177 = vst [vmem:[%s149 + $0x68] sm:$0xff] %v176
                %v178 = vld [vmem:[%s148 + $0xd0] sm:$0xff]
                %179 = vst [vmem:[%s149 + $0x70] sm:$0xff] %v178
                %v180 = vld [vmem:[%s148 + $0xd8] sm:$0xff]
                %181 = vst [vmem:[%s149 + $0x78] sm:$0xff] %v180
                %v182 = vld [vmem:[%s148 + $0x100] sm:$0xff]
                %183 = vst [vmem:[%s149 + $0x80] sm:$0xff] %v182
                %v184 = vld [vmem:[%s148 + $0x108] sm:$0xff]
                %185 = vst [vmem:[%s149 + $0x88] sm:$0xff] %v184
                %v186 = vld [vmem:[%s148 + $0x110] sm:$0xff]
                %187 = vst [vmem:[%s149 + $0x90] sm:$0xff] %v186
                %v188 = vld [vmem:[%s148 + $0x118] sm:$0xff]
                %189 = vst [vmem:[%s149 + $0x98] sm:$0xff] %v188
                %v190 = vld [vmem:[%s148 + $0x140] sm:$0xff]
                %191 = vst [vmem:[%s149 + $0xa0] sm:$0xff] %v190
                %v192 = vld [vmem:[%s148 + $0x148] sm:$0xff]
                %193 = vst [vmem:[%s149 + $0xa8] sm:$0xff] %v192
                %v194 = vld [vmem:[%s148 + $0x150] sm:$0xff]
                %195 = vst [vmem:[%s149 + $0xb0] sm:$0xff] %v194
                %v196 = vld [vmem:[%s148 + $0x158] sm:$0xff]
                %197 = vst [vmem:[%s149 + $0xb8] sm:$0xff] %v196
                %v198 = vld [vmem:[%s148 + $0x180] sm:$0xff]
                %199 = vst [vmem:[%s149 + $0xc0] sm:$0xff] %v198
                %v200 = vld [vmem:[%s148 + $0x188] sm:$0xff]
                %201 = vst [vmem:[%s149 + $0xc8] sm:$0xff] %v200
                %v202 = vld [vmem:[%s148 + $0x190] sm:$0xff]
                %203 = vst [vmem:[%s149 + $0xd0] sm:$0xff] %v202
                %v204 = vld [vmem:[%s148 + $0x198] sm:$0xff]
                %205 = vst [vmem:[%s149 + $0xd8] sm:$0xff] %v204
                %v206 = vld [vmem:[%s148 + $0x1c0] sm:$0xff]
                %207 = vst [vmem:[%s149 + $0xe0] sm:$0xff] %v206
                %v208 = vld [vmem:[%s148 + $0x1c8] sm:$0xff]
                %209 = vst [vmem:[%s149 + $0xe8] sm:$0xff] %v208
                %v210 = vld [vmem:[%s148 + $0x1d0] sm:$0xff]
                %211 = vst [vmem:[%s149 + $0xf0] sm:$0xff] %v210
                %v212 = vld [vmem:[%s148 + $0x1d8] sm:$0xff]
                %213 = vst [vmem:[%s149 + $0xf8] sm:$0xff] %v212
                %v214 = vld [vmem:[%s148 + $0x200] sm:$0xff]
                %215 = vst [vmem:[%s149 + $0x100] sm:$0xff] %v214
                %v216 = vld [vmem:[%s148 + $0x208] sm:$0xff]
                %217 = vst [vmem:[%s149 + $0x108] sm:$0xff] %v216
                %v218 = vld [vmem:[%s148 + $0x210] sm:$0xff]
                %219 = vst [vmem:[%s149 + $0x110] sm:$0xff] %v218
                %v220 = vld [vmem:[%s148 + $0x218] sm:$0xff]
                %221 = vst [vmem:[%s149 + $0x118] sm:$0xff] %v220
                %v222 = vld [vmem:[%s148 + $0x240] sm:$0xff]
                %223 = vst [vmem:[%s149 + $0x120] sm:$0xff] %v222
                %v224 = vld [vmem:[%s148 + $0x248] sm:$0xff]
                %225 = vst [vmem:[%s149 + $0x128] sm:$0xff] %v224
                %v226 = vld [vmem:[%s148 + $0x250] sm:$0xff]
                %227 = vst [vmem:[%s149 + $0x130] sm:$0xff] %v226
                %v228 = vld [vmem:[%s148 + $0x258] sm:$0xff]
                %229 = vst [vmem:[%s149 + $0x138] sm:$0xff] %v228
                %v230 = vld [vmem:[%s148 + $0x280] sm:$0xff]
                %231 = vst [vmem:[%s149 + $0x140] sm:$0xff] %v230
                %v232 = vld [vmem:[%s148 + $0x288] sm:$0xff]
                %233 = vst [vmem:[%s149 + $0x148] sm:$0xff] %v232
                %v234 = vld [vmem:[%s148 + $0x290] sm:$0xff]
                %235 = vst [vmem:[%s149 + $0x150] sm:$0xff] %v234
                %v236 = vld [vmem:[%s148 + $0x298] sm:$0xff]
                %237 = vst [vmem:[%s149 + $0x158] sm:$0xff] %v236
                %v238 = vld [vmem:[%s148 + $0x2c0] sm:$0xff]
                %239 = vst [vmem:[%s149 + $0x160] sm:$0xff] %v238
                %v240 = vld [vmem:[%s148 + $0x2c8] sm:$0xff]
                %241 = vst [vmem:[%s149 + $0x168] sm:$0xff] %v240
                %v242 = vld [vmem:[%s148 + $0x2d0] sm:$0xff]
                %243 = vst [vmem:[%s149 + $0x170] sm:$0xff] %v242
                %v244 = vld [vmem:[%s148 + $0x2d8] sm:$0xff]
                %245 = vst [vmem:[%s149 + $0x178] sm:$0xff] %v244
                %v246 = vld [vmem:[%s148 + $0x300] sm:$0xff]
                %247 = vst [vmem:[%s149 + $0x180] sm:$0xff] %v246
                %v248 = vld [vmem:[%s148 + $0x308] sm:$0xff]
                %249 = vst [vmem:[%s149 + $0x188] sm:$0xff] %v248
                %v250 = vld [vmem:[%s148 + $0x310] sm:$0xff]
                %251 = vst [vmem:[%s149 + $0x190] sm:$0xff] %v250
                %v252 = vld [vmem:[%s148 + $0x318] sm:$0xff]
                %253 = vst [vmem:[%s149 + $0x198] sm:$0xff] %v252
              $region41: #{local_dis_forward.5} parent=35 // loop_footer
                %s147 = sadd.s32 1, %s143
              $region42: #{local_dis_forward.5} parent=35 // loop_footer_branch
                %142 = sbr.rel target = $region38
              $region43: #{local_dis_forward.5} parent=35 // loop_exit
                _
            $region36: #{local_dis_forward.5} parent=31 // pred_fallthru
              _
            // Predicated region
            $region44: #{local_dis_forward.5} parent=31 // pred_check
              _
            $region45: #{local_dis_forward.5} parent=31 // pred_check_branch
              %255 = sbr.rel target = $region47
            $region46: #{local_dis_forward.5} parent=31 // pred_region
              _
            $region47: #{local_dis_forward.5} parent=31 // pred_fallthru
              _
          $region32: #{local_dis_forward.5} parent=27 // pred_fallthru
            _
          %256 = vnop
        $region28: #{local_dis_forward.5} parent=23 // pred_fallthru
          _
      $region24: #{local_dis_forward.5} parent=5 // pred_fallthru
        _
      %p257 = scmp.le.s32.totalorder 1, %s9
      %p258 = scmp.lt.s32.totalorder %s9, 3
      %p259 = pnand %p257, %p258
      %p260 = pneg %p259
      // Predicated region
      $region48: #{local_dis_forward.5} parent=5 // pred_check
        _
      $region49: #{local_dis_forward.5} parent=5 // pred_check_branch
        %262 = sbr.rel (%p259) target = $region51
      $region50: #{local_dis_forward.5} parent=5 // pred_region
        %s263 = ssub.s32 %s9, 1
        %s264 = sand.u32 %s43, 1
        %s265 = sand.u32 %s43, 1
        %s266 = smul.addr %s265, 416
        %s267 = scalar_lea.vmem [#allocation2], %s266
        // Predicated region
        $region52: #{local_dis_forward.5} parent=50 // pred_check
          %p268 = pneg %p56
        $region53: #{local_dis_forward.5} parent=50 // pred_check_branch
          %270 = sbr.rel (%p268) target = $region55
        $region54: #{local_dis_forward.5} parent=50 // pred_region
          _
        $region55: #{local_dis_forward.5} parent=50 // pred_fallthru
          _
        %p271 = pneg %p30
        %p272 = pneg %p27
        %s273 = sand.u32 %s43, 1
        %s274 = sand.u32 %s43, 1
        %s275 = smul.addr %s274, 416
        %s276 = scalar_lea.vmem [#allocation2], %s275
        %p277 = pneg %p56
        %p278 = pneg %p53
        %p279 = pneg %p77
        %p280 = pneg %p74
        %p281 = pneg %p103
        %p282 = pneg %p100
        %s283 = smul.u32 8, %s14
        %p284 = scmp.lt.s32.totalorder %s283, 15
        %s285 = scalar_select %p284, %s283, 15
        %s286 = smul.addr %s285, 8
        %s287 = scalar_lea.vmem %s3, %s286
        %s288 = smul.u32 8, %s14
        %s289 = smul.u32 8, %s14
        %p290 = scmp.lt.s32.totalorder %s289, 15
        %s291 = scalar_select %p290, %s289, 15
        %s292 = smul.addr %s291, 8
        %s293 = scalar_lea.vmem %s3, %s292
        %s294 = smul.u32 8, %s14
        %v296 = vld [vmem:[%s0] sm:$0xf]
        %v297 = vld [vmem:[%s267] sm:$0xff]
        %v298 = vld [vmem:[%s267 + $0x8] sm:$0xff]
        %v299 = vld [vmem:[%s267 + $0x10] sm:$0xff]
        %v300 = vld [vmem:[%s267 + $0x18] sm:$0xff]
        %v301 = vld [vmem:[%s267 + $0x20] sm:$0xff]
        %v302 = vld [vmem:[%s267 + $0x28] sm:$0xff]
        %v303 = vld [vmem:[%s267 + $0x30] sm:$0xff]
        %v304 = vld [vmem:[%s267 + $0x38] sm:$0xff]
        %v305 = vld [vmem:[%s267 + $0x40] sm:$0xff]
        %v306 = vld [vmem:[%s267 + $0x48] sm:$0xff]
        %v307 = vld [vmem:[%s267 + $0x50] sm:$0xff]
        %v308 = vld [vmem:[%s267 + $0x58] sm:$0xff]
        %v309 = vld [vmem:[%s267 + $0x60] sm:$0xff]
        %v310 = vld [vmem:[%s267 + $0x68] sm:$0xff]
        %v311 = vld [vmem:[%s267 + $0x70] sm:$0xff]
        %v312 = vld [vmem:[%s267 + $0x78] sm:$0xff]
        %v313 = vld [vmem:[%s267 + $0x80] sm:$0xff]
        %v314 = vld [vmem:[%s267 + $0x88] sm:$0xff]
        %v315 = vld [vmem:[%s267 + $0x90] sm:$0xff]
        %v316 = vld [vmem:[%s267 + $0x98] sm:$0xff]
        %v317 = vld [vmem:[%s267 + $0xa0] sm:$0xff]
        %v318 = vld [vmem:[%s267 + $0xa8] sm:$0xff]
        %v319 = vld [vmem:[%s267 + $0xb0] sm:$0xff]
        %v320 = vld [vmem:[%s267 + $0xb8] sm:$0xff]
        %v321 = vld [vmem:[%s267 + $0xc0] sm:$0xff]
        %v322 = vld [vmem:[%s267 + $0xc8] sm:$0xff]
        %v323 = vld [vmem:[%s267 + $0xd0] sm:$0xff]
        %v324 = vld [vmem:[%s267 + $0xd8] sm:$0xff]
        %v325 = vld [vmem:[%s267 + $0xe0] sm:$0xff]
        %v326 = vld [vmem:[%s267 + $0xe8] sm:$0xff]
        %v327 = vld [vmem:[%s267 + $0xf0] sm:$0xff]
        %v328 = vld [vmem:[%s267 + $0xf8] sm:$0xff]
        %v329 = vld [vmem:[%s267 + $0x100] sm:$0xff]
        %v330 = vld [vmem:[%s267 + $0x108] sm:$0xff]
        %v331 = vld [vmem:[%s267 + $0x110] sm:$0xff]
        %v332 = vld [vmem:[%s267 + $0x118] sm:$0xff]
        %v333 = vld [vmem:[%s267 + $0x120] sm:$0xff]
        %v334 = vld [vmem:[%s267 + $0x128] sm:$0xff]
        %v335 = vld [vmem:[%s267 + $0x130] sm:$0xff]
        %v336 = vld [vmem:[%s267 + $0x138] sm:$0xff]
        %v337 = vld [vmem:[%s267 + $0x140] sm:$0xff]
        %v338 = vld [vmem:[%s267 + $0x148] sm:$0xff]
        %v339 = vld [vmem:[%s267 + $0x150] sm:$0xff]
        %v340 = vld [vmem:[%s267 + $0x158] sm:$0xff]
        %v341 = vld [vmem:[%s267 + $0x160] sm:$0xff]
        %v342 = vld [vmem:[%s267 + $0x168] sm:$0xff]
        %v343 = vld [vmem:[%s267 + $0x170] sm:$0xff]
        %v344 = vld [vmem:[%s267 + $0x178] sm:$0xff]
        %v345 = vld [vmem:[%s267 + $0x180] sm:$0x33]
        %v346 = vld [vmem:[%s267 + $0x188] sm:$0x33]
        %v347 = vld [vmem:[%s267 + $0x190] sm:$0x33]
        %v348 = vld [vmem:[%s267 + $0x198] sm:$0x33]
        %v349 = vld [vmem:[%s2] sm:$0xff]
        %351 = vset.pattern.permute.xlu0 0
        %352 = vperm.xlu0 %351, %v349
        %v353 = vpop.permute.xlu0 %352
        %v407 = vunpack.c.l.b16 %v297
        %v408 = vunpack.c.h.b16 %v297
        %v409 = vunpack.c.l.b16 %v298
        %v410 = vunpack.c.h.b16 %v298
        %v411 = vunpack.c.l.b16 %v299
        %v412 = vunpack.c.h.b16 %v299
        %v413 = vunpack.c.l.b16 %v300
        %v414 = vunpack.c.h.b16 %v300
        %v415 = vunpack.c.l.b16 %v301
        %v416 = vunpack.c.h.b16 %v301
        %v417 = vunpack.c.l.b16 %v302
        %v418 = vunpack.c.h.b16 %v302
        %v419 = vunpack.c.l.b16 %v303
        %v420 = vunpack.c.h.b16 %v303
        %v421 = vunpack.c.l.b16 %v304
        %v422 = vunpack.c.h.b16 %v304
        %v423 = vunpack.c.l.b16 %v305
        %v424 = vunpack.c.h.b16 %v305
        %v425 = vunpack.c.l.b16 %v306
        %v426 = vunpack.c.h.b16 %v306
        %v427 = vunpack.c.l.b16 %v307
        %v428 = vunpack.c.h.b16 %v307
        %v429 = vunpack.c.l.b16 %v308
        %v430 = vunpack.c.h.b16 %v308
        %v431 = vunpack.c.l.b16 %v309
        %v432 = vunpack.c.h.b16 %v309
        %v433 = vunpack.c.l.b16 %v310
        %v434 = vunpack.c.h.b16 %v310
        %v435 = vunpack.c.l.b16 %v311
        %v436 = vunpack.c.h.b16 %v311
        %v437 = vunpack.c.l.b16 %v312
        %v438 = vunpack.c.h.b16 %v312
        %v439 = vunpack.c.l.b16 %v313
        %v440 = vunpack.c.h.b16 %v313
        %v441 = vunpack.c.l.b16 %v314
        %v442 = vunpack.c.h.b16 %v314
        %v443 = vunpack.c.l.b16 %v315
        %v444 = vunpack.c.h.b16 %v315
        %v445 = vunpack.c.l.b16 %v316
        %v446 = vunpack.c.h.b16 %v316
        %v447 = vunpack.c.l.b16 %v317
        %v448 = vunpack.c.h.b16 %v317
        %v449 = vunpack.c.l.b16 %v318
        %v450 = vunpack.c.h.b16 %v318
        %v451 = vunpack.c.l.b16 %v319
        %v452 = vunpack.c.h.b16 %v319
        %v453 = vunpack.c.l.b16 %v320
        %v454 = vunpack.c.h.b16 %v320
        %v455 = vunpack.c.l.b16 %v321
        %v456 = vunpack.c.h.b16 %v321
        %v457 = vunpack.c.l.b16 %v322
        %v458 = vunpack.c.h.b16 %v322
        %v459 = vunpack.c.l.b16 %v323
        %v460 = vunpack.c.h.b16 %v323
        %v461 = vunpack.c.l.b16 %v324
        %v462 = vunpack.c.h.b16 %v324
        %v463 = vunpack.c.l.b16 %v325
        %v464 = vunpack.c.h.b16 %v325
        %v465 = vunpack.c.l.b16 %v326
        %v466 = vunpack.c.h.b16 %v326
        %v467 = vunpack.c.l.b16 %v327
        %v468 = vunpack.c.h.b16 %v327
        %v469 = vunpack.c.l.b16 %v328
        %v470 = vunpack.c.h.b16 %v328
        %v471 = vunpack.c.l.b16 %v329
        %v472 = vunpack.c.h.b16 %v329
        %v473 = vunpack.c.l.b16 %v330
        %v474 = vunpack.c.h.b16 %v330
        %v475 = vunpack.c.l.b16 %v331
        %v476 = vunpack.c.h.b16 %v331
        %v477 = vunpack.c.l.b16 %v332
        %v478 = vunpack.c.h.b16 %v332
        %v479 = vunpack.c.l.b16 %v333
        %v480 = vunpack.c.h.b16 %v333
        %v481 = vunpack.c.l.b16 %v334
        %v482 = vunpack.c.h.b16 %v334
        %v483 = vunpack.c.l.b16 %v335
        %v484 = vunpack.c.h.b16 %v335
        %v485 = vunpack.c.l.b16 %v336
        %v486 = vunpack.c.h.b16 %v336
        %v487 = vunpack.c.l.b16 %v337
        %v488 = vunpack.c.h.b16 %v337
        %v489 = vunpack.c.l.b16 %v338
        %v490 = vunpack.c.h.b16 %v338
        %v491 = vunpack.c.l.b16 %v339
        %v492 = vunpack.c.h.b16 %v339
        %v493 = vunpack.c.l.b16 %v340
        %v494 = vunpack.c.h.b16 %v340
        %v495 = vunpack.c.l.b16 %v341
        %v496 = vunpack.c.h.b16 %v341
        %v497 = vunpack.c.l.b16 %v342
        %v498 = vunpack.c.h.b16 %v342
        %v499 = vunpack.c.l.b16 %v343
        %v500 = vunpack.c.h.b16 %v343
        %v501 = vunpack.c.l.b16 %v344
        %v502 = vunpack.c.h.b16 %v344
        %v503 = vunpack.c.l.b16 %v345
        %v504 = vunpack.c.h.b16 %v345
        %v505 = vunpack.c.l.b16 %v346
        %v506 = vunpack.c.h.b16 %v346
        %v507 = vunpack.c.l.b16 %v347
        %v508 = vunpack.c.h.b16 %v347
        %v509 = vunpack.c.l.b16 %v348
        %v510 = vunpack.c.h.b16 %v348
        %v511 = vpack.c.b16 %v415, %v407
        %v512 = vpack.c.b16 %v416, %v408
        %v513 = vpack.c.b16 %v417, %v409
        %v514 = vpack.c.b16 %v418, %v410
        %v515 = vpack.c.b16 %v419, %v411
        %v516 = vpack.c.b16 %v420, %v412
        %v517 = vpack.c.b16 %v421, %v413
        %v518 = vpack.c.b16 %v422, %v414
        %v519 = vpack.c.b16 %v431, %v423
        %v520 = vpack.c.b16 %v432, %v424
        %v521 = vpack.c.b16 %v433, %v425
        %v522 = vpack.c.b16 %v434, %v426
        %v523 = vpack.c.b16 %v435, %v427
        %v524 = vpack.c.b16 %v436, %v428
        %v525 = vpack.c.b16 %v437, %v429
        %v526 = vpack.c.b16 %v438, %v430
        %v527 = vpack.c.b16 %v447, %v439
        %v528 = vpack.c.b16 %v448, %v440
        %v529 = vpack.c.b16 %v449, %v441
        %v530 = vpack.c.b16 %v450, %v442
        %v531 = vpack.c.b16 %v451, %v443
        %v532 = vpack.c.b16 %v452, %v444
        %v533 = vpack.c.b16 %v453, %v445
        %v534 = vpack.c.b16 %v454, %v446
        %v535 = vpack.c.b16 %v463, %v455
        %v536 = vpack.c.b16 %v464, %v456
        %v537 = vpack.c.b16 %v465, %v457
        %v538 = vpack.c.b16 %v466, %v458
        %v539 = vpack.c.b16 %v467, %v459
        %v540 = vpack.c.b16 %v468, %v460
        %v541 = vpack.c.b16 %v469, %v461
        %v542 = vpack.c.b16 %v470, %v462
        %v543 = vpack.c.b16 %v479, %v471
        %v544 = vpack.c.b16 %v480, %v472
        %v545 = vpack.c.b16 %v481, %v473
        %v546 = vpack.c.b16 %v482, %v474
        %v547 = vpack.c.b16 %v483, %v475
        %v548 = vpack.c.b16 %v484, %v476
        %v549 = vpack.c.b16 %v485, %v477
        %v550 = vpack.c.b16 %v486, %v478
        %v551 = vpack.c.b16 %v495, %v487
        %v552 = vpack.c.b16 %v496, %v488
        %v553 = vpack.c.b16 %v497, %v489
        %v554 = vpack.c.b16 %v498, %v490
        %v555 = vpack.c.b16 %v499, %v491
        %v556 = vpack.c.b16 %v500, %v492
        %v557 = vpack.c.b16 %v501, %v493
        %v558 = vpack.c.b16 %v502, %v494
        %v559 = vpack.c.b16 %v503, %v503
        %v560 = vpack.c.b16 %v504, %v504
        %v561 = vpack.c.b16 %v505, %v505
        %v562 = vpack.c.b16 %v506, %v506
        %v563 = vpack.c.b16 %v507, %v507
        %v564 = vpack.c.b16 %v508, %v508
        %v565 = vpack.c.b16 %v509, %v509
        %v566 = vpack.c.b16 %v510, %v510
        %vm615 = vcmask 818176
        %v617 = vsel %vm615, %v296, 0
        %vm619 = vcmask 1041408
        %v621 = vsel %vm619, %v559, 0
        %v624 = vsel %vm619, %v560, 0
        %v627 = vsel %vm619, %v561, 0
        %v630 = vsel %vm619, %v562, 0
        %v633 = vsel %vm619, %v563, 0
        %v636 = vsel %vm619, %v564, 0
        %v639 = vsel %vm619, %v565, 0
        %v642 = vsel %vm619, %v566, 0
        %644 = vmatprep.subr.bf16.mxu0 0
        %645 = vmatpush1.bf16.msra.mxu0 0
        %646 = vmatprep.subr.bf16.mxu0 %v624
        %647 = vmatpush1.bf16.msra.mxu0 %v621
        %648 = vmatprep.subr.bf16.mxu0 %v552
        %649 = vmatpush1.bf16.msra.mxu0 %v551
        %650 = vmatprep.subr.bf16.mxu0 %v544
        %651 = vmatpush1.bf16.msra.mxu0 %v543
        %652 = vmatprep.subr.bf16.mxu0 %v536
        %653 = vmatpush1.bf16.msra.mxu0 %v535
        %654 = vmatprep.subr.bf16.mxu0 %v528
        %655 = vmatpush1.bf16.msra.mxu0 %v527
        %656 = vmatprep.subr.bf16.mxu0 %v520
        %657 = vmatpush1.bf16.msra.mxu0 %v519
        %658 = vmatprep.subr.bf16.mxu0 %v512
        %659 = vmatpush1.bf16.msra.mxu0 %v511
        %660 = vmatprep.subr.bf16.mxu0 0
        %661 = vmatpush2.bf16.msra.mxu0 0
        %662 = vmatprep.subr.bf16.mxu0 0
        %663 = vmatpush2.bf16.msra.mxu0 0
        %664 = vmatprep.subr.bf16.mxu0 0
        %665 = vmatpush2.bf16.msra.mxu0 0
        %666 = vmatprep.subr.bf16.mxu0 0
        %667 = vmatpush2.bf16.msra.mxu0 0
        %668 = vmatprep.subr.bf16.mxu0 0
        %669 = vmatpush2.bf16.msra.mxu0 0
        %670 = vmatprep.subr.bf16.mxu0 0
        %671 = vmatpush2.bf16.msra.mxu0 0
        %672 = vmatprep.subr.bf16.mxu0 0
        %673 = vmatpush2.bf16.msra.mxu0 0
        %674 = vmatprep.subr.bf16.mxu0 0
        %675 = vmatpush2.bf16.msra.mxu0 0
        %676 = vmatprep.mubr.bf16.mxu0 0
        %677 = vmatmul.mubr.bf16.gmra.mxu0 %v617
        %v678 = vpop.f32.mrf.mxu0
        %v679 = vadd.f32 %v353, %v678
        %v680 = vpop.f32.mrf.mxu0
        %v681 = vadd.f32 %v353, %v680
        %v682 = vpop.f32.mrf.mxu0
        %v683 = vpop.f32.mrf.mxu0
        %684 = vdwg.mxu0
        %685 = vmatprep.subr.bf16.mxu0 0
        %686 = vmatpush1.bf16.msra.mxu0 0
        %687 = vmatprep.subr.bf16.mxu0 %v630
        %688 = vmatpush1.bf16.msra.mxu0 %v627
        %689 = vmatprep.subr.bf16.mxu0 %v554
        %690 = vmatpush1.bf16.msra.mxu0 %v553
        %691 = vmatprep.subr.bf16.mxu0 %v546
        %692 = vmatpush1.bf16.msra.mxu0 %v545
        %693 = vmatprep.subr.bf16.mxu0 %v538
        %694 = vmatpush1.bf16.msra.mxu0 %v537
        %695 = vmatprep.subr.bf16.mxu0 %v530
        %696 = vmatpush1.bf16.msra.mxu0 %v529
        %697 = vmatprep.subr.bf16.mxu0 %v522
        %698 = vmatpush1.bf16.msra.mxu0 %v521
        %699 = vmatprep.subr.bf16.mxu0 %v514
        %700 = vmatpush1.bf16.msra.mxu0 %v513
        %701 = vmatprep.subr.bf16.mxu0 0
        %702 = vmatpush2.bf16.msra.mxu0 0
        %703 = vmatprep.subr.bf16.mxu0 0
        %704 = vmatpush2.bf16.msra.mxu0 0
        %705 = vmatprep.subr.bf16.mxu0 0
        %706 = vmatpush2.bf16.msra.mxu0 0
        %707 = vmatprep.subr.bf16.mxu0 0
        %708 = vmatpush2.bf16.msra.mxu0 0
        %709 = vmatprep.subr.bf16.mxu0 0
        %710 = vmatpush2.bf16.msra.mxu0 0
        %711 = vmatprep.subr.bf16.mxu0 0
        %712 = vmatpush2.bf16.msra.mxu0 0
        %713 = vmatprep.subr.bf16.mxu0 0
        %714 = vmatpush2.bf16.msra.mxu0 0
        %715 = vmatprep.subr.bf16.mxu0 0
        %716 = vmatpush2.bf16.msra.mxu0 0
        %717 = vmatprep.mubr.bf16.mxu0 0
        %718 = vmatmul.mubr.bf16.gmra.mxu0 %v617
        %v719 = vpop.f32.mrf.mxu0
        %v720 = vadd.f32 %v353, %v719
        %v721 = vpop.f32.mrf.mxu0
        %v722 = vadd.f32 %v353, %v721
        %v723 = vpop.f32.mrf.mxu0
        %v724 = vpop.f32.mrf.mxu0
        %725 = vdwg.mxu0
        %726 = vmatprep.subr.bf16.mxu0 0
        %727 = vmatpush1.bf16.msra.mxu0 0
        %728 = vmatprep.subr.bf16.mxu0 %v636
        %729 = vmatpush1.bf16.msra.mxu0 %v633
        %730 = vmatprep.subr.bf16.mxu0 %v556
        %731 = vmatpush1.bf16.msra.mxu0 %v555
        %732 = vmatprep.subr.bf16.mxu0 %v548
        %733 = vmatpush1.bf16.msra.mxu0 %v547
        %734 = vmatprep.subr.bf16.mxu0 %v540
        %735 = vmatpush1.bf16.msra.mxu0 %v539
        %736 = vmatprep.subr.bf16.mxu0 %v532
        %737 = vmatpush1.bf16.msra.mxu0 %v531
        %738 = vmatprep.subr.bf16.mxu0 %v524
        %739 = vmatpush1.bf16.msra.mxu0 %v523
        %740 = vmatprep.subr.bf16.mxu0 %v516
        %741 = vmatpush1.bf16.msra.mxu0 %v515
        %742 = vmatprep.subr.bf16.mxu0 0
        %743 = vmatpush2.bf16.msra.mxu0 0
        %744 = vmatprep.subr.bf16.mxu0 0
        %745 = vmatpush2.bf16.msra.mxu0 0
        %746 = vmatprep.subr.bf16.mxu0 0
        %747 = vmatpush2.bf16.msra.mxu0 0
        %748 = vmatprep.subr.bf16.mxu0 0
        %749 = vmatpush2.bf16.msra.mxu0 0
        %750 = vmatprep.subr.bf16.mxu0 0
        %751 = vmatpush2.bf16.msra.mxu0 0
        %752 = vmatprep.subr.bf16.mxu0 0
        %753 = vmatpush2.bf16.msra.mxu0 0
        %754 = vmatprep.subr.bf16.mxu0 0
        %755 = vmatpush2.bf16.msra.mxu0 0
        %756 = vmatprep.subr.bf16.mxu0 0
        %757 = vmatpush2.bf16.msra.mxu0 0
        %758 = vmatprep.mubr.bf16.mxu0 0
        %759 = vmatmul.mubr.bf16.gmra.mxu0 %v617
        %v760 = vpop.f32.mrf.mxu0
        %v761 = vadd.f32 %v353, %v760
        %v762 = vpop.f32.mrf.mxu0
        %v763 = vadd.f32 %v353, %v762
        %v764 = vpop.f32.mrf.mxu0
        %v765 = vpop.f32.mrf.mxu0
        %766 = vdwg.mxu0
        %767 = vmatprep.subr.bf16.mxu0 0
        %768 = vmatpush1.bf16.msra.mxu0 0
        %769 = vmatprep.subr.bf16.mxu0 %v642
        %770 = vmatpush1.bf16.msra.mxu0 %v639
        %771 = vmatprep.subr.bf16.mxu0 %v558
        %772 = vmatpush1.bf16.msra.mxu0 %v557
        %773 = vmatprep.subr.bf16.mxu0 %v550
        %774 = vmatpush1.bf16.msra.mxu0 %v549
        %775 = vmatprep.subr.bf16.mxu0 %v542
        %776 = vmatpush1.bf16.msra.mxu0 %v541
        %777 = vmatprep.subr.bf16.mxu0 %v534
        %778 = vmatpush1.bf16.msra.mxu0 %v533
        %779 = vmatprep.subr.bf16.mxu0 %v526
        %780 = vmatpush1.bf16.msra.mxu0 %v525
        %781 = vmatprep.subr.bf16.mxu0 %v518
        %782 = vmatpush1.bf16.msra.mxu0 %v517
        %783 = vmatprep.subr.bf16.mxu0 0
        %784 = vmatpush2.bf16.msra.mxu0 0
        %785 = vmatprep.subr.bf16.mxu0 0
        %786 = vmatpush2.bf16.msra.mxu0 0
        %787 = vmatprep.subr.bf16.mxu0 0
        %788 = vmatpush2.bf16.msra.mxu0 0
        %789 = vmatprep.subr.bf16.mxu0 0
        %790 = vmatpush2.bf16.msra.mxu0 0
        %791 = vmatprep.subr.bf16.mxu0 0
        %792 = vmatpush2.bf16.msra.mxu0 0
        %793 = vmatprep.subr.bf16.mxu0 0
        %794 = vmatpush2.bf16.msra.mxu0 0
        %795 = vmatprep.subr.bf16.mxu0 0
        %796 = vmatpush2.bf16.msra.mxu0 0
        %797 = vmatprep.subr.bf16.mxu0 0
        %798 = vmatpush2.bf16.msra.mxu0 0
        %799 = vmatprep.mubr.bf16.mxu0 0
        %800 = vmatmul.mubr.bf16.gmra.mxu0 %v617
        %v801 = vpop.f32.mrf.mxu0
        %v802 = vadd.f32 %v353, %v801
        %v803 = vpop.f32.mrf.mxu0
        %v804 = vadd.f32 %v353, %v803
        %v805 = vpop.f32.mrf.mxu0
        %v806 = vpop.f32.mrf.mxu0
        %807 = vdwg.mxu0
        %vm808 = vcmp.gt.f32.partialorder %v679, 0.0
        %vm809 = vcmp.gt.f32.partialorder %v681, 0.0
        %vm810 = vcmp.gt.f32.partialorder %v720, 0.0
        %vm811 = vcmp.gt.f32.partialorder %v722, 0.0
        %vm812 = vcmp.gt.f32.partialorder %v761, 0.0
        %vm813 = vcmp.gt.f32.partialorder %v763, 0.0
        %vm814 = vcmp.gt.f32.partialorder %v802, 0.0
        %vm815 = vcmp.gt.f32.partialorder %v804, 0.0
        %v816 = vmul.f32 %v679, 0.2
        %v817 = vmul.f32 %v681, 0.2
        %v818 = vmul.f32 %v720, 0.2
        %v819 = vmul.f32 %v722, 0.2
        %v820 = vmul.f32 %v761, 0.2
        %v821 = vmul.f32 %v763, 0.2
        %v822 = vmul.f32 %v802, 0.2
        %v823 = vmul.f32 %v804, 0.2
        %v824 = vsel %vm808, %v679, %v816
        %v825 = vsel %vm809, %v681, %v817
        %v826 = vsel %vm810, %v720, %v818
        %v827 = vsel %vm811, %v722, %v819
        %v828 = vsel %vm812, %v761, %v820
        %v829 = vsel %vm813, %v763, %v821
        %v830 = vsel %vm814, %v802, %v822
        %v831 = vsel %vm815, %v804, %v823
        %832 = vst [vmem:[%s293] sm:$0xff] %v824
        %833 = vst [vmem:[%s293 + $0x8] sm:$0xff] %v825
        %834 = vst [vmem:[%s293 + $0x10] sm:$0xff] %v826
        %835 = vst [vmem:[%s293 + $0x18] sm:$0xff] %v827
        %836 = vst [vmem:[%s293 + $0x20] sm:$0xff] %v828
        %837 = vst [vmem:[%s293 + $0x28] sm:$0xff] %v829
        %838 = vst [vmem:[%s293 + $0x30] sm:$0xff] %v830
        %839 = vst [vmem:[%s293 + $0x38] sm:$0xff] %v831
        %s840 = smul.u32 8, %s14
        %p841 = scmp.lt.s32.totalorder %s840, 15
        %s842 = scalar_select %p841, %s840, 15
        %s843 = smul.addr %s842, 8
        %s844 = scalar_lea.vmem %s3, %s843
        // Predicated region
        $region56: #{local_dis_forward.5} parent=50 // pred_check
          %p845 = pneg %p100
        $region57: #{local_dis_forward.5} parent=50 // pred_check_branch
          %847 = sbr.rel (%p845) target = $region59
        $region58: #{local_dis_forward.5} parent=50 // pred_region
          %s848 = smul.u32 8, %s14
        $region59: #{local_dis_forward.5} parent=50 // pred_fallthru
          _
      $region51: #{local_dis_forward.5} parent=5 // pred_fallthru
        _
      %p849 = scmp.le.s32.totalorder 2, %s9
      // Predicated region
      $region60: #{local_dis_forward.5} parent=5 // pred_check
        %p850 = pneg %p849
      $region61: #{local_dis_forward.5} parent=5 // pred_check_branch
        %852 = sbr.rel (%p850) target = $region63
      $region62: #{local_dis_forward.5} parent=5 // pred_region
        %s853 = ssub.s32 %s9, 2
        // Predicated region
        $region64: #{local_dis_forward.5} parent=62 // pred_check
          %p854 = pneg %p106
        $region65: #{local_dis_forward.5} parent=62 // pred_check_branch
          %856 = sbr.rel (%p854) target = $region67
        $region66: #{local_dis_forward.5} parent=62 // pred_region
          %s857 = smul.u32 8, %s15
          %p858 = scmp.lt.s32.totalorder %s857, 15
          %s859 = scalar_select %p858, %s857, 15
          %s860 = smul.addr %s859, 8
          %s861 = scalar_lea.vmem %s3, %s860
        $region67: #{local_dis_forward.5} parent=62 // pred_fallthru
          _
      $region63: #{local_dis_forward.5} parent=5 // pred_fallthru
        _
    $region6: #{local_dis_forward.5} parent=1 // loop_footer
      %s13 = sadd.s32 1, %s9
    $region7: #{local_dis_forward.5} parent=1 // loop_footer_branch
      %8 = sbr.rel target = $region3
    $region8: #{local_dis_forward.5} parent=1 // loop_exit
      _

// kernel: local_dis_forward.6
$region0: #{local_dis_forward.6}
  #allocation0 [shape = 'u32[]', space=smem, size = 0x4, offset = 0x4, fixed_abs, tag = 'smem constant byte address 0x4 - core index']
  #allocation1 [shape = 'u32[144,128]{1,0:T(1,128)}', space=vmem, size = 0x12000, scoped, tag = 'internal scratch']
  %s0 = inlined_call_operand.vmem [shape: bf16[16,200], index: 0, kind: input, shape index: {}]
  %s1 = inlined_call_operand.vmem [shape: bf16[200,512], index: 1, kind: input, shape index: {}]
  %s2 = inlined_call_operand.vmem [shape: f32[16,1], index: 2, kind: input, shape index: {}]
  %s3 = inlined_call_operand.vmem [shape: f32[16,512], index: 3, kind: output, shape index: {}]
  %s4 = sld [smem:[#allocation0]]
  $region102: #{local_dis_forward.6} parent=0
    _
  %s6 = ssub.s32 1, %s4
  %s7 = scalar_select 0, %s6, %s4
  $region1: #{local_dis_forward.6} parent=0
    #allocation2 [shape = 'u8[204800]{0}', space=vmem, size = 0x32000, scoped, tag = 'input window, operand 1']
    #allocation3 [shape = 'u8[32768]{0}', space=vmem, size = 0x8000, scoped, tag = 'output window, operand 0']
    loop: start=0, step=1, limit=4
    $region2: #{local_dis_forward.6} parent=1 // loop_pre_header
      _
    $region3: #{local_dis_forward.6} parent=1 // loop_header
      %s9 = sphi 0, %s13
      %p10 = scmp.ge.s32.totalorder %s9, 4
      %s17 = sphi 0, %s17
      %s19 = sphi 0, %s17
      %s20 = sphi 0, %s19
      %s34 = sphi 0, %s20
      %s40 = sphi 0, %s42
      %s43 = sphi 0, %s40
      %s44 = sphi 0, %s43
      %s60 = sphi 0, %s44
      %s64 = sphi 0, %s64
      %s66 = sphi 0, %s64
      %s67 = sphi 0, %s66
      %s81 = sphi 0, %s67
      %s87 = sphi 0, %s89
      %s90 = sphi 0, %s87
      %s91 = sphi 0, %s90
      %s107 = sphi 0, %s91
    $region4: #{local_dis_forward.6} parent=1 // loop_header_branch
      %12 = sbr.rel (%p10) target = $region8
    $region5: #{local_dis_forward.6} parent=1 // loop_body
      %s14 = ssub.s32 %s9, 1
      %s15 = ssub.s32 %s9, 2
      %s16 = sadd.s32 %s9, 1
      %s18 = sadd.s32 %s17, 1
      %p21 = scmp.eq.s32.totalorder %s9, 1
      %p22 = scmp.ne.s32.totalorder %s17, %s19
      %p23 = scmp.eq.s32.totalorder %s9, 0
      %p24 = por %p22, %p23
      %p25 = scmp.ne.s32.totalorder %s17, %s19
      %p26 = scmp.eq.s32.totalorder %s14, 1
      %p27 = por %p25, %p26
      %p28 = scmp.ne.s32.totalorder %s19, %s20
      %p29 = scmp.eq.s32.totalorder %s14, 0
      %p30 = por %p28, %p29
      %p31 = scmp.ne.s32.totalorder %s19, %s20
      %p32 = scmp.eq.s32.totalorder %s15, 1
      %p33 = por %p31, %p32
      %p35 = scmp.ne.s32.totalorder %s20, %s34
      %p36 = scmp.eq.s32.totalorder %s15, 0
      %p37 = por %p35, %p36
      %s38 = ssub.s32 %s9, %s16
      %p39 = scmp.eq.s32.totalorder %s38, 0
      %s41 = sadd.s32 %s40, 1
      %s42 = scalar_select %p39, %s40, %s41
      %p45 = pneg %p39
      %p46 = scmp.eq.s32.totalorder %s9, 1
      %p47 = por %p45, %p46
      %p48 = scmp.ne.s32.totalorder %s40, %s43
      %p49 = scmp.eq.s32.totalorder %s9, 0
      %p50 = por %p48, %p49
      %p51 = scmp.ne.s32.totalorder %s40, %s43
      %p52 = scmp.eq.s32.totalorder %s14, 1
      %p53 = por %p51, %p52
      %p54 = scmp.ne.s32.totalorder %s43, %s44
      %p55 = scmp.eq.s32.totalorder %s14, 0
      %p56 = por %p54, %p55
      %p57 = scmp.ne.s32.totalorder %s43, %s44
      %p58 = scmp.eq.s32.totalorder %s15, 1
      %p59 = por %p57, %p58
      %p61 = scmp.ne.s32.totalorder %s44, %s60
      %p62 = scmp.eq.s32.totalorder %s15, 0
      %p63 = por %p61, %p62
      %s65 = sadd.s32 %s64, 1
      %p68 = scmp.eq.s32.totalorder %s9, 1
      %p69 = scmp.ne.s32.totalorder %s64, %s66
      %p70 = scmp.eq.s32.totalorder %s9, 0
      %p71 = por %p69, %p70
      %p72 = scmp.ne.s32.totalorder %s64, %s66
      %p73 = scmp.eq.s32.totalorder %s14, 1
      %p74 = por %p72, %p73
      %p75 = scmp.ne.s32.totalorder %s66, %s67
      %p76 = scmp.eq.s32.totalorder %s14, 0
      %p77 = por %p75, %p76
      %p78 = scmp.ne.s32.totalorder %s66, %s67
      %p79 = scmp.eq.s32.totalorder %s15, 1
      %p80 = por %p78, %p79
      %p82 = scmp.ne.s32.totalorder %s67, %s81
      %p83 = scmp.eq.s32.totalorder %s15, 0
      %p84 = por %p82, %p83
      %s85 = ssub.s32 %s9, %s16
      %p86 = scmp.eq.s32.totalorder %s85, 0
      %s88 = sadd.s32 %s87, 1
      %s89 = scalar_select %p86, %s87, %s88
      %p92 = pneg %p86
      %p93 = scmp.eq.s32.totalorder %s9, 1
      %p94 = por %p92, %p93
      %p95 = scmp.ne.s32.totalorder %s87, %s90
      %p96 = scmp.eq.s32.totalorder %s9, 0
      %p97 = por %p95, %p96
      %p98 = scmp.ne.s32.totalorder %s87, %s90
      %p99 = scmp.eq.s32.totalorder %s14, 1
      %p100 = por %p98, %p99
      %p101 = scmp.ne.s32.totalorder %s90, %s91
      %p102 = scmp.eq.s32.totalorder %s14, 0
      %p103 = por %p101, %p102
      %p104 = scmp.ne.s32.totalorder %s90, %s91
      %p105 = scmp.eq.s32.totalorder %s15, 1
      %p106 = por %p104, %p105
      %p108 = scmp.ne.s32.totalorder %s91, %s107
      %p109 = scmp.eq.s32.totalorder %s15, 0
      %p110 = por %p108, %p109
      %p111 = scmp.le.s32.totalorder 1, %s9
      %p112 = scmp.lt.s32.totalorder %s9, 3
      %p113 = pnand %p111, %p112
      %p114 = pneg %p113
      // Predicated region
      $region9: #{local_dis_forward.6} parent=5 // pred_check
        _
      $region10: #{local_dis_forward.6} parent=5 // pred_check_branch
        %116 = sbr.rel (%p113) target = $region12
      $region11: #{local_dis_forward.6} parent=5 // pred_region
        %s117 = ssub.s32 %s9, 1
        // Predicated region
        $region13: #{local_dis_forward.6} parent=11 // pred_check
          %p118 = pneg %p30
        $region14: #{local_dis_forward.6} parent=11 // pred_check_branch
          %120 = sbr.rel (%p118) target = $region16
        $region15: #{local_dis_forward.6} parent=11 // pred_region
          _
        $region16: #{local_dis_forward.6} parent=11 // pred_fallthru
          _
        // Predicated region
        $region17: #{local_dis_forward.6} parent=11 // pred_check
          %p121 = pneg %p77
        $region18: #{local_dis_forward.6} parent=11 // pred_check_branch
          %123 = sbr.rel (%p121) target = $region20
        $region19: #{local_dis_forward.6} parent=11 // pred_region
          _
        $region20: #{local_dis_forward.6} parent=11 // pred_fallthru
          _
      $region12: #{local_dis_forward.6} parent=5 // pred_fallthru
        _
      %p124 = scmp.lt.s32.totalorder %s9, 2
      // Predicated region
      $region21: #{local_dis_forward.6} parent=5 // pred_check
        %p125 = pneg %p124
      $region22: #{local_dis_forward.6} parent=5 // pred_check_branch
        %127 = sbr.rel (%p125) target = $region24
      $region23: #{local_dis_forward.6} parent=5 // pred_region
        // Predicated region
        $region25: #{local_dis_forward.6} parent=23 // pred_check
          %p128 = pneg %p50
        $region26: #{local_dis_forward.6} parent=23 // pred_check_branch
          %130 = sbr.rel (%p128) target = $region28
        $region27: #{local_dis_forward.6} parent=23 // pred_region
          %s131 = sand.u32 %s40, 1
          %s132 = sand.u32 %s40, 1
          %s133 = smul.addr %s132, 200
          %s134 = scalar_lea.vmem [#allocation2], %s133
          %s135 = smul.u32 2, %s9
          %s136 = smul.addr %s135, 4
          %s137 = scalar_lea.vmem %s1, %s136
          // Predicated region
          $region29: #{local_dis_forward.6} parent=27 // pred_check
            _
          $region30: #{local_dis_forward.6} parent=27 // pred_check_branch
            %139 = sbr.rel (0) target = $region32
          $region31: #{local_dis_forward.6} parent=27 // pred_region
            // Predicated region
            $region33: #{local_dis_forward.6} parent=31 // pred_check
              _
            $region34: #{local_dis_forward.6} parent=31 // pred_check_branch
              %141 = sbr.rel (0) target = $region36
            $region35: #{local_dis_forward.6} parent=31 // pred_region
              // Predicated region
              $region48: #{local_dis_forward.6} parent=35 // pred_check
                _
              $region49: #{local_dis_forward.6} parent=35 // pred_check_branch
                %205 = sbr.rel (0) target = $region51
              $region50: #{local_dis_forward.6} parent=35 // pred_region
                loop: start=0, step=1, limit=1
                $region52: #{local_dis_forward.6} parent=50 // loop_pre_header
                  _
                $region53: #{local_dis_forward.6} parent=50 // loop_header
                  %s207 = sphi 0, %s211
                  %p208 = scmp.ge.s32.totalorder %s207, 1
                  %s212 = sphi %s137, %s137
                  %s213 = sphi %s134, %s134
                $region54: #{local_dis_forward.6} parent=50 // loop_header_branch
                  %210 = sbr.rel (%p208) target = $region58
                $region55: #{local_dis_forward.6} parent=50 // loop_body
                  %v214 = vld [vmem:[%s212] sm:$0xff]
                  %215 = vst [vmem:[%s213] sm:$0xff] %v214
                  %v216 = vld [vmem:[%s212 + $0x10] sm:$0xff]
                  %217 = vst [vmem:[%s213 + $0x8] sm:$0xff] %v216
                  %v218 = vld [vmem:[%s212 + $0x20] sm:$0xff]
                  %219 = vst [vmem:[%s213 + $0x10] sm:$0xff] %v218
                  %v220 = vld [vmem:[%s212 + $0x30] sm:$0xff]
                  %221 = vst [vmem:[%s213 + $0x18] sm:$0xff] %v220
                  %v222 = vld [vmem:[%s212 + $0x40] sm:$0xff]
                  %223 = vst [vmem:[%s213 + $0x20] sm:$0xff] %v222
                  %v224 = vld [vmem:[%s212 + $0x50] sm:$0xff]
                  %225 = vst [vmem:[%s213 + $0x28] sm:$0xff] %v224
                  %v226 = vld [vmem:[%s212 + $0x60] sm:$0xff]
                  %227 = vst [vmem:[%s213 + $0x30] sm:$0xff] %v226
                  %v228 = vld [vmem:[%s212 + $0x70] sm:$0xff]
                  %229 = vst [vmem:[%s213 + $0x38] sm:$0xff] %v228
                  %v230 = vld [vmem:[%s212 + $0x80] sm:$0xff]
                  %231 = vst [vmem:[%s213 + $0x40] sm:$0xff] %v230
                  %v232 = vld [vmem:[%s212 + $0x90] sm:$0xff]
                  %233 = vst [vmem:[%s213 + $0x48] sm:$0xff] %v232
                  %v234 = vld [vmem:[%s212 + $0xa0] sm:$0xff]
                  %235 = vst [vmem:[%s213 + $0x50] sm:$0xff] %v234
                  %v236 = vld [vmem:[%s212 + $0xb0] sm:$0xff]
                  %237 = vst [vmem:[%s213 + $0x58] sm:$0xff] %v236
                  %v238 = vld [vmem:[%s212 + $0xc0] sm:$0xff]
                  %239 = vst [vmem:[%s213 + $0x60] sm:$0xff] %v238
                  %v240 = vld [vmem:[%s212 + $0xd0] sm:$0xff]
                  %241 = vst [vmem:[%s213 + $0x68] sm:$0xff] %v240
                  %v242 = vld [vmem:[%s212 + $0xe0] sm:$0xff]
                  %243 = vst [vmem:[%s213 + $0x70] sm:$0xff] %v242
                  %v244 = vld [vmem:[%s212 + $0xf0] sm:$0xff]
                  %245 = vst [vmem:[%s213 + $0x78] sm:$0xff] %v244
                  %v246 = vld [vmem:[%s212 + $0x100] sm:$0xff]
                  %247 = vst [vmem:[%s213 + $0x80] sm:$0xff] %v246
                  %v248 = vld [vmem:[%s212 + $0x110] sm:$0xff]
                  %249 = vst [vmem:[%s213 + $0x88] sm:$0xff] %v248
                  %v250 = vld [vmem:[%s212 + $0x120] sm:$0xff]
                  %251 = vst [vmem:[%s213 + $0x90] sm:$0xff] %v250
                  %v252 = vld [vmem:[%s212 + $0x130] sm:$0xff]
                  %253 = vst [vmem:[%s213 + $0x98] sm:$0xff] %v252
                  %v254 = vld [vmem:[%s212 + $0x140] sm:$0xff]
                  %255 = vst [vmem:[%s213 + $0xa0] sm:$0xff] %v254
                  %v256 = vld [vmem:[%s212 + $0x150] sm:$0xff]
                  %257 = vst [vmem:[%s213 + $0xa8] sm:$0xff] %v256
                  %v258 = vld [vmem:[%s212 + $0x160] sm:$0xff]
                  %259 = vst [vmem:[%s213 + $0xb0] sm:$0xff] %v258
                  %v260 = vld [vmem:[%s212 + $0x170] sm:$0xff]
                  %261 = vst [vmem:[%s213 + $0xb8] sm:$0xff] %v260
                  %v262 = vld [vmem:[%s212 + $0x180] sm:$0xff]
                  %263 = vst [vmem:[%s213 + $0xc0] sm:$0xff] %v262
                $region56: #{local_dis_forward.6} parent=50 // loop_footer
                  %s211 = sadd.s32 1, %s207
                $region57: #{local_dis_forward.6} parent=50 // loop_footer_branch
                  %206 = sbr.rel target = $region53
                $region58: #{local_dis_forward.6} parent=50 // loop_exit
                  _
              $region51: #{local_dis_forward.6} parent=35 // pred_fallthru
                _
              // Predicated region
              $region59: #{local_dis_forward.6} parent=35 // pred_check
                _
              $region60: #{local_dis_forward.6} parent=35 // pred_check_branch
                %265 = sbr.rel target = $region62
              $region61: #{local_dis_forward.6} parent=35 // pred_region
                _
              $region62: #{local_dis_forward.6} parent=35 // pred_fallthru
                _
            $region36: #{local_dis_forward.6} parent=31 // pred_fallthru
              _
            // Predicated region
            $region37: #{local_dis_forward.6} parent=31 // pred_check
              _
            $region38: #{local_dis_forward.6} parent=31 // pred_check_branch
              %143 = sbr.rel target = $region40
            $region39: #{local_dis_forward.6} parent=31 // pred_region
              %s145 = ssub.s32 256, 1
              loop: start=0, step=1, limit=1
              $region41: #{local_dis_forward.6} parent=39 // loop_pre_header
                _
              $region42: #{local_dis_forward.6} parent=39 // loop_header
                %s147 = sphi 0, %s151
                %p148 = scmp.ge.s32.totalorder %s147, 1
                %s152 = sphi %s137, %s137
                %s153 = sphi %s134, %s134
              $region43: #{local_dis_forward.6} parent=39 // loop_header_branch
                %150 = sbr.rel (%p148) target = $region47
              $region44: #{local_dis_forward.6} parent=39 // loop_body
                %v154 = vld [vmem:[%s152] sm:%s145]
                %155 = vst [vmem:[%s153] sm:%s145] %v154
                %v156 = vld [vmem:[%s152 + $0x10] sm:%s145]
                %157 = vst [vmem:[%s153 + $0x8] sm:%s145] %v156
                %v158 = vld [vmem:[%s152 + $0x20] sm:%s145]
                %159 = vst [vmem:[%s153 + $0x10] sm:%s145] %v158
                %v160 = vld [vmem:[%s152 + $0x30] sm:%s145]
                %161 = vst [vmem:[%s153 + $0x18] sm:%s145] %v160
                %v162 = vld [vmem:[%s152 + $0x40] sm:%s145]
                %163 = vst [vmem:[%s153 + $0x20] sm:%s145] %v162
                %v164 = vld [vmem:[%s152 + $0x50] sm:%s145]
                %165 = vst [vmem:[%s153 + $0x28] sm:%s145] %v164
                %v166 = vld [vmem:[%s152 + $0x60] sm:%s145]
                %167 = vst [vmem:[%s153 + $0x30] sm:%s145] %v166
                %v168 = vld [vmem:[%s152 + $0x70] sm:%s145]
                %169 = vst [vmem:[%s153 + $0x38] sm:%s145] %v168
                %v170 = vld [vmem:[%s152 + $0x80] sm:%s145]
                %171 = vst [vmem:[%s153 + $0x40] sm:%s145] %v170
                %v172 = vld [vmem:[%s152 + $0x90] sm:%s145]
                %173 = vst [vmem:[%s153 + $0x48] sm:%s145] %v172
                %v174 = vld [vmem:[%s152 + $0xa0] sm:%s145]
                %175 = vst [vmem:[%s153 + $0x50] sm:%s145] %v174
                %v176 = vld [vmem:[%s152 + $0xb0] sm:%s145]
                %177 = vst [vmem:[%s153 + $0x58] sm:%s145] %v176
                %v178 = vld [vmem:[%s152 + $0xc0] sm:%s145]
                %179 = vst [vmem:[%s153 + $0x60] sm:%s145] %v178
                %v180 = vld [vmem:[%s152 + $0xd0] sm:%s145]
                %181 = vst [vmem:[%s153 + $0x68] sm:%s145] %v180
                %v182 = vld [vmem:[%s152 + $0xe0] sm:%s145]
                %183 = vst [vmem:[%s153 + $0x70] sm:%s145] %v182
                %v184 = vld [vmem:[%s152 + $0xf0] sm:%s145]
                %185 = vst [vmem:[%s153 + $0x78] sm:%s145] %v184
                %v186 = vld [vmem:[%s152 + $0x100] sm:%s145]
                %187 = vst [vmem:[%s153 + $0x80] sm:%s145] %v186
                %v188 = vld [vmem:[%s152 + $0x110] sm:%s145]
                %189 = vst [vmem:[%s153 + $0x88] sm:%s145] %v188
                %v190 = vld [vmem:[%s152 + $0x120] sm:%s145]
                %191 = vst [vmem:[%s153 + $0x90] sm:%s145] %v190
                %v192 = vld [vmem:[%s152 + $0x130] sm:%s145]
                %193 = vst [vmem:[%s153 + $0x98] sm:%s145] %v192
                %v194 = vld [vmem:[%s152 + $0x140] sm:%s145]
                %195 = vst [vmem:[%s153 + $0xa0] sm:%s145] %v194
                %v196 = vld [vmem:[%s152 + $0x150] sm:%s145]
                %197 = vst [vmem:[%s153 + $0xa8] sm:%s145] %v196
                %v198 = vld [vmem:[%s152 + $0x160] sm:%s145]
                %199 = vst [vmem:[%s153 + $0xb0] sm:%s145] %v198
                %v200 = vld [vmem:[%s152 + $0x170] sm:%s145]
                %201 = vst [vmem:[%s153 + $0xb8] sm:%s145] %v200
                %v202 = vld [vmem:[%s152 + $0x180] sm:%s145]
                %203 = vst [vmem:[%s153 + $0xc0] sm:%s145] %v202
              $region45: #{local_dis_forward.6} parent=39 // loop_footer
                %s151 = sadd.s32 1, %s147
              $region46: #{local_dis_forward.6} parent=39 // loop_footer_branch
                %146 = sbr.rel target = $region42
              $region47: #{local_dis_forward.6} parent=39 // loop_exit
                _
            $region40: #{local_dis_forward.6} parent=31 // pred_fallthru
              _
          $region32: #{local_dis_forward.6} parent=27 // pred_fallthru
            _
          %266 = vnop
        $region28: #{local_dis_forward.6} parent=23 // pred_fallthru
          _
      $region24: #{local_dis_forward.6} parent=5 // pred_fallthru
        _
      %p267 = scmp.le.s32.totalorder 1, %s9
      %p268 = scmp.lt.s32.totalorder %s9, 3
      %p269 = pnand %p267, %p268
      %p270 = pneg %p269
      // Predicated region
      $region63: #{local_dis_forward.6} parent=5 // pred_check
        _
      $region64: #{local_dis_forward.6} parent=5 // pred_check_branch
        %272 = sbr.rel (%p269) target = $region66
      $region65: #{local_dis_forward.6} parent=5 // pred_region
        %s273 = ssub.s32 %s9, 1
        %s274 = sand.u32 %s43, 1
        %s275 = sand.u32 %s43, 1
        %s276 = smul.addr %s275, 200
        %s277 = scalar_lea.vmem [#allocation2], %s276
        // Predicated region
        $region67: #{local_dis_forward.6} parent=65 // pred_check
          %p278 = pneg %p56
        $region68: #{local_dis_forward.6} parent=65 // pred_check_branch
          %280 = sbr.rel (%p278) target = $region70
        $region69: #{local_dis_forward.6} parent=65 // pred_region
          _
        $region70: #{local_dis_forward.6} parent=65 // pred_fallthru
          _
        %p281 = pneg %p30
        %p282 = pneg %p27
        %s283 = sand.u32 %s43, 1
        %s284 = sand.u32 %s43, 1
        %s285 = smul.addr %s284, 200
        %s286 = scalar_lea.vmem [#allocation2], %s285
        %p287 = pneg %p56
        %p288 = pneg %p53
        %p289 = pneg %p77
        %p290 = pneg %p74
        %p291 = pneg %p103
        %p292 = pneg %p100
        %s293 = sand.u32 %s90, 1
        %s294 = sand.u32 %s90, 1
        %s295 = smul.addr %s294, 32
        %s296 = scalar_lea.vmem [#allocation3], %s295
        %s297 = smul.u32 2, %s14
        %s298 = smul.u32 2, %s14
        %v300 = vld [vmem:[%s0] sm:$0xff]
        %v301 = vld [vmem:[%s0 + $0x8] sm:$0xff]
        %v302 = vld [vmem:[%s277] sm:$0xff]
        %v303 = vld [vmem:[%s277 + $0x8] sm:$0xff]
        %v304 = vld [vmem:[%s277 + $0x10] sm:$0xff]
        %v305 = vld [vmem:[%s277 + $0x18] sm:$0xff]
        %v306 = vld [vmem:[%s277 + $0x20] sm:$0xff]
        %v307 = vld [vmem:[%s277 + $0x28] sm:$0xff]
        %v308 = vld [vmem:[%s277 + $0x30] sm:$0xff]
        %v309 = vld [vmem:[%s277 + $0x38] sm:$0xff]
        %v310 = vld [vmem:[%s277 + $0x40] sm:$0xff]
        %v311 = vld [vmem:[%s277 + $0x48] sm:$0xff]
        %v312 = vld [vmem:[%s277 + $0x50] sm:$0xff]
        %v313 = vld [vmem:[%s277 + $0x58] sm:$0xff]
        %v314 = vld [vmem:[%s277 + $0x60] sm:$0xff]
        %v315 = vld [vmem:[%s277 + $0x68] sm:$0xff]
        %v316 = vld [vmem:[%s277 + $0x70] sm:$0xff]
        %v317 = vld [vmem:[%s277 + $0x78] sm:$0xff]
        %v318 = vld [vmem:[%s277 + $0x80] sm:$0xff]
        %v319 = vld [vmem:[%s277 + $0x88] sm:$0xff]
        %v320 = vld [vmem:[%s277 + $0x90] sm:$0xff]
        %v321 = vld [vmem:[%s277 + $0x98] sm:$0xff]
        %v322 = vld [vmem:[%s277 + $0xa0] sm:$0xff]
        %v323 = vld [vmem:[%s277 + $0xa8] sm:$0xff]
        %v324 = vld [vmem:[%s277 + $0xb0] sm:$0xff]
        %v325 = vld [vmem:[%s277 + $0xb8] sm:$0xff]
        %v326 = vld [vmem:[%s277 + $0xc0] sm:$0xff]
        %v327 = vld [vmem:[%s2] sm:$0xff]
        %v328 = vld [vmem:[%s2 + $0x8] sm:$0xff]
        %330 = vset.pattern.permute.xlu0 0
        %331 = vperm.xlu0 %330, %v327
        %v332 = vpop.permute.xlu0 %331
        %335 = vset.pattern.permute.xlu0 0
        %336 = vperm.xlu0 %335, %v328
        %v337 = vpop.permute.xlu0 %336
        %v341 = vunpack.c.l.b16 %v300
        %v342 = vunpack.c.h.b16 %v300
        %v343 = vunpack.c.l.b16 %v301
        %v344 = vunpack.c.h.b16 %v301
        %v345 = vpack.c.b16 %v343, %v341
        %v346 = vpack.c.b16 %v344, %v342
        %v373 = vunpack.c.l.b16 %v302
        %v374 = vunpack.c.h.b16 %v302
        %v375 = vunpack.c.l.b16 %v303
        %v376 = vunpack.c.h.b16 %v303
        %v377 = vunpack.c.l.b16 %v304
        %v378 = vunpack.c.h.b16 %v304
        %v379 = vunpack.c.l.b16 %v305
        %v380 = vunpack.c.h.b16 %v305
        %v381 = vunpack.c.l.b16 %v306
        %v382 = vunpack.c.h.b16 %v306
        %v383 = vunpack.c.l.b16 %v307
        %v384 = vunpack.c.h.b16 %v307
        %v385 = vunpack.c.l.b16 %v308
        %v386 = vunpack.c.h.b16 %v308
        %v387 = vunpack.c.l.b16 %v309
        %v388 = vunpack.c.h.b16 %v309
        %v389 = vunpack.c.l.b16 %v310
        %v390 = vunpack.c.h.b16 %v310
        %v391 = vunpack.c.l.b16 %v311
        %v392 = vunpack.c.h.b16 %v311
        %v393 = vunpack.c.l.b16 %v312
        %v394 = vunpack.c.h.b16 %v312
        %v395 = vunpack.c.l.b16 %v313
        %v396 = vunpack.c.h.b16 %v313
        %v397 = vunpack.c.l.b16 %v314
        %v398 = vunpack.c.h.b16 %v314
        %v399 = vunpack.c.l.b16 %v315
        %v400 = vunpack.c.h.b16 %v315
        %v401 = vunpack.c.l.b16 %v316
        %v402 = vunpack.c.h.b16 %v316
        %v403 = vunpack.c.l.b16 %v317
        %v404 = vunpack.c.h.b16 %v317
        %v405 = vunpack.c.l.b16 %v318
        %v406 = vunpack.c.h.b16 %v318
        %v407 = vunpack.c.l.b16 %v319
        %v408 = vunpack.c.h.b16 %v319
        %v409 = vunpack.c.l.b16 %v320
        %v410 = vunpack.c.h.b16 %v320
        %v411 = vunpack.c.l.b16 %v321
        %v412 = vunpack.c.h.b16 %v321
        %v413 = vunpack.c.l.b16 %v322
        %v414 = vunpack.c.h.b16 %v322
        %v415 = vunpack.c.l.b16 %v323
        %v416 = vunpack.c.h.b16 %v323
        %v417 = vunpack.c.l.b16 %v324
        %v418 = vunpack.c.h.b16 %v324
        %v419 = vunpack.c.l.b16 %v325
        %v420 = vunpack.c.h.b16 %v325
        %v421 = vunpack.c.l.b16 %v326
        %v422 = vunpack.c.h.b16 %v326
        %v423 = vpack.c.b16 %v375, %v373
        %v424 = vpack.c.b16 %v376, %v374
        %v425 = vpack.c.b16 %v379, %v377
        %v426 = vpack.c.b16 %v380, %v378
        %v427 = vpack.c.b16 %v383, %v381
        %v428 = vpack.c.b16 %v384, %v382
        %v429 = vpack.c.b16 %v387, %v385
        %v430 = vpack.c.b16 %v388, %v386
        %v431 = vpack.c.b16 %v391, %v389
        %v432 = vpack.c.b16 %v392, %v390
        %v433 = vpack.c.b16 %v395, %v393
        %v434 = vpack.c.b16 %v396, %v394
        %v435 = vpack.c.b16 %v399, %v397
        %v436 = vpack.c.b16 %v400, %v398
        %v437 = vpack.c.b16 %v403, %v401
        %v438 = vpack.c.b16 %v404, %v402
        %v439 = vpack.c.b16 %v407, %v405
        %v440 = vpack.c.b16 %v408, %v406
        %v441 = vpack.c.b16 %v411, %v409
        %v442 = vpack.c.b16 %v412, %v410
        %v443 = vpack.c.b16 %v415, %v413
        %v444 = vpack.c.b16 %v416, %v414
        %v445 = vpack.c.b16 %v419, %v417
        %v446 = vpack.c.b16 %v420, %v418
        %v447 = vpack.c.b16 %v421, %v421
        %v448 = vpack.c.b16 %v422, %v422
        %vm473 = vcmask 588800
        %v475 = vsel %vm473, %v346, 0
        %vm477 = vcmask 1043456
        %v479 = vsel %vm477, %v447, 0
        %v482 = vsel %vm477, %v448, 0
        %484 = vmatprep.subr.bf16.mxu0 %v438
        %485 = vmatpush1.bf16.msra.mxu0 %v437
        %486 = vmatprep.subr.bf16.mxu0 %v436
        %487 = vmatpush1.bf16.msra.mxu0 %v435
        %488 = vmatprep.subr.bf16.mxu0 %v434
        %489 = vmatpush1.bf16.msra.mxu0 %v433
        %490 = vmatprep.subr.bf16.mxu0 %v432
        %491 = vmatpush1.bf16.msra.mxu0 %v431
        %492 = vmatprep.subr.bf16.mxu0 %v430
        %493 = vmatpush1.bf16.msra.mxu0 %v429
        %494 = vmatprep.subr.bf16.mxu0 %v428
        %495 = vmatpush1.bf16.msra.mxu0 %v427
        %496 = vmatprep.subr.bf16.mxu0 %v426
        %497 = vmatpush1.bf16.msra.mxu0 %v425
        %498 = vmatprep.subr.bf16.mxu0 %v424
        %499 = vmatpush1.bf16.msra.mxu0 %v423
        %500 = vmatprep.subr.bf16.mxu0 0
        %501 = vmatpush2.bf16.msra.mxu0 0
        %502 = vmatprep.subr.bf16.mxu0 0
        %503 = vmatpush2.bf16.msra.mxu0 0
        %504 = vmatprep.subr.bf16.mxu0 0
        %505 = vmatpush2.bf16.msra.mxu0 0
        %506 = vmatprep.subr.bf16.mxu0 %v482
        %507 = vmatpush2.bf16.msra.mxu0 %v479
        %508 = vmatprep.subr.bf16.mxu0 %v446
        %509 = vmatpush2.bf16.msra.mxu0 %v445
        %510 = vmatprep.subr.bf16.mxu0 %v444
        %511 = vmatpush2.bf16.msra.mxu0 %v443
        %512 = vmatprep.subr.bf16.mxu0 %v442
        %513 = vmatpush2.bf16.msra.mxu0 %v441
        %514 = vmatprep.subr.bf16.mxu0 %v440
        %515 = vmatpush2.bf16.msra.mxu0 %v439
        %516 = vmatprep.mubr.bf16.mxu0 %v475
        %517 = vmatmul.mubr.bf16.gmra.mxu0 %v345
        %v518 = vpop.f32.mrf.mxu0
        %v519 = vadd.f32 %v332, %v518
        %v520 = vpop.f32.mrf.mxu0
        %v521 = vadd.f32 %v332, %v520
        %v522 = vpop.f32.mrf.mxu0
        %v523 = vadd.f32 %v337, %v522
        %v524 = vpop.f32.mrf.mxu0
        %v525 = vadd.f32 %v337, %v524
        %526 = vdwg.mxu0
        %vm527 = vcmp.gt.f32.partialorder %v519, 0.0
        %vm528 = vcmp.gt.f32.partialorder %v521, 0.0
        %vm529 = vcmp.gt.f32.partialorder %v523, 0.0
        %vm530 = vcmp.gt.f32.partialorder %v525, 0.0
        %v531 = vmul.f32 %v519, 0.2
        %v532 = vmul.f32 %v521, 0.2
        %v533 = vmul.f32 %v523, 0.2
        %v534 = vmul.f32 %v525, 0.2
        %v535 = vsel %vm527, %v519, %v531
        %v536 = vsel %vm528, %v521, %v532
        %v537 = vsel %vm529, %v523, %v533
        %v538 = vsel %vm530, %v525, %v534
        %539 = vst [vmem:[%s296] sm:$0xff] %v535
        %540 = vst [vmem:[%s296 + $0x8] sm:$0xff] %v536
        %541 = vst [vmem:[%s296 + $0x10] sm:$0xff] %v537
        %542 = vst [vmem:[%s296 + $0x18] sm:$0xff] %v538
        %s543 = sand.u32 %s90, 1
        %s544 = sand.u32 %s90, 1
        %s545 = smul.addr %s544, 32
        %s546 = scalar_lea.vmem [#allocation3], %s545
        // Predicated region
        $region71: #{local_dis_forward.6} parent=65 // pred_check
          %p547 = pneg %p100
        $region72: #{local_dis_forward.6} parent=65 // pred_check_branch
          %549 = sbr.rel (%p547) target = $region74
        $region73: #{local_dis_forward.6} parent=65 // pred_region
          %s550 = smul.u32 2, %s14
          %s551 = smul.addr %s550, 8
          %s552 = scalar_lea.vmem %s3, %s551
          // Predicated region
          $region75: #{local_dis_forward.6} parent=73 // pred_check
            _
          $region76: #{local_dis_forward.6} parent=73 // pred_check_branch
            %554 = sbr.rel (0) target = $region78
          $region77: #{local_dis_forward.6} parent=73 // pred_region
            // Predicated region
            $region79: #{local_dis_forward.6} parent=77 // pred_check
              _
            $region80: #{local_dis_forward.6} parent=77 // pred_check_branch
              %556 = sbr.rel (0) target = $region82
            $region81: #{local_dis_forward.6} parent=77 // pred_region
              loop: start=0, step=1, limit=1
              $region83: #{local_dis_forward.6} parent=81 // loop_pre_header
                _
              $region84: #{local_dis_forward.6} parent=81 // loop_header
                %s558 = sphi 0, %s562
                %p559 = scmp.ge.s32.totalorder %s558, 1
                %s563 = sphi %s546, %s546
                %s564 = sphi %s552, %s552
              $region85: #{local_dis_forward.6} parent=81 // loop_header_branch
                %561 = sbr.rel (%p559) target = $region89
              $region86: #{local_dis_forward.6} parent=81 // loop_body
                %v565 = vld [vmem:[%s563] sm:$0xff]
                %566 = vst [vmem:[%s564] sm:$0xff] %v565
                %v567 = vld [vmem:[%s563 + $0x8] sm:$0xff]
                %568 = vst [vmem:[%s564 + $0x8] sm:$0xff] %v567
                %v569 = vld [vmem:[%s563 + $0x10] sm:$0xff]
                %570 = vst [vmem:[%s564 + $0x20] sm:$0xff] %v569
                %v571 = vld [vmem:[%s563 + $0x18] sm:$0xff]
                %572 = vst [vmem:[%s564 + $0x28] sm:$0xff] %v571
              $region87: #{local_dis_forward.6} parent=81 // loop_footer
                %s562 = sadd.s32 1, %s558
              $region88: #{local_dis_forward.6} parent=81 // loop_footer_branch
                %557 = sbr.rel target = $region84
              $region89: #{local_dis_forward.6} parent=81 // loop_exit
                _
            $region82: #{local_dis_forward.6} parent=77 // pred_fallthru
              _
            // Predicated region
            $region90: #{local_dis_forward.6} parent=77 // pred_check
              _
            $region91: #{local_dis_forward.6} parent=77 // pred_check_branch
              %574 = sbr.rel target = $region93
            $region92: #{local_dis_forward.6} parent=77 // pred_region
              _
            $region93: #{local_dis_forward.6} parent=77 // pred_fallthru
              _
          $region78: #{local_dis_forward.6} parent=73 // pred_fallthru
            _
          %575 = vnop
        $region74: #{local_dis_forward.6} parent=65 // pred_fallthru
          _
      $region66: #{local_dis_forward.6} parent=5 // pred_fallthru
        _
      %p576 = scmp.le.s32.totalorder 2, %s9
      // Predicated region
      $region94: #{local_dis_forward.6} parent=5 // pred_check
        %p577 = pneg %p576
      $region95: #{local_dis_forward.6} parent=5 // pred_check_branch
        %579 = sbr.rel (%p577) target = $region97
      $region96: #{local_dis_forward.6} parent=5 // pred_region
        %s580 = ssub.s32 %s9, 2
        // Predicated region
        $region98: #{local_dis_forward.6} parent=96 // pred_check
          %p581 = pneg %p106
        $region99: #{local_dis_forward.6} parent=96 // pred_check_branch
          %583 = sbr.rel (%p581) target = $region101
        $region100: #{local_dis_forward.6} parent=96 // pred_region
          %s584 = sand.u32 %s91, 1
          %s585 = sand.u32 %s91, 1
          %s586 = smul.addr %s585, 32
          %s587 = scalar_lea.vmem [#allocation3], %s586
        $region101: #{local_dis_forward.6} parent=96 // pred_fallthru
          _
      $region97: #{local_dis_forward.6} parent=5 // pred_fallthru
        _
    $region6: #{local_dis_forward.6} parent=1 // loop_footer
      %s13 = sadd.s32 1, %s9
    $region7: #{local_dis_forward.6} parent=1 // loop_footer_branch
      %8 = sbr.rel target = $region3
    $region8: #{local_dis_forward.6} parent=1 // loop_exit
      _

// kernel: tile.7
$region0: #{tile.7}
  %s0 = inlined_call_operand.vmem [shape: f32[16,2,64], index: 0, kind: input, shape index: {}]
  %s1 = inlined_call_operand.vmem [shape: f32[16,128], index: 1, kind: output, shape index: {}]
  $region1: #{tile.7} parent=0
    #allocation0 [shape = 'u8[65536]{0}', space=vmem, size = 0x10000, scoped, tag = 'scoped mem for input reshape']
    %s3 = sshll.u32 1, 2
    %s4 = ssub.s32 %s3, 1
    %s5 = smul.addr 2, 15
    %s6 = scalar_lea.vmem %s0, %s5
    %v7 = vld [vmem:[%s6] sm:%s4]
    %s8 = scalar_lea.vmem [#allocation0], 120
    %9 = vst [vmem:[%s8] sm:%s4] %v7
    %s10 = smul.addr 2, 14
    %s11 = scalar_lea.vmem %s0, %s10
    %v12 = vld [vmem:[%s11] sm:%s4]
    %s13 = scalar_lea.vmem [#allocation0], 112
    %14 = vst [vmem:[%s13] sm:%s4] %v12
    %s15 = smul.addr 2, 13
    %s16 = scalar_lea.vmem %s0, %s15
    %v17 = vld [vmem:[%s16] sm:%s4]
    %s18 = scalar_lea.vmem [#allocation0], 104
    %19 = vst [vmem:[%s18] sm:%s4] %v17
    %s20 = smul.addr 2, 12
    %s21 = scalar_lea.vmem %s0, %s20
    %v22 = vld [vmem:[%s21] sm:%s4]
    %s23 = scalar_lea.vmem [#allocation0], 96
    %24 = vst [vmem:[%s23] sm:%s4] %v22
    %s25 = smul.addr 2, 11
    %s26 = scalar_lea.vmem %s0, %s25
    %v27 = vld [vmem:[%s26] sm:%s4]
    %s28 = scalar_lea.vmem [#allocation0], 88
    %29 = vst [vmem:[%s28] sm:%s4] %v27
    %s30 = smul.addr 2, 10
    %s31 = scalar_lea.vmem %s0, %s30
    %v32 = vld [vmem:[%s31] sm:%s4]
    %s33 = scalar_lea.vmem [#allocation0], 80
    %34 = vst [vmem:[%s33] sm:%s4] %v32
    %s35 = smul.addr 2, 9
    %s36 = scalar_lea.vmem %s0, %s35
    %v37 = vld [vmem:[%s36] sm:%s4]
    %s38 = scalar_lea.vmem [#allocation0], 72
    %39 = vst [vmem:[%s38] sm:%s4] %v37
    %s40 = smul.addr 2, 8
    %s41 = scalar_lea.vmem %s0, %s40
    %v42 = vld [vmem:[%s41] sm:%s4]
    %s43 = scalar_lea.vmem [#allocation0], 64
    %44 = vst [vmem:[%s43] sm:%s4] %v42
    %s45 = smul.addr 2, 7
    %s46 = scalar_lea.vmem %s0, %s45
    %v47 = vld [vmem:[%s46] sm:%s4]
    %s48 = scalar_lea.vmem [#allocation0], 56
    %49 = vst [vmem:[%s48] sm:%s4] %v47
    %s50 = smul.addr 2, 6
    %s51 = scalar_lea.vmem %s0, %s50
    %v52 = vld [vmem:[%s51] sm:%s4]
    %s53 = scalar_lea.vmem [#allocation0], 48
    %54 = vst [vmem:[%s53] sm:%s4] %v52
    %s55 = smul.addr 2, 5
    %s56 = scalar_lea.vmem %s0, %s55
    %v57 = vld [vmem:[%s56] sm:%s4]
    %s58 = scalar_lea.vmem [#allocation0], 40
    %59 = vst [vmem:[%s58] sm:%s4] %v57
    %s60 = smul.addr 2, 4
    %s61 = scalar_lea.vmem %s0, %s60
    %v62 = vld [vmem:[%s61] sm:%s4]
    %s63 = scalar_lea.vmem [#allocation0], 32
    %64 = vst [vmem:[%s63] sm:%s4] %v62
    %s65 = smul.addr 2, 3
    %s66 = scalar_lea.vmem %s0, %s65
    %v67 = vld [vmem:[%s66] sm:%s4]
    %s68 = scalar_lea.vmem [#allocation0], 24
    %69 = vst [vmem:[%s68] sm:%s4] %v67
    %s70 = smul.addr 2, 2
    %s71 = scalar_lea.vmem %s0, %s70
    %v72 = vld [vmem:[%s71] sm:%s4]
    %s73 = scalar_lea.vmem [#allocation0], 16
    %74 = vst [vmem:[%s73] sm:%s4] %v72
    %s75 = scalar_lea.vmem %s0, 2
    %v76 = vld [vmem:[%s75] sm:%s4]
    %s77 = scalar_lea.vmem [#allocation0], 8
    %78 = vst [vmem:[%s77] sm:%s4] %v76
    %v79 = vld [vmem:[%s0] sm:%s4]
    %80 = vst [vmem:[#allocation0] sm:%s4] %v79
    %v81 = vld [vmem:[#allocation0] ss:$8 sm:$0xf]
    %v82 = vld [vmem:[#allocation0] ss:$8 sm:$0xf0]
    %vm83 = vcmask 1047556
    %v84 = vsel %vm83, %v82, %v81
    %vm85 = vcmask 523264
    %86 = vst.msk [vmem:[%s1] sm:$0xff] %vm85, %v84
    %s87 = scalar_lea.vmem [#allocation0], 64
    %v88 = vld [vmem:[%s87] ss:$8 sm:$0xf]
    %s89 = scalar_lea.vmem [#allocation0], 64
    %v90 = vld [vmem:[%s89] ss:$8 sm:$0xf0]
    %vm91 = vcmask 1047556
    %v92 = vsel %vm91, %v90, %v88
    %vm93 = vcmask 523264
    %s94 = scalar_lea.vmem %s1, 8
    %95 = vst.msk [vmem:[%s94] sm:$0xff] %vm93, %v92
    %s96 = scalar_lea.vmem [#allocation0], 1
    %v97 = vld [vmem:[%s96] ss:$8 sm:$0xf]
    %s98 = scalar_lea.vmem [#allocation0], 1
    %v99 = vld [vmem:[%s98] ss:$8 sm:$0xf0]
    %vm100 = vcmask 1047556
    %v101 = vsel %vm100, %v99, %v97
    %102 = vrot.lane.b32.xlu0 %v101, 64
    %v103 = vpop.permute.xlu0 %102
    %vm104 = vcmask 1048064
    %105 = vst.msk [vmem:[%s1] sm:$0xff] %vm104, %v103
    %s106 = scalar_lea.vmem [#allocation0], 65
    %v107 = vld [vmem:[%s106] ss:$8 sm:$0xf]
    %s108 = scalar_lea.vmem [#allocation0], 65
    %v109 = vld [vmem:[%s108] ss:$8 sm:$0xf0]
    %vm110 = vcmask 1047556
    %v111 = vsel %vm110, %v109, %v107
    %112 = vrot.lane.b32.xlu0 %v111, 64
    %v113 = vpop.permute.xlu0 %112
    %vm114 = vcmask 1048064
    %s115 = scalar_lea.vmem %s1, 8
    %116 = vst.msk [vmem:[%s115] sm:$0xff] %vm114, %v113

// kernel: local_dis_forward.7
$region0: #{local_dis_forward.7}
  #allocation0 [shape = 'u32[]', space=smem, size = 0x4, offset = 0x4, fixed_abs, tag = 'smem constant byte address 0x4 - core index']
  #allocation1 [shape = 'u32[144,128]{1,0:T(1,128)}', space=vmem, size = 0x12000, scoped, tag = 'internal scratch']
  #allocation2 [shape = 'f32[1,1]{1,0:T(1,128)S(1)}', space=vmem, size = 0x200, scoped, tag = 'scoped memory for local_dis_forward.7']
  %s0 = inlined_call_operand.vmem [shape: bf16[16,400], index: 0, kind: input, shape index: {}]
  %s1 = inlined_call_operand.vmem [shape: bf16[400,128], index: 1, kind: input, shape index: {}]
  %s2 = inlined_call_operand.vmem [shape: f32[16,1], index: 2, kind: input, shape index: {}]
  %s3 = inlined_call_operand.vmem [shape: f32[16,128], index: 3, kind: input, shape index: {}]
  %s4 = inlined_call_operand.vmem [shape: f32[128,2], index: 4, kind: input, shape index: {}]
  %s5 = inlined_call_operand.<no memory space> [shape: f32[1,1], index: 5, kind: input, shape index: {}]
  %s6 = inlined_call_operand.hbm [shape: f32[1,2], index: 6, kind: output, shape index: {}]
  %s7 = sld [smem:[#allocation0]]
  $region34: #{local_dis_forward.7} parent=0
    _
  %s9 = ssub.s32 1, %s7
  %s10 = scalar_select 0, %s9, %s7
  %v11 = vstv %s5
  %12 = vst [vmem:[#allocation2] sm:$0x1] %v11
  $region1: #{local_dis_forward.7} parent=0
    #allocation3 [shape = 'u8[512]{0}', space=vmem, size = 0x400, scoped, tag = 'output window, operand 0, single buffered']
    #allocation4 [shape = 's32[1]{0}', space=sflag, size = 0x4, scoped, tag = 'scoped memory for local_dis_forward.7']
    %13 = vsyncpa [#allocation4], 0
    // Predicated region
    $region2: #{local_dis_forward.7} parent=1 // pred_check
      _
    $region3: #{local_dis_forward.7} parent=1 // pred_check_branch
      %15 = sbr.rel (0) target = $region5
    $region4: #{local_dis_forward.7} parent=1 // pred_region
      _
    $region5: #{local_dis_forward.7} parent=1 // pred_fallthru
      _
    // Predicated region
    $region6: #{local_dis_forward.7} parent=1 // pred_check
      _
    $region7: #{local_dis_forward.7} parent=1 // pred_check_branch
      %17 = sbr.rel (0) target = $region9
    $region8: #{local_dis_forward.7} parent=1 // pred_region
      _
    $region9: #{local_dis_forward.7} parent=1 // pred_fallthru
      _
    // Predicated region
    $region10: #{local_dis_forward.7} parent=1 // pred_check
      _
    $region11: #{local_dis_forward.7} parent=1 // pred_check_branch
      %19 = sbr.rel (0) target = $region13
    $region12: #{local_dis_forward.7} parent=1 // pred_region
      _
    $region13: #{local_dis_forward.7} parent=1 // pred_fallthru
      _
    // Predicated region
    $region14: #{local_dis_forward.7} parent=1 // pred_check
      _
    $region15: #{local_dis_forward.7} parent=1 // pred_check_branch
      %21 = sbr.rel (0) target = $region17
    $region16: #{local_dis_forward.7} parent=1 // pred_region
      _
    $region17: #{local_dis_forward.7} parent=1 // pred_fallthru
      _
    // Predicated region
    $region18: #{local_dis_forward.7} parent=1 // pred_check
      _
    $region19: #{local_dis_forward.7} parent=1 // pred_check_branch
      %23 = sbr.rel (0) target = $region21
    $region20: #{local_dis_forward.7} parent=1 // pred_region
      _
    $region21: #{local_dis_forward.7} parent=1 // pred_fallthru
      _
    // Predicated region
    $region22: #{local_dis_forward.7} parent=1 // pred_check
      _
    $region23: #{local_dis_forward.7} parent=1 // pred_check_branch
      %25 = sbr.rel (0) target = $region25
    $region24: #{local_dis_forward.7} parent=1 // pred_region
      _
    $region25: #{local_dis_forward.7} parent=1 // pred_fallthru
      _
    %v27 = vld [vmem:[%s0] sm:$0xff]
    %v28 = vld [vmem:[%s0 + $0x8] sm:$0xff]
    %v29 = vld [vmem:[%s0 + $0x10] sm:$0xff]
    %v30 = vld [vmem:[%s0 + $0x18] sm:$0xff]
    %v31 = vld [vmem:[%s1] sm:$0xf]
    %v32 = vld [vmem:[%s1 + $0x4] sm:$0xf]
    %v33 = vld [vmem:[%s1 + $0x8] sm:$0xf]
    %v34 = vld [vmem:[%s1 + $0xc] sm:$0xf]
    %v35 = vld [vmem:[%s1 + $0x10] sm:$0xf]
    %v36 = vld [vmem:[%s1 + $0x14] sm:$0xf]
    %v37 = vld [vmem:[%s1 + $0x18] sm:$0xf]
    %v38 = vld [vmem:[%s1 + $0x1c] sm:$0xf]
    %v39 = vld [vmem:[%s1 + $0x20] sm:$0xf]
    %v40 = vld [vmem:[%s1 + $0x24] sm:$0xf]
    %v41 = vld [vmem:[%s1 + $0x28] sm:$0xf]
    %v42 = vld [vmem:[%s1 + $0x2c] sm:$0xf]
    %v43 = vld [vmem:[%s1 + $0x30] sm:$0xf]
    %v44 = vld [vmem:[%s1 + $0x34] sm:$0xf]
    %v45 = vld [vmem:[%s1 + $0x38] sm:$0xf]
    %v46 = vld [vmem:[%s1 + $0x3c] sm:$0xf]
    %v47 = vld [vmem:[%s1 + $0x40] sm:$0xf]
    %v48 = vld [vmem:[%s1 + $0x44] sm:$0xf]
    %v49 = vld [vmem:[%s1 + $0x48] sm:$0xf]
    %v50 = vld [vmem:[%s1 + $0x4c] sm:$0xf]
    %v51 = vld [vmem:[%s1 + $0x50] sm:$0xf]
    %v52 = vld [vmem:[%s1 + $0x54] sm:$0xf]
    %v53 = vld [vmem:[%s1 + $0x58] sm:$0xf]
    %v54 = vld [vmem:[%s1 + $0x5c] sm:$0xf]
    %v55 = vld [vmem:[%s1 + $0x60] sm:$0xf]
    %v56 = vld [vmem:[%s1 + $0x64] sm:$0xf]
    %v57 = vld [vmem:[%s1 + $0x68] sm:$0xf]
    %v58 = vld [vmem:[%s1 + $0x6c] sm:$0xf]
    %v59 = vld [vmem:[%s1 + $0x70] sm:$0xf]
    %v60 = vld [vmem:[%s1 + $0x74] sm:$0xf]
    %v61 = vld [vmem:[%s1 + $0x78] sm:$0xf]
    %v62 = vld [vmem:[%s1 + $0x7c] sm:$0xf]
    %v63 = vld [vmem:[%s1 + $0x80] sm:$0xf]
    %v64 = vld [vmem:[%s1 + $0x84] sm:$0xf]
    %v65 = vld [vmem:[%s1 + $0x88] sm:$0xf]
    %v66 = vld [vmem:[%s1 + $0x8c] sm:$0xf]
    %v67 = vld [vmem:[%s1 + $0x90] sm:$0xf]
    %v68 = vld [vmem:[%s1 + $0x94] sm:$0xf]
    %v69 = vld [vmem:[%s1 + $0x98] sm:$0xf]
    %v70 = vld [vmem:[%s1 + $0x9c] sm:$0xf]
    %v71 = vld [vmem:[%s1 + $0xa0] sm:$0xf]
    %v72 = vld [vmem:[%s1 + $0xa4] sm:$0xf]
    %v73 = vld [vmem:[%s1 + $0xa8] sm:$0xf]
    %v74 = vld [vmem:[%s1 + $0xac] sm:$0xf]
    %v75 = vld [vmem:[%s1 + $0xb0] sm:$0xf]
    %v76 = vld [vmem:[%s1 + $0xb4] sm:$0xf]
    %v77 = vld [vmem:[%s1 + $0xb8] sm:$0xf]
    %v78 = vld [vmem:[%s1 + $0xbc] sm:$0xf]
    %v79 = vld [vmem:[%s1 + $0xc0] sm:$0xf]
    %v80 = vld [vmem:[%s1 + $0xc4] sm:$0xf]
    %v81 = vld [vmem:[%s2] sm:$0xff]
    %v82 = vld [vmem:[%s2 + $0x8] sm:$0xff]
    %84 = vset.pattern.permute.xlu0 0
    %85 = vperm.xlu0 %84, %v81
    %v86 = vpop.permute.xlu0 %85
    %89 = vset.pattern.permute.xlu0 0
    %90 = vperm.xlu0 %89, %v82
    %v91 = vpop.permute.xlu0 %90
    %v97 = vunpack.c.l.b16 %v27
    %v98 = vunpack.c.h.b16 %v27
    %v99 = vunpack.c.l.b16 %v28
    %v100 = vunpack.c.h.b16 %v28
    %v101 = vunpack.c.l.b16 %v29
    %v102 = vunpack.c.h.b16 %v29
    %v103 = vunpack.c.l.b16 %v30
    %v104 = vunpack.c.h.b16 %v30
    %v105 = vpack.c.b16 %v101, %v97
    %v106 = vpack.c.b16 %v102, %v98
    %v107 = vpack.c.b16 %v103, %v99
    %v108 = vpack.c.b16 %v104, %v100
    %v162 = vunpack.c.l.b16 %v31
    %v163 = vunpack.c.l.b16 %v32
    %v164 = vunpack.c.l.b16 %v33
    %v165 = vunpack.c.l.b16 %v34
    %v166 = vunpack.c.l.b16 %v35
    %v167 = vunpack.c.l.b16 %v36
    %v168 = vunpack.c.l.b16 %v37
    %v169 = vunpack.c.l.b16 %v38
    %v170 = vunpack.c.l.b16 %v39
    %v171 = vunpack.c.l.b16 %v40
    %v172 = vunpack.c.l.b16 %v41
    %v173 = vunpack.c.l.b16 %v42
    %v174 = vunpack.c.l.b16 %v43
    %v175 = vunpack.c.l.b16 %v44
    %v176 = vunpack.c.l.b16 %v45
    %v177 = vunpack.c.l.b16 %v46
    %v178 = vunpack.c.l.b16 %v47
    %v179 = vunpack.c.l.b16 %v48
    %v180 = vunpack.c.l.b16 %v49
    %v181 = vunpack.c.l.b16 %v50
    %v182 = vunpack.c.l.b16 %v51
    %v183 = vunpack.c.l.b16 %v52
    %v184 = vunpack.c.l.b16 %v53
    %v185 = vunpack.c.l.b16 %v54
    %v186 = vunpack.c.l.b16 %v55
    %v187 = vunpack.c.l.b16 %v56
    %v188 = vunpack.c.l.b16 %v57
    %v189 = vunpack.c.l.b16 %v58
    %v190 = vunpack.c.l.b16 %v59
    %v191 = vunpack.c.l.b16 %v60
    %v192 = vunpack.c.l.b16 %v61
    %v193 = vunpack.c.l.b16 %v62
    %v194 = vunpack.c.l.b16 %v63
    %v195 = vunpack.c.l.b16 %v64
    %v196 = vunpack.c.l.b16 %v65
    %v197 = vunpack.c.l.b16 %v66
    %v198 = vunpack.c.l.b16 %v67
    %v199 = vunpack.c.l.b16 %v68
    %v200 = vunpack.c.l.b16 %v69
    %v201 = vunpack.c.l.b16 %v70
    %v202 = vunpack.c.l.b16 %v71
    %v203 = vunpack.c.l.b16 %v72
    %v204 = vunpack.c.l.b16 %v73
    %v205 = vunpack.c.l.b16 %v74
    %v206 = vunpack.c.l.b16 %v75
    %v207 = vunpack.c.l.b16 %v76
    %v208 = vunpack.c.l.b16 %v77
    %v209 = vunpack.c.l.b16 %v78
    %v210 = vunpack.c.l.b16 %v79
    %v211 = vunpack.c.l.b16 %v80
    %v212 = vpack.c.b16 %v163, %v162
    %v213 = vpack.c.b16 %v165, %v164
    %v214 = vpack.c.b16 %v167, %v166
    %v215 = vpack.c.b16 %v169, %v168
    %v216 = vpack.c.b16 %v171, %v170
    %v217 = vpack.c.b16 %v173, %v172
    %v218 = vpack.c.b16 %v175, %v174
    %v219 = vpack.c.b16 %v177, %v176
    %v220 = vpack.c.b16 %v179, %v178
    %v221 = vpack.c.b16 %v181, %v180
    %v222 = vpack.c.b16 %v183, %v182
    %v223 = vpack.c.b16 %v185, %v184
    %v224 = vpack.c.b16 %v187, %v186
    %v225 = vpack.c.b16 %v189, %v188
    %v226 = vpack.c.b16 %v191, %v190
    %v227 = vpack.c.b16 %v193, %v192
    %v228 = vpack.c.b16 %v195, %v194
    %v229 = vpack.c.b16 %v197, %v196
    %v230 = vpack.c.b16 %v199, %v198
    %v231 = vpack.c.b16 %v201, %v200
    %v232 = vpack.c.b16 %v203, %v202
    %v233 = vpack.c.b16 %v205, %v204
    %v234 = vpack.c.b16 %v207, %v206
    %v235 = vpack.c.b16 %v209, %v208
    %v236 = vpack.c.b16 %v211, %v210
    %vm262 = vcmask 130048
    %v264 = vsel %vm262, %v108, 0
    %266 = vmatprep.subr.bf16.mxu0 0
    %267 = vmatpush1.bf16.msra.mxu0 %v219
    %268 = vmatprep.subr.bf16.mxu0 0
    %269 = vmatpush1.bf16.msra.mxu0 %v218
    %270 = vmatprep.subr.bf16.mxu0 0
    %271 = vmatpush1.bf16.msra.mxu0 %v217
    %272 = vmatprep.subr.bf16.mxu0 0
    %273 = vmatpush1.bf16.msra.mxu0 %v216
    %274 = vmatprep.subr.bf16.mxu0 0
    %275 = vmatpush1.bf16.msra.mxu0 %v215
    %276 = vmatprep.subr.bf16.mxu0 0
    %277 = vmatpush1.bf16.msra.mxu0 %v214
    %278 = vmatprep.subr.bf16.mxu0 0
    %279 = vmatpush1.bf16.msra.mxu0 %v213
    %280 = vmatprep.subr.bf16.mxu0 0
    %281 = vmatpush1.bf16.msra.mxu0 %v212
    %282 = vmatprep.subr.bf16.mxu0 0
    %283 = vmatpush2.bf16.msra.mxu0 %v227
    %284 = vmatprep.subr.bf16.mxu0 0
    %285 = vmatpush2.bf16.msra.mxu0 %v226
    %286 = vmatprep.subr.bf16.mxu0 0
    %287 = vmatpush2.bf16.msra.mxu0 %v225
    %288 = vmatprep.subr.bf16.mxu0 0
    %289 = vmatpush2.bf16.msra.mxu0 %v224
    %290 = vmatprep.subr.bf16.mxu0 0
    %291 = vmatpush2.bf16.msra.mxu0 %v223
    %292 = vmatprep.subr.bf16.mxu0 0
    %293 = vmatpush2.bf16.msra.mxu0 %v222
    %294 = vmatprep.subr.bf16.mxu0 0
    %295 = vmatpush2.bf16.msra.mxu0 %v221
    %296 = vmatprep.subr.bf16.mxu0 0
    %297 = vmatpush2.bf16.msra.mxu0 %v220
    %298 = vmatprep.mubr.bf16.mxu0 %v106
    %299 = vmatmul.mubr.bf16.gmra.mxu0 %v105
    %v300 = vpop.f32.mrf.mxu0
    %v301 = vadd.f32 %v86, %v300
    %v302 = vpop.f32.mrf.mxu0
    %v303 = vpop.f32.mrf.mxu0
    %v304 = vadd.f32 %v91, %v303
    %v305 = vpop.f32.mrf.mxu0
    %306 = vdwg.mxu0
    %307 = vmatprep.subr.bf16.mxu0 0
    %308 = vmatpush1.bf16.msra.mxu0 %v235
    %309 = vmatprep.subr.bf16.mxu0 0
    %310 = vmatpush1.bf16.msra.mxu0 %v234
    %311 = vmatprep.subr.bf16.mxu0 0
    %312 = vmatpush1.bf16.msra.mxu0 %v233
    %313 = vmatprep.subr.bf16.mxu0 0
    %314 = vmatpush1.bf16.msra.mxu0 %v232
    %315 = vmatprep.subr.bf16.mxu0 0
    %316 = vmatpush1.bf16.msra.mxu0 %v231
    %317 = vmatprep.subr.bf16.mxu0 0
    %318 = vmatpush1.bf16.msra.mxu0 %v230
    %319 = vmatprep.subr.bf16.mxu0 0
    %320 = vmatpush1.bf16.msra.mxu0 %v229
    %321 = vmatprep.subr.bf16.mxu0 0
    %322 = vmatpush1.bf16.msra.mxu0 %v228
    %323 = vmatprep.subr.bf16.mxu0 0
    %324 = vmatpush2.bf16.msra.mxu0 0
    %325 = vmatprep.subr.bf16.mxu0 0
    %326 = vmatpush2.bf16.msra.mxu0 0
    %327 = vmatprep.subr.bf16.mxu0 0
    %328 = vmatpush2.bf16.msra.mxu0 0
    %329 = vmatprep.subr.bf16.mxu0 0
    %330 = vmatpush2.bf16.msra.mxu0 0
    %331 = vmatprep.subr.bf16.mxu0 0
    %332 = vmatpush2.bf16.msra.mxu0 0
    %333 = vmatprep.subr.bf16.mxu0 0
    %334 = vmatpush2.bf16.msra.mxu0 0
    %335 = vmatprep.subr.bf16.mxu0 0
    %336 = vmatpush2.bf16.msra.mxu0 0
    %337 = vmatprep.subr.bf16.mxu0 0
    %338 = vmatpush2.bf16.msra.mxu0 %v236
    %339 = vmatprep.mubr.bf16.mxu0 %v264
    %340 = vmatmul.mubr.bf16.gmra.mxu0 %v107
    %v341 = vpop.f32.mrf.mxu0
    %v342 = vadd.f32 %v301, %v341
    %v343 = vpop.f32.mrf.mxu0
    %v344 = vpop.f32.mrf.mxu0
    %v345 = vadd.f32 %v304, %v344
    %v346 = vpop.f32.mrf.mxu0
    %347 = vdwg.mxu0
    %vm348 = vcmp.gt.f32.partialorder %v342, 0.0
    %vm349 = vcmp.gt.f32.partialorder %v345, 0.0
    %v350 = vmul.f32 %v342, 0.2
    %v351 = vmul.f32 %v345, 0.2
    %v352 = vsel %vm348, %v342, %v350
    %v353 = vsel %vm349, %v345, %v351
    %v354 = vld [vmem:[%s3] sm:$0xff]
    %v355 = vld [vmem:[%s3 + $0x8] sm:$0xff]
    %v356 = vmul.f32 %v352, %v354
    %v357 = vmul.f32 %v353, %v355
    %v358 = vadd.f32 %v356, %v357
    %v359 = vrot.slane %v358, 4
    %v360 = vadd.f32 %v358, %v359
    %v361 = vrot.slane %v360, 2
    %v362 = vadd.f32 %v360, %v361
    %v363 = vrot.slane %v362, 1
    %v364 = vadd.f32 %v362, %v363
    %v365 = vld [vmem:[%s4] sm:$0xff]
    %v366 = vld [vmem:[%s4 + $0x8] sm:$0xff]
    %v367 = vld [vmem:[%s4 + $0x10] sm:$0xff]
    %v368 = vld [vmem:[%s4 + $0x18] sm:$0xff]
    %v369 = vld [vmem:[%s4 + $0x20] sm:$0xff]
    %v370 = vld [vmem:[%s4 + $0x28] sm:$0xff]
    %v371 = vld [vmem:[%s4 + $0x30] sm:$0xff]
    %v372 = vld [vmem:[%s4 + $0x38] sm:$0xff]
    %v373 = vld [vmem:[%s4 + $0x40] sm:$0xff]
    %v374 = vld [vmem:[%s4 + $0x48] sm:$0xff]
    %v375 = vld [vmem:[%s4 + $0x50] sm:$0xff]
    %v376 = vld [vmem:[%s4 + $0x58] sm:$0xff]
    %v377 = vld [vmem:[%s4 + $0x60] sm:$0xff]
    %v378 = vld [vmem:[%s4 + $0x68] sm:$0xff]
    %v379 = vld [vmem:[%s4 + $0x70] sm:$0xff]
    %v380 = vld [vmem:[%s4 + $0x78] sm:$0xff]
    %v381 = vld [vmem:[#allocation2] sm:$0x1]
    %383 = vset.pattern.permute.xlu0 0
    %384 = vperm.xlu0 %383, %v381
    %v385 = vpop.permute.xlu0 %384
    %v387 = vlaneseq
    %v388 = vshrl.u32 %v387, 7
    %v389 = vsub.s32 0, %v388
    %v390 = vrot.slane %v385, %v389
    %391 = vmatprep.subr.mxu0 0.0
    %392 = vmatpush1.msra.mxu0 %v380
    %393 = vmatprep.subr.mxu0 0.0
    %394 = vmatpush1.msra.mxu0 %v379
    %395 = vmatprep.subr.mxu0 0.0
    %396 = vmatpush1.msra.mxu0 %v378
    %397 = vmatprep.subr.mxu0 0.0
    %398 = vmatpush1.msra.mxu0 %v377
    %399 = vmatprep.subr.mxu0 0.0
    %400 = vmatpush1.msra.mxu0 %v376
    %401 = vmatprep.subr.mxu0 0.0
    %402 = vmatpush1.msra.mxu0 %v375
    %403 = vmatprep.subr.mxu0 0.0
    %404 = vmatpush1.msra.mxu0 %v374
    %405 = vmatprep.subr.mxu0 0.0
    %406 = vmatpush1.msra.mxu0 %v373
    %407 = vmatprep.subr.mxu0 0.0
    %408 = vmatpush1.msra.mxu0 %v372
    %409 = vmatprep.subr.mxu0 0.0
    %410 = vmatpush1.msra.mxu0 %v371
    %411 = vmatprep.subr.mxu0 0.0
    %412 = vmatpush1.msra.mxu0 %v370
    %413 = vmatprep.subr.mxu0 0.0
    %414 = vmatpush1.msra.mxu0 %v369
    %415 = vmatprep.subr.mxu0 0.0
    %416 = vmatpush1.msra.mxu0 %v368
    %417 = vmatprep.subr.mxu0 0.0
    %418 = vmatpush1.msra.mxu0 %v367
    %419 = vmatprep.subr.mxu0 0.0
    %420 = vmatpush1.msra.mxu0 %v366
    %421 = vmatprep.subr.mxu0 0.0
    %422 = vmatpush1.msra.mxu0 %v365
    %423 = vmatprep.subr.mxu0 0.0
    %424 = vmatpush2.msra.mxu0 0.0
    %425 = vmatprep.subr.mxu0 0.0
    %426 = vmatpush2.msra.mxu0 0.0
    %427 = vmatprep.subr.mxu0 0.0
    %428 = vmatpush2.msra.mxu0 0.0
    %429 = vmatprep.subr.mxu0 0.0
    %430 = vmatpush2.msra.mxu0 0.0
    %431 = vmatprep.subr.mxu0 0.0
    %432 = vmatpush2.msra.mxu0 0.0
    %433 = vmatprep.subr.mxu0 0.0
    %434 = vmatpush2.msra.mxu0 0.0
    %435 = vmatprep.subr.mxu0 0.0
    %436 = vmatpush2.msra.mxu0 0.0
    %437 = vmatprep.subr.mxu0 0.0
    %438 = vmatpush2.msra.mxu0 0.0
    %439 = vmatprep.subr.mxu0 0.0
    %440 = vmatpush2.msra.mxu0 0.0
    %441 = vmatprep.subr.mxu0 0.0
    %442 = vmatpush2.msra.mxu0 0.0
    %443 = vmatprep.subr.mxu0 0.0
    %444 = vmatpush2.msra.mxu0 0.0
    %445 = vmatprep.subr.mxu0 0.0
    %446 = vmatpush2.msra.mxu0 0.0
    %447 = vmatprep.subr.mxu0 0.0
    %448 = vmatpush2.msra.mxu0 0.0
    %449 = vmatprep.subr.mxu0 0.0
    %450 = vmatpush2.msra.mxu0 0.0
    %451 = vmatprep.subr.mxu0 0.0
    %452 = vmatpush2.msra.mxu0 0.0
    %453 = vmatprep.subr.mxu0 0.0
    %454 = vmatpush2.msra.mxu0 0.0
    %455 = vmatprep.mubr.f32.mxu0 0.0
    %456 = vmatmul.mubr.f32.gmra.mxu0 %v364
    %v457 = vpop.f32.mrf.mxu0
    %v458 = vadd.f32 %v390, %v457
    %v459 = vpop.f32.mrf.mxu0
    %460 = vdwg.mxu0
    %vm461 = vcmask 8192
    %462 = vst.msk [vmem:[#allocation3] sm:$0x1] %vm461, %v458
    // Predicated region
    $region26: #{local_dis_forward.7} parent=1 // pred_check
      _
    $region27: #{local_dis_forward.7} parent=1 // pred_check_branch
      %464 = sbr.rel (0) target = $region29
    $region28: #{local_dis_forward.7} parent=1 // pred_region
      %s466 = ssub.s32 16, 16
      %467 = vsyncadd [#allocation4], %s466
      %s469 = sshll.u32 [#allocation3], 4
      %s470 = int_to_ptr.vmem [resolvable:$true] %s469
      %472 = dma.vmem_to_hbm [thread:$0]  %s470, 16, %s6, [#allocation4]
    $region29: #{local_dis_forward.7} parent=1 // pred_fallthru
      _
    // Predicated region
    $region30: #{local_dis_forward.7} parent=1 // pred_check
      _
    $region31: #{local_dis_forward.7} parent=1 // pred_check_branch
      %474 = sbr.rel (0) target = $region33
    $region32: #{local_dis_forward.7} parent=1 // pred_region
      %475 = dma.done [#allocation4], 16
    $region33: #{local_dis_forward.7} parent=1 // pred_fallthru
      _
    %476 = vsyncpa [#allocation4], 1

</llo_original>
